<compile_context>
chip_gen: v6e
topology: v6e:2x2x1
jax: 0.10.0
libtpu: 0.0.40
codegen_flags: <defaults>
</compile_context>

<pallas_src>
import functools

import jax
import jax.numpy as jnp
from jax.experimental import pallas as pl
from jax.experimental.pallas import tpu as pltpu


def _pixel_shuffle_kernel(x_ref, o_ref, *, u):
    # x_ref: (u*u, th, w)   sub-pixel planes for one (batch, flow-channel, h-tile)
    # o_ref: (u*th, u*w)    upsampled output tile (lane-dense last dim)
    _, th, w = x_ref.shape
    uh, uw = o_ref.shape
    f32 = jnp.float32
    # One-hot scatter is exact for f32 data only with HIGHEST (multi-pass MXU);
    # bf16/f16 data is exactly representable in a single bf16 pass already.
    prec = (jax.lax.Precision.HIGHEST
            if x_ref.dtype == jnp.float32 else jax.lax.Precision.DEFAULT)

    # ---- one-hot permutation masks generated in-kernel (no HBM traffic) ------
    # Row interleave: output row r = hi*u + ui reads stacked-source row ui*th + hi.
    r_out = jax.lax.broadcasted_iota(jnp.int32, (uh, uh), 0)   # output row index
    r_src = jax.lax.broadcasted_iota(jnp.int32, (uh, uh), 1)   # stacked source row
    if (u & (u - 1)) == 0:                                     # u is a power of two
        shift = u.bit_length() - 1
        hi_idx, ui_idx = r_out >> shift, r_out & (u - 1)
    else:
        hi_idx, ui_idx = r_out // u, r_out % u
    e_mat = (r_src == ui_idx * th + hi_idx).astype(f32)        # (u*th, u*th)

    # Column scatter iotas (shared across uj): output col wi*u + uj <- source col wi.
    c_src = jax.lax.broadcasted_iota(jnp.int32, (w, uw), 0)    # source column wi
    c_out = jax.lax.broadcasted_iota(jnp.int32, (w, uw), 1)    # output column l

    for uj in range(u):                                        # static, fully unrolled
        # Planes sharing this uj, stacked ui-major along rows -> (u*th, w).
        x_uj = jnp.concatenate(
            [x_ref[ui * u + uj].astype(f32) for ui in range(u)], axis=0)
        # Sublane (row) interleave via the one-hot permutation (tiny contraction).
        rows = jnp.dot(e_mat, x_uj, preferred_element_type=f32, precision=prec)
        # Lane (column) scatter: ONE matmul per uj (contraction w).
        f_uj = (c_out == c_src * u + uj).astype(f32)           # (w, u*w)
        term = jnp.dot(rows, f_uj, preferred_element_type=f32, precision=prec)
        # Terms have disjoint column support -> accumulating in o_ref's dtype is
        # exact and avoids any large register-resident accumulator.
        if uj == 0:
            o_ref[...] = term.astype(o_ref.dtype)
        else:
            o_ref[...] += term.astype(o_ref.dtype)


def _pick_tile_h(h, max_tile=64):
    """Largest multiple-of-8 divisor of h that is <= max_tile (fallback: full h)."""
    best = None
    t = 8
    while t <= min(h, max_tile):
        if h % t == 0:
            best = t
        t += 8
    return best if best is not None else h


def convex_upsampling(flow, up_flow, upsample_factor, *, tile_h=None):
    """Pallas implementation of model/gmflow/utils.py::convex_upsampling.forward."""
    b, c, h, w = flow.shape
    u = int(upsample_factor)
    assert up_flow.shape == (b, c * u * u, h, w), up_flow.shape

    if tile_h is None:
        tile_h = _pick_tile_h(h)
    assert h % tile_h == 0 and (tile_h % 8 == 0 or tile_h == h), (h, tile_h)

    uh, uw = u * tile_h, u * w
    grid = (b, c, h // tile_h)

    # Mem-movement op with a small amount of one-hot MXU scatter work.
    macs_per_step = u * (uh * uh * w + uh * w * uw)
    itemsize = jnp.dtype(up_flow.dtype).itemsize
    cost = pl.CostEstimate(
        flops=2 * b * c * (h // tile_h) * macs_per_step,
        transcendentals=0,
        bytes_accessed=2 * b * c * u * u * h * w * itemsize,
    )

    kernel = functools.partial(_pixel_shuffle_kernel, u=u)
    out = pl.pallas_call(
        kernel,
        out_shape=jax.ShapeDtypeStruct((b, c, u * h, u * w), up_flow.dtype),
        grid_spec=pltpu.PrefetchScalarGridSpec(
            num_scalar_prefetch=0,
            grid=grid,
            in_specs=[
                # all u*u sub-pixel planes for one (batch, flow-channel, h-tile)
                pl.BlockSpec((None, u * u, tile_h, w),
                             lambda bi, ci, hi: (bi, ci, hi, 0)),
            ],
            out_specs=pl.BlockSpec((None, None, u * tile_h, u * w),
                                   lambda bi, ci, hi: (bi, ci, hi, 0)),
        ),
        compiler_params=pltpu.CompilerParams(
            dimension_semantics=("parallel", "parallel", "parallel"),
            vmem_limit_bytes=32 * 1024 * 1024,
        ),
        cost_estimate=cost,
    )(up_flow)
    return out


if __name__ == "__main__":
    # Small shapes consistent with the module: flow has 2 channels, u = 4.
    u = 4
    b, c, h, w = 2, 2, 16, 16

    key = jax.random.PRNGKey(0)
    k1, k2 = jax.random.split(key)
    flow = jax.random.normal(k1, (b, c, h, w), dtype=jnp.float32)
    up_flow = jax.random.normal(k2, (b, c * u * u, h, w), dtype=jnp.float32)

    # tile_h=8 -> grid (2, 2, 2): exercises the h-tiling / pipelined path.
    out = jax.block_until_ready(convex_upsampling(flow, up_flow, u, tile_h=8))

    # Pure-JAX reference of the PyTorch forward.
    ref = (
        up_flow.reshape(b, c, u, u, h, w)
        .transpose(0, 1, 4, 2, 5, 3)
        .reshape(b, c, u * h, u * w)
    )
    assert out.shape == (b, c, u * h, u * w)
    assert out.dtype == up_flow.dtype
    assert jnp.allclose(out, ref, atol=1e-6), "Pallas output does not match reference"
    print("KERNEL_OK")
</pallas_src>

<mosaic_0001>
module attributes {stable_mosaic.version = 11 : i64} {
  func.func @_pixel_shuffle_kernel(%arg0: i32, %arg1: i32, %arg2: i32, %arg3: memref<1x16x8x16xf32, #tpu.memory_space<vmem>>, %arg4: memref<1x1x32x64xf32, #tpu.memory_space<vmem>>) attributes {dimension_semantics = [#tpu.dimension_semantics<parallel>, #tpu.dimension_semantics<parallel>, #tpu.dimension_semantics<parallel>], iteration_bounds = array<i64: 2, 2, 2>, scalar_prefetch = 0 : i64, scratch_operands = 0 : i64, tpu.core_type = #tpu.core_type<tc>, window_params = [{transform_indices = @transform_0, window_bounds = array<i64: 1, 16, 8, 16>}, {transform_indices = @transform_1, window_bounds = array<i64: 1, 1, 32, 64>}]} {
    %0 = tpu.iota {dimensions = array<i32: 0>} : vector<32x32xi32>
    %1 = tpu.iota {dimensions = array<i32: 1>} : vector<32x32xi32>
    %c2_i32 = arith.constant 2 : i32
    %2 = vector.broadcast %c2_i32 : i32 to vector<32x32xi32>
    %3 = arith.shrsi %0, %2 : vector<32x32xi32>
    %c3_i32 = arith.constant 3 : i32
    %4 = vector.broadcast %c3_i32 : i32 to vector<32x32xi32>
    %5 = arith.andi %0, %4 : vector<32x32xi32>
    %c8_i32 = arith.constant 8 : i32
    %6 = vector.broadcast %c8_i32 : i32 to vector<32x32xi32>
    %7 = arith.muli %5, %6 : vector<32x32xi32>
    %8 = arith.addi %7, %3 : vector<32x32xi32>
    %9 = arith.cmpi eq, %1, %8 : vector<32x32xi32>
    %10 = arith.extui %9 : vector<32x32xi1> to vector<32x32xi32>
    %11 = arith.sitofp %10 : vector<32x32xi32> to vector<32x32xf32>
    %12 = tpu.iota {dimensions = array<i32: 0>} : vector<16x64xi32>
    %13 = tpu.iota {dimensions = array<i32: 1>} : vector<16x64xi32>
    %c0 = arith.constant 0 : index
    %c0_0 = arith.constant 0 : index
    %c0_1 = arith.constant 0 : index
    %c0_2 = arith.constant 0 : index
    %14 = vector.load %arg3[%c0, %c0_0, %c0_1, %c0_2] : memref<1x16x8x16xf32, #tpu.memory_space<vmem>>, vector<1x1x8x16xf32>
    %15 = vector.shape_cast %14 : vector<1x1x8x16xf32> to vector<8x16xf32>
    %c0_3 = arith.constant 0 : index
    %c4 = arith.constant 4 : index
    %c0_4 = arith.constant 0 : index
    %c0_5 = arith.constant 0 : index
    %16 = vector.load %arg3[%c0_3, %c4, %c0_4, %c0_5] : memref<1x16x8x16xf32, #tpu.memory_space<vmem>>, vector<1x1x8x16xf32>
    %17 = vector.shape_cast %16 : vector<1x1x8x16xf32> to vector<8x16xf32>
    %c0_6 = arith.constant 0 : index
    %c8 = arith.constant 8 : index
    %c0_7 = arith.constant 0 : index
    %c0_8 = arith.constant 0 : index
    %18 = vector.load %arg3[%c0_6, %c8, %c0_7, %c0_8] : memref<1x16x8x16xf32, #tpu.memory_space<vmem>>, vector<1x1x8x16xf32>
    %19 = vector.shape_cast %18 : vector<1x1x8x16xf32> to vector<8x16xf32>
    %c0_9 = arith.constant 0 : index
    %c12 = arith.constant 12 : index
    %c0_10 = arith.constant 0 : index
    %c0_11 = arith.constant 0 : index
    %20 = vector.load %arg3[%c0_9, %c12, %c0_10, %c0_11] : memref<1x16x8x16xf32, #tpu.memory_space<vmem>>, vector<1x1x8x16xf32>
    %21 = vector.shape_cast %20 : vector<1x1x8x16xf32> to vector<8x16xf32>
    %22 = tpu.concatenate %15, %17, %19, %21 in 0 : vector<8x16xf32>, vector<8x16xf32>, vector<8x16xf32>, vector<8x16xf32> -> vector<32x16xf32>
    %cst = arith.constant dense<0.000000e+00> : vector<32x16xf32>
    %23 = tpu.matmul %11, %22, %cst {dimension_numbers = #tpu.dot_dimension_numbers<[1], [0], [0], [1], [0, 0, 1, 1], [], []>, precision = #tpu.contract_precision<fp32>} : vector<32x32xf32>, vector<32x16xf32>, vector<32x16xf32> -> vector<32x16xf32>
    %c4_i32 = arith.constant 4 : i32
    %24 = vector.broadcast %c4_i32 : i32 to vector<16x64xi32>
    %25 = arith.muli %12, %24 : vector<16x64xi32>
    %c0_i32 = arith.constant 0 : i32
    %26 = vector.broadcast %c0_i32 : i32 to vector<16x64xi32>
    %27 = arith.addi %25, %26 : vector<16x64xi32>
    %28 = arith.cmpi eq, %13, %27 : vector<16x64xi32>
    %29 = arith.extui %28 : vector<16x64xi1> to vector<16x64xi32>
    %30 = arith.sitofp %29 : vector<16x64xi32> to vector<16x64xf32>
    %cst_12 = arith.constant dense<0.000000e+00> : vector<32x64xf32>
    %31 = tpu.matmul %23, %30, %cst_12 {dimension_numbers = #tpu.dot_dimension_numbers<[1], [0], [0], [1], [0, 0, 1, 1], [], []>, precision = #tpu.contract_precision<fp32>} : vector<32x16xf32>, vector<16x64xf32>, vector<32x64xf32> -> vector<32x64xf32>
    %c0_13 = arith.constant 0 : index
    %c0_14 = arith.constant 0 : index
    %c0_15 = arith.constant 0 : index
    %c0_16 = arith.constant 0 : index
    %32 = vector.load %arg4[%c0_13, %c0_14, %c0_15, %c0_16] : memref<1x1x32x64xf32, #tpu.memory_space<vmem>>, vector<1x1x32x64xf32>
    %33 = vector.shape_cast %32 : vector<1x1x32x64xf32> to vector<32x64xf32>
    %34 = vector.shape_cast %31 : vector<32x64xf32> to vector<1x1x32x64xf32>
    tpu.vector_store %arg4[%c0_13, %c0_14, %c0_15, %c0_16], %34 {strides = array<i32>} : memref<1x1x32x64xf32, #tpu.memory_space<vmem>>, vector<1x1x32x64xf32>,
    %c0_17 = arith.constant 0 : index
    %c1 = arith.constant 1 : index
    %c0_18 = arith.constant 0 : index
    %c0_19 = arith.constant 0 : index
    %35 = vector.load %arg3[%c0_17, %c1, %c0_18, %c0_19] : memref<1x16x8x16xf32, #tpu.memory_space<vmem>>, vector<1x1x8x16xf32>
    %36 = vector.shape_cast %35 : vector<1x1x8x16xf32> to vector<8x16xf32>
    %c0_20 = arith.constant 0 : index
    %c5 = arith.constant 5 : index
    %c0_21 = arith.constant 0 : index
    %c0_22 = arith.constant 0 : index
    %37 = vector.load %arg3[%c0_20, %c5, %c0_21, %c0_22] : memref<1x16x8x16xf32, #tpu.memory_space<vmem>>, vector<1x1x8x16xf32>
    %38 = vector.shape_cast %37 : vector<1x1x8x16xf32> to vector<8x16xf32>
    %c0_23 = arith.constant 0 : index
    %c9 = arith.constant 9 : index
    %c0_24 = arith.constant 0 : index
    %c0_25 = arith.constant 0 : index
    %39 = vector.load %arg3[%c0_23, %c9, %c0_24, %c0_25] : memref<1x16x8x16xf32, #tpu.memory_space<vmem>>, vector<1x1x8x16xf32>
    %40 = vector.shape_cast %39 : vector<1x1x8x16xf32> to vector<8x16xf32>
    %c0_26 = arith.constant 0 : index
    %c13 = arith.constant 13 : index
    %c0_27 = arith.constant 0 : index
    %c0_28 = arith.constant 0 : index
    %41 = vector.load %arg3[%c0_26, %c13, %c0_27, %c0_28] : memref<1x16x8x16xf32, #tpu.memory_space<vmem>>, vector<1x1x8x16xf32>
    %42 = vector.shape_cast %41 : vector<1x1x8x16xf32> to vector<8x16xf32>
    %43 = tpu.concatenate %36, %38, %40, %42 in 0 : vector<8x16xf32>, vector<8x16xf32>, vector<8x16xf32>, vector<8x16xf32> -> vector<32x16xf32>
    %cst_29 = arith.constant dense<0.000000e+00> : vector<32x16xf32>
    %44 = tpu.matmul %11, %43, %cst_29 {dimension_numbers = #tpu.dot_dimension_numbers<[1], [0], [0], [1], [0, 0, 1, 1], [], []>, precision = #tpu.contract_precision<fp32>} : vector<32x32xf32>, vector<32x16xf32>, vector<32x16xf32> -> vector<32x16xf32>
    %c4_i32_30 = arith.constant 4 : i32
    %45 = vector.broadcast %c4_i32_30 : i32 to vector<16x64xi32>
    %46 = arith.muli %12, %45 : vector<16x64xi32>
    %c1_i32 = arith.constant 1 : i32
    %47 = vector.broadcast %c1_i32 : i32 to vector<16x64xi32>
    %48 = arith.addi %46, %47 : vector<16x64xi32>
    %49 = arith.cmpi eq, %13, %48 : vector<16x64xi32>
    %50 = arith.extui %49 : vector<16x64xi1> to vector<16x64xi32>
    %51 = arith.sitofp %50 : vector<16x64xi32> to vector<16x64xf32>
    %cst_31 = arith.constant dense<0.000000e+00> : vector<32x64xf32>
    %52 = tpu.matmul %44, %51, %cst_31 {dimension_numbers = #tpu.dot_dimension_numbers<[1], [0], [0], [1], [0, 0, 1, 1], [], []>, precision = #tpu.contract_precision<fp32>} : vector<32x16xf32>, vector<16x64xf32>, vector<32x64xf32> -> vector<32x64xf32>
    %c0_32 = arith.constant 0 : index
    %c0_33 = arith.constant 0 : index
    %c0_34 = arith.constant 0 : index
    %c0_35 = arith.constant 0 : index
    %53 = vector.load %arg4[%c0_32, %c0_33, %c0_34, %c0_35] : memref<1x1x32x64xf32, #tpu.memory_space<vmem>>, vector<1x1x32x64xf32>
    %54 = vector.shape_cast %53 : vector<1x1x32x64xf32> to vector<32x64xf32>
    %55 = arith.addf %54, %52 : vector<32x64xf32>
    %c0_36 = arith.constant 0 : index
    %c0_37 = arith.constant 0 : index
    %c0_38 = arith.constant 0 : index
    %c0_39 = arith.constant 0 : index
    %56 = vector.load %arg4[%c0_36, %c0_37, %c0_38, %c0_39] : memref<1x1x32x64xf32, #tpu.memory_space<vmem>>, vector<1x1x32x64xf32>
    %57 = vector.shape_cast %56 : vector<1x1x32x64xf32> to vector<32x64xf32>
    %58 = vector.shape_cast %55 : vector<32x64xf32> to vector<1x1x32x64xf32>
    tpu.vector_store %arg4[%c0_36, %c0_37, %c0_38, %c0_39], %58 {strides = array<i32>} : memref<1x1x32x64xf32, #tpu.memory_space<vmem>>, vector<1x1x32x64xf32>,
    %c0_40 = arith.constant 0 : index
    %c2 = arith.constant 2 : index
    %c0_41 = arith.constant 0 : index
    %c0_42 = arith.constant 0 : index
    %59 = vector.load %arg3[%c0_40, %c2, %c0_41, %c0_42] : memref<1x16x8x16xf32, #tpu.memory_space<vmem>>, vector<1x1x8x16xf32>
    %60 = vector.shape_cast %59 : vector<1x1x8x16xf32> to vector<8x16xf32>
    %c0_43 = arith.constant 0 : index
    %c6 = arith.constant 6 : index
    %c0_44 = arith.constant 0 : index
    %c0_45 = arith.constant 0 : index
    %61 = vector.load %arg3[%c0_43, %c6, %c0_44, %c0_45] : memref<1x16x8x16xf32, #tpu.memory_space<vmem>>, vector<1x1x8x16xf32>
    %62 = vector.shape_cast %61 : vector<1x1x8x16xf32> to vector<8x16xf32>
    %c0_46 = arith.constant 0 : index
    %c10 = arith.constant 10 : index
    %c0_47 = arith.constant 0 : index
    %c0_48 = arith.constant 0 : index
    %63 = vector.load %arg3[%c0_46, %c10, %c0_47, %c0_48] : memref<1x16x8x16xf32, #tpu.memory_space<vmem>>, vector<1x1x8x16xf32>
    %64 = vector.shape_cast %63 : vector<1x1x8x16xf32> to vector<8x16xf32>
    %c0_49 = arith.constant 0 : index
    %c14 = arith.constant 14 : index
    %c0_50 = arith.constant 0 : index
    %c0_51 = arith.constant 0 : index
    %65 = vector.load %arg3[%c0_49, %c14, %c0_50, %c0_51] : memref<1x16x8x16xf32, #tpu.memory_space<vmem>>, vector<1x1x8x16xf32>
    %66 = vector.shape_cast %65 : vector<1x1x8x16xf32> to vector<8x16xf32>
    %67 = tpu.concatenate %60, %62, %64, %66 in 0 : vector<8x16xf32>, vector<8x16xf32>, vector<8x16xf32>, vector<8x16xf32> -> vector<32x16xf32>
    %cst_52 = arith.constant dense<0.000000e+00> : vector<32x16xf32>
    %68 = tpu.matmul %11, %67, %cst_52 {dimension_numbers = #tpu.dot_dimension_numbers<[1], [0], [0], [1], [0, 0, 1, 1], [], []>, precision = #tpu.contract_precision<fp32>} : vector<32x32xf32>, vector<32x16xf32>, vector<32x16xf32> -> vector<32x16xf32>
    %c4_i32_53 = arith.constant 4 : i32
    %69 = vector.broadcast %c4_i32_53 : i32 to vector<16x64xi32>
    %70 = arith.muli %12, %69 : vector<16x64xi32>
    %c2_i32_54 = arith.constant 2 : i32
    %71 = vector.broadcast %c2_i32_54 : i32 to vector<16x64xi32>
    %72 = arith.addi %70, %71 : vector<16x64xi32>
    %73 = arith.cmpi eq, %13, %72 : vector<16x64xi32>
    %74 = arith.extui %73 : vector<16x64xi1> to vector<16x64xi32>
    %75 = arith.sitofp %74 : vector<16x64xi32> to vector<16x64xf32>
    %cst_55 = arith.constant dense<0.000000e+00> : vector<32x64xf32>
    %76 = tpu.matmul %68, %75, %cst_55 {dimension_numbers = #tpu.dot_dimension_numbers<[1], [0], [0], [1], [0, 0, 1, 1], [], []>, precision = #tpu.contract_precision<fp32>} : vector<32x16xf32>, vector<16x64xf32>, vector<32x64xf32> -> vector<32x64xf32>
    %c0_56 = arith.constant 0 : index
    %c0_57 = arith.constant 0 : index
    %c0_58 = arith.constant 0 : index
    %c0_59 = arith.constant 0 : index
    %77 = vector.load %arg4[%c0_56, %c0_57, %c0_58, %c0_59] : memref<1x1x32x64xf32, #tpu.memory_space<vmem>>, vector<1x1x32x64xf32>
    %78 = vector.shape_cast %77 : vector<1x1x32x64xf32> to vector<32x64xf32>
    %79 = arith.addf %78, %76 : vector<32x64xf32>
    %c0_60 = arith.constant 0 : index
    %c0_61 = arith.constant 0 : index
    %c0_62 = arith.constant 0 : index
    %c0_63 = arith.constant 0 : index
    %80 = vector.load %arg4[%c0_60, %c0_61, %c0_62, %c0_63] : memref<1x1x32x64xf32, #tpu.memory_space<vmem>>, vector<1x1x32x64xf32>
    %81 = vector.shape_cast %80 : vector<1x1x32x64xf32> to vector<32x64xf32>
    %82 = vector.shape_cast %79 : vector<32x64xf32> to vector<1x1x32x64xf32>
    tpu.vector_store %arg4[%c0_60, %c0_61, %c0_62, %c0_63], %82 {strides = array<i32>} : memref<1x1x32x64xf32, #tpu.memory_space<vmem>>, vector<1x1x32x64xf32>,
    %c0_64 = arith.constant 0 : index
    %c3 = arith.constant 3 : index
    %c0_65 = arith.constant 0 : index
    %c0_66 = arith.constant 0 : index
    %83 = vector.load %arg3[%c0_64, %c3, %c0_65, %c0_66] : memref<1x16x8x16xf32, #tpu.memory_space<vmem>>, vector<1x1x8x16xf32>
    %84 = vector.shape_cast %83 : vector<1x1x8x16xf32> to vector<8x16xf32>
    %c0_67 = arith.constant 0 : index
    %c7 = arith.constant 7 : index
    %c0_68 = arith.constant 0 : index
    %c0_69 = arith.constant 0 : index
    %85 = vector.load %arg3[%c0_67, %c7, %c0_68, %c0_69] : memref<1x16x8x16xf32, #tpu.memory_space<vmem>>, vector<1x1x8x16xf32>
    %86 = vector.shape_cast %85 : vector<1x1x8x16xf32> to vector<8x16xf32>
    %c0_70 = arith.constant 0 : index
    %c11 = arith.constant 11 : index
    %c0_71 = arith.constant 0 : index
    %c0_72 = arith.constant 0 : index
    %87 = vector.load %arg3[%c0_70, %c11, %c0_71, %c0_72] : memref<1x16x8x16xf32, #tpu.memory_space<vmem>>, vector<1x1x8x16xf32>
    %88 = vector.shape_cast %87 : vector<1x1x8x16xf32> to vector<8x16xf32>
    %c0_73 = arith.constant 0 : index
    %c15 = arith.constant 15 : index
    %c0_74 = arith.constant 0 : index
    %c0_75 = arith.constant 0 : index
    %89 = vector.load %arg3[%c0_73, %c15, %c0_74, %c0_75] : memref<1x16x8x16xf32, #tpu.memory_space<vmem>>, vector<1x1x8x16xf32>
    %90 = vector.shape_cast %89 : vector<1x1x8x16xf32> to vector<8x16xf32>
    %91 = tpu.concatenate %84, %86, %88, %90 in 0 : vector<8x16xf32>, vector<8x16xf32>, vector<8x16xf32>, vector<8x16xf32> -> vector<32x16xf32>
    %cst_76 = arith.constant dense<0.000000e+00> : vector<32x16xf32>
    %92 = tpu.matmul %11, %91, %cst_76 {dimension_numbers = #tpu.dot_dimension_numbers<[1], [0], [0], [1], [0, 0, 1, 1], [], []>, precision = #tpu.contract_precision<fp32>} : vector<32x32xf32>, vector<32x16xf32>, vector<32x16xf32> -> vector<32x16xf32>
    %c4_i32_77 = arith.constant 4 : i32
    %93 = vector.broadcast %c4_i32_77 : i32 to vector<16x64xi32>
    %94 = arith.muli %12, %93 : vector<16x64xi32>
    %c3_i32_78 = arith.constant 3 : i32
    %95 = vector.broadcast %c3_i32_78 : i32 to vector<16x64xi32>
    %96 = arith.addi %94, %95 : vector<16x64xi32>
    %97 = arith.cmpi eq, %13, %96 : vector<16x64xi32>
    %98 = arith.extui %97 : vector<16x64xi1> to vector<16x64xi32>
    %99 = arith.sitofp %98 : vector<16x64xi32> to vector<16x64xf32>
    %cst_79 = arith.constant dense<0.000000e+00> : vector<32x64xf32>
    %100 = tpu.matmul %92, %99, %cst_79 {dimension_numbers = #tpu.dot_dimension_numbers<[1], [0], [0], [1], [0, 0, 1, 1], [], []>, precision = #tpu.contract_precision<fp32>} : vector<32x16xf32>, vector<16x64xf32>, vector<32x64xf32> -> vector<32x64xf32>
    %c0_80 = arith.constant 0 : index
    %c0_81 = arith.constant 0 : index
    %c0_82 = arith.constant 0 : index
    %c0_83 = arith.constant 0 : index
    %101 = vector.load %arg4[%c0_80, %c0_81, %c0_82, %c0_83] : memref<1x1x32x64xf32, #tpu.memory_space<vmem>>, vector<1x1x32x64xf32>
    %102 = vector.shape_cast %101 : vector<1x1x32x64xf32> to vector<32x64xf32>
    %103 = arith.addf %102, %100 : vector<32x64xf32>
    %c0_84 = arith.constant 0 : index
    %c0_85 = arith.constant 0 : index
    %c0_86 = arith.constant 0 : index
    %c0_87 = arith.constant 0 : index
    %104 = vector.load %arg4[%c0_84, %c0_85, %c0_86, %c0_87] : memref<1x1x32x64xf32, #tpu.memory_space<vmem>>, vector<1x1x32x64xf32>
    %105 = vector.shape_cast %104 : vector<1x1x32x64xf32> to vector<32x64xf32>
    %106 = vector.shape_cast %103 : vector<32x64xf32> to vector<1x1x32x64xf32>
    tpu.vector_store %arg4[%c0_84, %c0_85, %c0_86, %c0_87], %106 {strides = array<i32>} : memref<1x1x32x64xf32, #tpu.memory_space<vmem>>, vector<1x1x32x64xf32>,
    return
  }
  func.func @transform_0(%arg0: i32, %arg1: i32, %arg2: i32) -> (i32, i32, i32, i32) {
    %c0_i32 = arith.constant 0 : i32
    %c0_i32_0 = arith.constant 0 : i32
    return %arg0, %arg1, %arg2, %c0_i32 : i32, i32, i32, i32
  }
  func.func @transform_1(%arg0: i32, %arg1: i32, %arg2: i32) -> (i32, i32, i32, i32) {
    %c0_i32 = arith.constant 0 : i32
    %c0_i32_0 = arith.constant 0 : i32
    return %arg0, %arg1, %arg2, %c0_i32 : i32, i32, i32, i32
  }
}

</mosaic_0001>

<llo_original>
// kernel: tpu_custom_call.1
$region0: #{tpu_custom_call.1}
  #allocation0 [shape = 'u32[]', space=smem, size = 0x4, offset = 0x4, fixed_abs, tag = 'smem constant byte address 0x4 - core index']
  #allocation1 [shape = 'u32[144,128]{1,0:T(1,128)}', space=vmem, size = 0x12000, scoped, tag = 'internal scratch']
  %s0 = inlined_call_operand.vmem [shape: f32[2,32,16,16], index: 0, kind: input, shape index: {}]
  %s1 = inlined_call_operand.hbm [shape: f32[2,2,64,64], index: 1, kind: output, shape index: {}]
  %s2 = sld [smem:[#allocation0]]
  $region75: #{tpu_custom_call.1} parent=0
    _
  %s4 = ssub.s32 1, %s2
  %s5 = scalar_select 0, %s4, %s2
  $region1: #{tpu_custom_call.1} parent=0
    #allocation2 [shape = 'u8[131072]{0}', space=vmem, size = 0x20000, scoped, tag = 'input window, operand 0']
    #allocation3 [shape = 'u8[32768]{0}', space=vmem, size = 0x8000, scoped, tag = 'output window, operand 0']
    #allocation4 [shape = 's32[2]{0}', space=sflag, size = 0x8, scoped, tag = 'scoped memory for tpu_custom_call.1']
    %6 = vsyncpa [#allocation4], 0
    %s7 = scalar_lea.sflag [#allocation4], 1
    %8 = vsyncpa %s7, 0
    loop: start=0, step=1, limit=10
    $region2: #{tpu_custom_call.1} parent=1 // loop_pre_header
      _
    $region3: #{tpu_custom_call.1} parent=1 // loop_header
      %s10 = sphi 0, %s14
      %p11 = scmp.ge.s32.totalorder %s10, 10
      %s17 = sphi 0, %s36
      %s18 = sphi 0, %s32
      %s19 = sphi 0, %s28
      %s20 = sphi 0, %s17
      %s21 = sphi 0, %s18
      %s22 = sphi 0, %s19
      %s23 = sphi 0, %s20
      %s24 = sphi 0, %s21
      %s25 = sphi 0, %s22
      %s43 = sphi 0, %s45
      %s46 = sphi 0, %s43
      %s47 = sphi 0, %s46
      %s63 = sphi 0, %s47
      %s73 = sphi 0, %s75
      %s76 = sphi 0, %s73
      %s77 = sphi 0, %s76
      %s93 = sphi 0, %s77
    $region4: #{tpu_custom_call.1} parent=1 // loop_header_branch
      %13 = sbr.rel (%p11) target = $region8
    $region5: #{tpu_custom_call.1} parent=1 // loop_body
      %s15 = ssub.s32 %s10, 1
      %s16 = ssub.s32 %s10, 2
      %s26 = sadd.s32 1, %s19
      %p27 = scmp.ge.s32.totalorder %s26, 2
      %s28 = scalar_select %p27, 0, %s26
      %s29 = sadd.s32 1, %s18
      %s30 = scalar_select %p27, %s29, %s18
      %p31 = scmp.ge.s32.totalorder %s30, 2
      %s32 = scalar_select %p31, 0, %s30
      %s33 = sadd.s32 1, %s17
      %s34 = scalar_select %p31, %s33, %s17
      %p35 = scmp.ge.s32.totalorder %s34, 2
      %s36 = scalar_select %p35, 0, %s34
      %s37 = ssub.s32 %s17, %s36
      %s38 = ssub.s32 %s18, %s32
      %s39 = sor.u32 %s37, %s38
      %s40 = ssub.s32 %s19, %s28
      %s41 = sor.u32 %s39, %s40
      %p42 = scmp.eq.s32.totalorder %s41, 0
      %s44 = sadd.s32 %s43, 1
      %s45 = scalar_select %p42, %s43, %s44
      %p48 = pneg %p42
      %p49 = scmp.eq.s32.totalorder %s10, 7
      %p50 = por %p48, %p49
      %p51 = scmp.ne.s32.totalorder %s43, %s46
      %p52 = scmp.eq.s32.totalorder %s10, 0
      %p53 = por %p51, %p52
      %p54 = scmp.ne.s32.totalorder %s43, %s46
      %p55 = scmp.eq.s32.totalorder %s15, 7
      %p56 = por %p54, %p55
      %p57 = scmp.ne.s32.totalorder %s46, %s47
      %p58 = scmp.eq.s32.totalorder %s15, 0
      %p59 = por %p57, %p58
      %p60 = scmp.ne.s32.totalorder %s46, %s47
      %p61 = scmp.eq.s32.totalorder %s16, 7
      %p62 = por %p60, %p61
      %p64 = scmp.ne.s32.totalorder %s47, %s63
      %p65 = scmp.eq.s32.totalorder %s16, 0
      %p66 = por %p64, %p65
      %s67 = ssub.s32 %s17, %s36
      %s68 = ssub.s32 %s18, %s32
      %s69 = sor.u32 %s67, %s68
      %s70 = ssub.s32 %s19, %s28
      %s71 = sor.u32 %s69, %s70
      %p72 = scmp.eq.s32.totalorder %s71, 0
      %s74 = sadd.s32 %s73, 1
      %s75 = scalar_select %p72, %s73, %s74
      %p78 = pneg %p72
      %p79 = scmp.eq.s32.totalorder %s10, 7
      %p80 = por %p78, %p79
      %p81 = scmp.ne.s32.totalorder %s73, %s76
      %p82 = scmp.eq.s32.totalorder %s10, 0
      %p83 = por %p81, %p82
      %p84 = scmp.ne.s32.totalorder %s73, %s76
      %p85 = scmp.eq.s32.totalorder %s15, 7
      %p86 = por %p84, %p85
      %p87 = scmp.ne.s32.totalorder %s76, %s77
      %p88 = scmp.eq.s32.totalorder %s15, 0
      %p89 = por %p87, %p88
      %p90 = scmp.ne.s32.totalorder %s76, %s77
      %p91 = scmp.eq.s32.totalorder %s16, 7
      %p92 = por %p90, %p91
      %p94 = scmp.ne.s32.totalorder %s77, %s93
      %p95 = scmp.eq.s32.totalorder %s16, 0
      %p96 = por %p94, %p95
      %p97 = scmp.le.s32.totalorder 1, %s10
      %p98 = scmp.lt.s32.totalorder %s10, 9
      %p99 = pnand %p97, %p98
      %p100 = pneg %p99
      // Predicated region
      $region9: #{tpu_custom_call.1} parent=5 // pred_check
        _
      $region10: #{tpu_custom_call.1} parent=5 // pred_check_branch
        %102 = sbr.rel (%p99) target = $region12
      $region11: #{tpu_custom_call.1} parent=5 // pred_region
        %s103 = ssub.s32 %s10, 1
      $region12: #{tpu_custom_call.1} parent=5 // pred_fallthru
        _
      %p104 = scmp.lt.s32.totalorder %s10, 8
      // Predicated region
      $region13: #{tpu_custom_call.1} parent=5 // pred_check
        %p105 = pneg %p104
      $region14: #{tpu_custom_call.1} parent=5 // pred_check_branch
        %107 = sbr.rel (%p105) target = $region16
      $region15: #{tpu_custom_call.1} parent=5 // pred_region
        // Predicated region
        $region17: #{tpu_custom_call.1} parent=15 // pred_check
          %p108 = pneg %p53
        $region18: #{tpu_custom_call.1} parent=15 // pred_check_branch
          %110 = sbr.rel (%p108) target = $region20
        $region19: #{tpu_custom_call.1} parent=15 // pred_region
          %s111 = sand.u32 %s43, 1
          %s112 = sand.u32 %s43, 1
          %s113 = smul.addr %s112, 128
          %s114 = scalar_lea.vmem [#allocation2], %s113
          %s115 = smul.u32 16, %s18
          %s116 = smul.addr %s115, 2
          %s117 = sadd.s32 %s19, %s116
          %s118 = smul.addr %s17, 64
          %s119 = sadd.s32 %s117, %s118
          %s120 = smul.addr %s119, 8
          %s121 = scalar_lea.vmem %s0, %s120
          // Predicated region
          $region21: #{tpu_custom_call.1} parent=19 // pred_check
            _
          $region22: #{tpu_custom_call.1} parent=19 // pred_check_branch
            %123 = sbr.rel (0) target = $region24
          $region23: #{tpu_custom_call.1} parent=19 // pred_region
            // Predicated region
            $region25: #{tpu_custom_call.1} parent=23 // pred_check
              _
            $region26: #{tpu_custom_call.1} parent=23 // pred_check_branch
              %125 = sbr.rel (0) target = $region28
            $region27: #{tpu_custom_call.1} parent=23 // pred_region
              // Predicated region
              $region40: #{tpu_custom_call.1} parent=27 // pred_check
                _
              $region41: #{tpu_custom_call.1} parent=27 // pred_check_branch
                %171 = sbr.rel (0) target = $region43
              $region42: #{tpu_custom_call.1} parent=27 // pred_region
                loop: start=0, step=1, limit=1
                $region44: #{tpu_custom_call.1} parent=42 // loop_pre_header
                  _
                $region45: #{tpu_custom_call.1} parent=42 // loop_header
                  %s173 = sphi 0, %s177
                  %p174 = scmp.ge.s32.totalorder %s173, 1
                  %s178 = sphi %s121, %s121
                  %s179 = sphi %s114, %s114
                $region46: #{tpu_custom_call.1} parent=42 // loop_header_branch
                  %176 = sbr.rel (%p174) target = $region50
                $region47: #{tpu_custom_call.1} parent=42 // loop_body
                  %v180 = vld [vmem:[%s178] sm:$0xff]
                  %181 = vst [vmem:[%s179] sm:$0xff] %v180
                  %v182 = vld [vmem:[%s178 + $0x10] sm:$0xff]
                  %183 = vst [vmem:[%s179 + $0x8] sm:$0xff] %v182
                  %v184 = vld [vmem:[%s178 + $0x20] sm:$0xff]
                  %185 = vst [vmem:[%s179 + $0x10] sm:$0xff] %v184
                  %v186 = vld [vmem:[%s178 + $0x30] sm:$0xff]
                  %187 = vst [vmem:[%s179 + $0x18] sm:$0xff] %v186
                  %v188 = vld [vmem:[%s178 + $0x40] sm:$0xff]
                  %189 = vst [vmem:[%s179 + $0x20] sm:$0xff] %v188
                  %v190 = vld [vmem:[%s178 + $0x50] sm:$0xff]
                  %191 = vst [vmem:[%s179 + $0x28] sm:$0xff] %v190
                  %v192 = vld [vmem:[%s178 + $0x60] sm:$0xff]
                  %193 = vst [vmem:[%s179 + $0x30] sm:$0xff] %v192
                  %v194 = vld [vmem:[%s178 + $0x70] sm:$0xff]
                  %195 = vst [vmem:[%s179 + $0x38] sm:$0xff] %v194
                  %v196 = vld [vmem:[%s178 + $0x80] sm:$0xff]
                  %197 = vst [vmem:[%s179 + $0x40] sm:$0xff] %v196
                  %v198 = vld [vmem:[%s178 + $0x90] sm:$0xff]
                  %199 = vst [vmem:[%s179 + $0x48] sm:$0xff] %v198
                  %v200 = vld [vmem:[%s178 + $0xa0] sm:$0xff]
                  %201 = vst [vmem:[%s179 + $0x50] sm:$0xff] %v200
                  %v202 = vld [vmem:[%s178 + $0xb0] sm:$0xff]
                  %203 = vst [vmem:[%s179 + $0x58] sm:$0xff] %v202
                  %v204 = vld [vmem:[%s178 + $0xc0] sm:$0xff]
                  %205 = vst [vmem:[%s179 + $0x60] sm:$0xff] %v204
                  %v206 = vld [vmem:[%s178 + $0xd0] sm:$0xff]
                  %207 = vst [vmem:[%s179 + $0x68] sm:$0xff] %v206
                  %v208 = vld [vmem:[%s178 + $0xe0] sm:$0xff]
                  %209 = vst [vmem:[%s179 + $0x70] sm:$0xff] %v208
                  %v210 = vld [vmem:[%s178 + $0xf0] sm:$0xff]
                  %211 = vst [vmem:[%s179 + $0x78] sm:$0xff] %v210
                $region48: #{tpu_custom_call.1} parent=42 // loop_footer
                  %s177 = sadd.s32 1, %s173
                $region49: #{tpu_custom_call.1} parent=42 // loop_footer_branch
                  %172 = sbr.rel target = $region45
                $region50: #{tpu_custom_call.1} parent=42 // loop_exit
                  _
              $region43: #{tpu_custom_call.1} parent=27 // pred_fallthru
                _
              // Predicated region
              $region51: #{tpu_custom_call.1} parent=27 // pred_check
                _
              $region52: #{tpu_custom_call.1} parent=27 // pred_check_branch
                %213 = sbr.rel target = $region54
              $region53: #{tpu_custom_call.1} parent=27 // pred_region
                _
              $region54: #{tpu_custom_call.1} parent=27 // pred_fallthru
                _
            $region28: #{tpu_custom_call.1} parent=23 // pred_fallthru
              _
            // Predicated region
            $region29: #{tpu_custom_call.1} parent=23 // pred_check
              _
            $region30: #{tpu_custom_call.1} parent=23 // pred_check_branch
              %127 = sbr.rel target = $region32
            $region31: #{tpu_custom_call.1} parent=23 // pred_region
              %s129 = ssub.s32 256, 1
              loop: start=0, step=1, limit=1
              $region33: #{tpu_custom_call.1} parent=31 // loop_pre_header
                _
              $region34: #{tpu_custom_call.1} parent=31 // loop_header
                %s131 = sphi 0, %s135
                %p132 = scmp.ge.s32.totalorder %s131, 1
                %s136 = sphi %s121, %s121
                %s137 = sphi %s114, %s114
              $region35: #{tpu_custom_call.1} parent=31 // loop_header_branch
                %134 = sbr.rel (%p132) target = $region39
              $region36: #{tpu_custom_call.1} parent=31 // loop_body
                %v138 = vld [vmem:[%s136] sm:%s129]
                %139 = vst [vmem:[%s137] sm:%s129] %v138
                %v140 = vld [vmem:[%s136 + $0x10] sm:%s129]
                %141 = vst [vmem:[%s137 + $0x8] sm:%s129] %v140
                %v142 = vld [vmem:[%s136 + $0x20] sm:%s129]
                %143 = vst [vmem:[%s137 + $0x10] sm:%s129] %v142
                %v144 = vld [vmem:[%s136 + $0x30] sm:%s129]
                %145 = vst [vmem:[%s137 + $0x18] sm:%s129] %v144
                %v146 = vld [vmem:[%s136 + $0x40] sm:%s129]
                %147 = vst [vmem:[%s137 + $0x20] sm:%s129] %v146
                %v148 = vld [vmem:[%s136 + $0x50] sm:%s129]
                %149 = vst [vmem:[%s137 + $0x28] sm:%s129] %v148
                %v150 = vld [vmem:[%s136 + $0x60] sm:%s129]
                %151 = vst [vmem:[%s137 + $0x30] sm:%s129] %v150
                %v152 = vld [vmem:[%s136 + $0x70] sm:%s129]
                %153 = vst [vmem:[%s137 + $0x38] sm:%s129] %v152
                %v154 = vld [vmem:[%s136 + $0x80] sm:%s129]
                %155 = vst [vmem:[%s137 + $0x40] sm:%s129] %v154
                %v156 = vld [vmem:[%s136 + $0x90] sm:%s129]
                %157 = vst [vmem:[%s137 + $0x48] sm:%s129] %v156
                %v158 = vld [vmem:[%s136 + $0xa0] sm:%s129]
                %159 = vst [vmem:[%s137 + $0x50] sm:%s129] %v158
                %v160 = vld [vmem:[%s136 + $0xb0] sm:%s129]
                %161 = vst [vmem:[%s137 + $0x58] sm:%s129] %v160
                %v162 = vld [vmem:[%s136 + $0xc0] sm:%s129]
                %163 = vst [vmem:[%s137 + $0x60] sm:%s129] %v162
                %v164 = vld [vmem:[%s136 + $0xd0] sm:%s129]
                %165 = vst [vmem:[%s137 + $0x68] sm:%s129] %v164
                %v166 = vld [vmem:[%s136 + $0xe0] sm:%s129]
                %167 = vst [vmem:[%s137 + $0x70] sm:%s129] %v166
                %v168 = vld [vmem:[%s136 + $0xf0] sm:%s129]
                %169 = vst [vmem:[%s137 + $0x78] sm:%s129] %v168
              $region37: #{tpu_custom_call.1} parent=31 // loop_footer
                %s135 = sadd.s32 1, %s131
              $region38: #{tpu_custom_call.1} parent=31 // loop_footer_branch
                %130 = sbr.rel target = $region34
              $region39: #{tpu_custom_call.1} parent=31 // loop_exit
                _
            $region32: #{tpu_custom_call.1} parent=23 // pred_fallthru
              _
          $region24: #{tpu_custom_call.1} parent=19 // pred_fallthru
            _
          %214 = vnop
        $region20: #{tpu_custom_call.1} parent=15 // pred_fallthru
          _
      $region16: #{tpu_custom_call.1} parent=5 // pred_fallthru
        _
      %p215 = scmp.le.s32.totalorder 1, %s10
      %p216 = scmp.lt.s32.totalorder %s10, 9
      %p217 = pnand %p215, %p216
      %p218 = pneg %p217
      // Predicated region
      $region55: #{tpu_custom_call.1} parent=5 // pred_check
        _
      $region56: #{tpu_custom_call.1} parent=5 // pred_check_branch
        %220 = sbr.rel (%p217) target = $region58
      $region57: #{tpu_custom_call.1} parent=5 // pred_region
        %s221 = ssub.s32 %s10, 1
        %s222 = sand.u32 %s46, 1
        %s223 = sand.u32 %s46, 1
        %s224 = smul.addr %s223, 128
        %s225 = scalar_lea.vmem [#allocation2], %s224
        // Predicated region
        $region59: #{tpu_custom_call.1} parent=57 // pred_check
          %p226 = pneg %p59
        $region60: #{tpu_custom_call.1} parent=57 // pred_check_branch
          %228 = sbr.rel (%p226) target = $region62
        $region61: #{tpu_custom_call.1} parent=57 // pred_region
          _
        $region62: #{tpu_custom_call.1} parent=57 // pred_fallthru
          _
        %s229 = sand.u32 %s46, 1
        %s230 = sand.u32 %s46, 1
        %s231 = smul.addr %s230, 128
        %s232 = scalar_lea.vmem [#allocation2], %s231
        %p233 = pneg %p59
        %p234 = pneg %p56
        %p235 = pneg %p89
        %p236 = pneg %p86
        %s237 = sand.u32 %s76, 1
        %s238 = scalar_lea.sflag [#allocation4], %s237
        %s239 = sand.u32 %s76, 1
        %s240 = smul.addr %s239, 32
        %s241 = scalar_lea.vmem [#allocation3], %s240
        %s242 = smul.u32 16, %s21
        %s243 = smul.u32 4, %s22
        %v244 = vlaneseq
        %v245 = vshrl.u32 %v244, 7
        %v246 = vadd.s32 %v245, 8
        %v247 = vadd.s32 %v245, 16
        %v248 = vadd.s32 %v245, 24
        %v249 = vlaneseq
        %v250 = vand.u32 %v249, 127
        %v251 = vshra.s32 %v245, 2
        %v252 = vshra.s32 %v246, 2
        %v253 = vshra.s32 %v247, 2
        %v254 = vshra.s32 %v248, 2
        %v255 = vand.u32 %v245, 3
        %v256 = vand.u32 %v246, 3
        %v257 = vand.u32 %v247, 3
        %v258 = vand.u32 %v248, 3
        %v259 = vmul.u32 %v255, 8
        %v260 = vmul.u32 %v256, 8
        %v261 = vmul.u32 %v257, 8
        %v262 = vmul.u32 %v258, 8
        %v263 = vadd.s32 %v259, %v251
        %v264 = vadd.s32 %v260, %v252
        %v265 = vadd.s32 %v261, %v253
        %v266 = vadd.s32 %v262, %v254
        %vm267 = vcmp.eq.s32.totalorder %v250, %v263
        %vm268 = vcmp.eq.s32.totalorder %v250, %v264
        %vm269 = vcmp.eq.s32.totalorder %v250, %v265
        %vm270 = vcmp.eq.s32.totalorder %v250, %v266
        %v271 = vsel %vm267, 1, 0
        %v272 = vsel %vm268, 1, 0
        %v273 = vsel %vm269, 1, 0
        %v274 = vsel %vm270, 1, 0
        %v275 = vcvt.s32.f32 %v271
        %v276 = vcvt.s32.f32 %v272
        %v277 = vcvt.s32.f32 %v273
        %v278 = vcvt.s32.f32 %v274
        %v279 = vld [vmem:[%s225] sm:$0xff]
        %s280 = scalar_lea.vmem %s225, 32 [#allocation2]
        %v281 = vld [vmem:[%s280] sm:$0xff]
        %s282 = scalar_lea.vmem %s225, 64 [#allocation2]
        %v283 = vld [vmem:[%s282] sm:$0xff]
        %s284 = scalar_lea.vmem %s225, 96 [#allocation2]
        %v285 = vld [vmem:[%s284] sm:$0xff]
        %vm286 = vcmask 261120
        %v288 = vsel %vm286, %v275, 0
        %v291 = vsel %vm286, %v276, 0
        %v294 = vsel %vm286, %v277, 0
        %v297 = vsel %vm286, %v278, 0
        %299 = vmatprep.subr.mxu0 0.0
        %300 = vmatpush1.msra.mxu0 0.0
        %301 = vmatprep.subr.mxu0 0.0
        %302 = vmatpush1.msra.mxu0 0.0
        %303 = vmatprep.subr.mxu0 0.0
        %304 = vmatpush1.msra.mxu0 0.0
        %305 = vmatprep.subr.mxu0 0.0
        %306 = vmatpush1.msra.mxu0 0.0
        %307 = vmatprep.subr.mxu0 0.0
        %308 = vmatpush1.msra.mxu0 0.0
        %309 = vmatprep.subr.mxu0 0.0
        %310 = vmatpush1.msra.mxu0 0.0
        %311 = vmatprep.subr.mxu0 0.0
        %312 = vmatpush1.msra.mxu0 0.0
        %313 = vmatprep.subr.mxu0 0.0
        %314 = vmatpush1.msra.mxu0 0.0
        %315 = vmatprep.subr.mxu0 0.0
        %316 = vmatpush1.msra.mxu0 0.0
        %317 = vmatprep.subr.mxu0 0.0
        %318 = vmatpush1.msra.mxu0 0.0
        %319 = vmatprep.subr.mxu0 0.0
        %320 = vmatpush1.msra.mxu0 0.0
        %321 = vmatprep.subr.mxu0 0.0
        %322 = vmatpush1.msra.mxu0 0.0
        %323 = vmatprep.subr.mxu0 0.0
        %v324 = vand.u32 %v285, 4294901760
        %325 = vmatpush1.msra.mxu0 %v324
        %326 = vmatprep.subr.mxu0 0.0
        %v327 = vand.u32 %v283, 4294901760
        %328 = vmatpush1.msra.mxu0 %v327
        %329 = vmatprep.subr.mxu0 0.0
        %v330 = vand.u32 %v281, 4294901760
        %331 = vmatpush1.msra.mxu0 %v330
        %332 = vmatprep.subr.mxu0 0.0
        %v333 = vand.u32 %v279, 4294901760
        %334 = vmatpush1.msra.mxu0 %v333
        %335 = vmatprep.subr.mxu0 0.0
        %336 = vmatpush2.msra.mxu0 0.0
        %337 = vmatprep.subr.mxu0 0.0
        %338 = vmatpush2.msra.mxu0 0.0
        %339 = vmatprep.subr.mxu0 0.0
        %340 = vmatpush2.msra.mxu0 0.0
        %341 = vmatprep.subr.mxu0 0.0
        %342 = vmatpush2.msra.mxu0 0.0
        %343 = vmatprep.subr.mxu0 0.0
        %344 = vmatpush2.msra.mxu0 0.0
        %345 = vmatprep.subr.mxu0 0.0
        %346 = vmatpush2.msra.mxu0 0.0
        %347 = vmatprep.subr.mxu0 0.0
        %348 = vmatpush2.msra.mxu0 0.0
        %349 = vmatprep.subr.mxu0 0.0
        %350 = vmatpush2.msra.mxu0 0.0
        %351 = vmatprep.subr.mxu0 0.0
        %352 = vmatpush2.msra.mxu0 0.0
        %353 = vmatprep.subr.mxu0 0.0
        %354 = vmatpush2.msra.mxu0 0.0
        %355 = vmatprep.subr.mxu0 0.0
        %356 = vmatpush2.msra.mxu0 0.0
        %357 = vmatprep.subr.mxu0 0.0
        %358 = vmatpush2.msra.mxu0 0.0
        %359 = vmatprep.subr.mxu0 0.0
        %360 = vmatpush2.msra.mxu0 0.0
        %361 = vmatprep.subr.mxu0 0.0
        %362 = vmatpush2.msra.mxu0 0.0
        %363 = vmatprep.subr.mxu0 0.0
        %364 = vmatpush2.msra.mxu0 0.0
        %365 = vmatprep.subr.mxu0 0.0
        %366 = vmatpush2.msra.mxu0 0.0
        %367 = vmatprep.mubr.f32.mxu0 0.0
        %v368 = vand.u32 %v288, 4294901760
        %v369 = vsub.f32 %v288, %v368
        %v370 = vand.u32 %v369, 4294901760
        %v371 = vsub.f32 %v369, %v370
        %v372 = vand.u32 %v371, 4294901760
        %373 = vmatmul.mubr.f32.gmra.mxu0 %v372
        %v374 = vpop.f32.mrf.mxu0
        %v375 = vadd.f32 0.0, %v374
        %v376 = vpop.f32.mrf.mxu0
        %377 = vmatprep.mubr.f32.mxu0 0.0
        %v378 = vand.u32 %v291, 4294901760
        %v379 = vsub.f32 %v291, %v378
        %v380 = vand.u32 %v379, 4294901760
        %v381 = vsub.f32 %v379, %v380
        %v382 = vand.u32 %v381, 4294901760
        %383 = vmatmul.mubr.f32.gmra.mxu0 %v382
        %v384 = vpop.f32.mrf.mxu0
        %v385 = vadd.f32 0.0, %v384
        %v386 = vpop.f32.mrf.mxu0
        %387 = vmatprep.mubr.f32.mxu0 0.0
        %v388 = vand.u32 %v294, 4294901760
        %v389 = vsub.f32 %v294, %v388
        %v390 = vand.u32 %v389, 4294901760
        %v391 = vsub.f32 %v389, %v390
        %v392 = vand.u32 %v391, 4294901760
        %393 = vmatmul.mubr.f32.gmra.mxu0 %v392
        %v394 = vpop.f32.mrf.mxu0
        %v395 = vadd.f32 0.0, %v394
        %v396 = vpop.f32.mrf.mxu0
        %397 = vmatprep.mubr.f32.mxu0 0.0
        %v398 = vand.u32 %v297, 4294901760
        %v399 = vsub.f32 %v297, %v398
        %v400 = vand.u32 %v399, 4294901760
        %v401 = vsub.f32 %v399, %v400
        %v402 = vand.u32 %v401, 4294901760
        %403 = vmatmul.mubr.f32.gmra.mxu0 %v402
        %v404 = vpop.f32.mrf.mxu0
        %v405 = vadd.f32 0.0, %v404
        %v406 = vpop.f32.mrf.mxu0
        %407 = vdwg.mxu0
        %408 = vmatprep.subr.mxu0 0.0
        %409 = vmatpush1.msra.mxu0 0.0
        %410 = vmatprep.subr.mxu0 0.0
        %411 = vmatpush1.msra.mxu0 0.0
        %412 = vmatprep.subr.mxu0 0.0
        %413 = vmatpush1.msra.mxu0 0.0
        %414 = vmatprep.subr.mxu0 0.0
        %415 = vmatpush1.msra.mxu0 0.0
        %416 = vmatprep.subr.mxu0 0.0
        %417 = vmatpush1.msra.mxu0 0.0
        %418 = vmatprep.subr.mxu0 0.0
        %419 = vmatpush1.msra.mxu0 0.0
        %420 = vmatprep.subr.mxu0 0.0
        %421 = vmatpush1.msra.mxu0 0.0
        %422 = vmatprep.subr.mxu0 0.0
        %423 = vmatpush1.msra.mxu0 0.0
        %424 = vmatprep.subr.mxu0 0.0
        %425 = vmatpush1.msra.mxu0 0.0
        %426 = vmatprep.subr.mxu0 0.0
        %427 = vmatpush1.msra.mxu0 0.0
        %428 = vmatprep.subr.mxu0 0.0
        %429 = vmatpush1.msra.mxu0 0.0
        %430 = vmatprep.subr.mxu0 0.0
        %431 = vmatpush1.msra.mxu0 0.0
        %432 = vmatprep.subr.mxu0 0.0
        %v433 = vand.u32 %v285, 4294901760
        %v434 = vsub.f32 %v285, %v433
        %v435 = vand.u32 %v434, 4294901760
        %v436 = vsub.f32 %v434, %v435
        %v437 = vand.u32 %v436, 4294901760
        %438 = vmatpush1.msra.mxu0 %v437
        %439 = vmatprep.subr.mxu0 0.0
        %v440 = vand.u32 %v283, 4294901760
        %v441 = vsub.f32 %v283, %v440
        %v442 = vand.u32 %v441, 4294901760
        %v443 = vsub.f32 %v441, %v442
        %v444 = vand.u32 %v443, 4294901760
        %445 = vmatpush1.msra.mxu0 %v444
        %446 = vmatprep.subr.mxu0 0.0
        %v447 = vand.u32 %v281, 4294901760
        %v448 = vsub.f32 %v281, %v447
        %v449 = vand.u32 %v448, 4294901760
        %v450 = vsub.f32 %v448, %v449
        %v451 = vand.u32 %v450, 4294901760
        %452 = vmatpush1.msra.mxu0 %v451
        %453 = vmatprep.subr.mxu0 0.0
        %v454 = vand.u32 %v279, 4294901760
        %v455 = vsub.f32 %v279, %v454
        %v456 = vand.u32 %v455, 4294901760
        %v457 = vsub.f32 %v455, %v456
        %v458 = vand.u32 %v457, 4294901760
        %459 = vmatpush1.msra.mxu0 %v458
        %460 = vmatprep.subr.mxu0 0.0
        %461 = vmatpush2.msra.mxu0 0.0
        %462 = vmatprep.subr.mxu0 0.0
        %463 = vmatpush2.msra.mxu0 0.0
        %464 = vmatprep.subr.mxu0 0.0
        %465 = vmatpush2.msra.mxu0 0.0
        %466 = vmatprep.subr.mxu0 0.0
        %467 = vmatpush2.msra.mxu0 0.0
        %468 = vmatprep.subr.mxu0 0.0
        %469 = vmatpush2.msra.mxu0 0.0
        %470 = vmatprep.subr.mxu0 0.0
        %471 = vmatpush2.msra.mxu0 0.0
        %472 = vmatprep.subr.mxu0 0.0
        %473 = vmatpush2.msra.mxu0 0.0
        %474 = vmatprep.subr.mxu0 0.0
        %475 = vmatpush2.msra.mxu0 0.0
        %476 = vmatprep.subr.mxu0 0.0
        %477 = vmatpush2.msra.mxu0 0.0
        %478 = vmatprep.subr.mxu0 0.0
        %479 = vmatpush2.msra.mxu0 0.0
        %480 = vmatprep.subr.mxu0 0.0
        %481 = vmatpush2.msra.mxu0 0.0
        %482 = vmatprep.subr.mxu0 0.0
        %483 = vmatpush2.msra.mxu0 0.0
        %484 = vmatprep.subr.mxu0 0.0
        %485 = vmatpush2.msra.mxu0 0.0
        %486 = vmatprep.subr.mxu0 0.0
        %487 = vmatpush2.msra.mxu0 0.0
        %488 = vmatprep.subr.mxu0 0.0
        %489 = vmatpush2.msra.mxu0 0.0
        %490 = vmatprep.subr.mxu0 0.0
        %491 = vmatpush2.msra.mxu0 0.0
        %492 = vmatprep.mubr.f32.mxu0 0.0
        %v493 = vand.u32 %v288, 4294901760
        %494 = vmatmul.mubr.f32.gmra.mxu0 %v493
        %v495 = vpop.f32.mrf.mxu0
        %v496 = vadd.f32 %v375, %v495
        %v497 = vpop.f32.mrf.mxu0
        %498 = vmatprep.mubr.f32.mxu0 0.0
        %v499 = vand.u32 %v291, 4294901760
        %500 = vmatmul.mubr.f32.gmra.mxu0 %v499
        %v501 = vpop.f32.mrf.mxu0
        %v502 = vadd.f32 %v385, %v501
        %v503 = vpop.f32.mrf.mxu0
        %504 = vmatprep.mubr.f32.mxu0 0.0
        %v505 = vand.u32 %v294, 4294901760
        %506 = vmatmul.mubr.f32.gmra.mxu0 %v505
        %v507 = vpop.f32.mrf.mxu0
        %v508 = vadd.f32 %v395, %v507
        %v509 = vpop.f32.mrf.mxu0
        %510 = vmatprep.mubr.f32.mxu0 0.0
        %v511 = vand.u32 %v297, 4294901760
        %512 = vmatmul.mubr.f32.gmra.mxu0 %v511
        %v513 = vpop.f32.mrf.mxu0
        %v514 = vadd.f32 %v405, %v513
        %v515 = vpop.f32.mrf.mxu0
        %516 = vdwg.mxu0
        %517 = vmatprep.subr.mxu0 0.0
        %518 = vmatpush1.msra.mxu0 0.0
        %519 = vmatprep.subr.mxu0 0.0
        %520 = vmatpush1.msra.mxu0 0.0
        %521 = vmatprep.subr.mxu0 0.0
        %522 = vmatpush1.msra.mxu0 0.0
        %523 = vmatprep.subr.mxu0 0.0
        %524 = vmatpush1.msra.mxu0 0.0
        %525 = vmatprep.subr.mxu0 0.0
        %526 = vmatpush1.msra.mxu0 0.0
        %527 = vmatprep.subr.mxu0 0.0
        %528 = vmatpush1.msra.mxu0 0.0
        %529 = vmatprep.subr.mxu0 0.0
        %530 = vmatpush1.msra.mxu0 0.0
        %531 = vmatprep.subr.mxu0 0.0
        %532 = vmatpush1.msra.mxu0 0.0
        %533 = vmatprep.subr.mxu0 0.0
        %534 = vmatpush1.msra.mxu0 0.0
        %535 = vmatprep.subr.mxu0 0.0
        %536 = vmatpush1.msra.mxu0 0.0
        %537 = vmatprep.subr.mxu0 0.0
        %538 = vmatpush1.msra.mxu0 0.0
        %539 = vmatprep.subr.mxu0 0.0
        %540 = vmatpush1.msra.mxu0 0.0
        %541 = vmatprep.subr.mxu0 0.0
        %v542 = vand.u32 %v285, 4294901760
        %v543 = vsub.f32 %v285, %v542
        %544 = vmatpush1.msra.mxu0 %v543
        %545 = vmatprep.subr.mxu0 0.0
        %v546 = vand.u32 %v283, 4294901760
        %v547 = vsub.f32 %v283, %v546
        %548 = vmatpush1.msra.mxu0 %v547
        %549 = vmatprep.subr.mxu0 0.0
        %v550 = vand.u32 %v281, 4294901760
        %v551 = vsub.f32 %v281, %v550
        %552 = vmatpush1.msra.mxu0 %v551
        %553 = vmatprep.subr.mxu0 0.0
        %v554 = vand.u32 %v279, 4294901760
        %v555 = vsub.f32 %v279, %v554
        %556 = vmatpush1.msra.mxu0 %v555
        %557 = vmatprep.subr.mxu0 0.0
        %558 = vmatpush2.msra.mxu0 0.0
        %559 = vmatprep.subr.mxu0 0.0
        %560 = vmatpush2.msra.mxu0 0.0
        %561 = vmatprep.subr.mxu0 0.0
        %562 = vmatpush2.msra.mxu0 0.0
        %563 = vmatprep.subr.mxu0 0.0
        %564 = vmatpush2.msra.mxu0 0.0
        %565 = vmatprep.subr.mxu0 0.0
        %566 = vmatpush2.msra.mxu0 0.0
        %567 = vmatprep.subr.mxu0 0.0
        %568 = vmatpush2.msra.mxu0 0.0
        %569 = vmatprep.subr.mxu0 0.0
        %570 = vmatpush2.msra.mxu0 0.0
        %571 = vmatprep.subr.mxu0 0.0
        %572 = vmatpush2.msra.mxu0 0.0
        %573 = vmatprep.subr.mxu0 0.0
        %574 = vmatpush2.msra.mxu0 0.0
        %575 = vmatprep.subr.mxu0 0.0
        %576 = vmatpush2.msra.mxu0 0.0
        %577 = vmatprep.subr.mxu0 0.0
        %578 = vmatpush2.msra.mxu0 0.0
        %579 = vmatprep.subr.mxu0 0.0
        %580 = vmatpush2.msra.mxu0 0.0
        %581 = vmatprep.subr.mxu0 0.0
        %582 = vmatpush2.msra.mxu0 0.0
        %583 = vmatprep.subr.mxu0 0.0
        %584 = vmatpush2.msra.mxu0 0.0
        %585 = vmatprep.subr.mxu0 0.0
        %586 = vmatpush2.msra.mxu0 0.0
        %587 = vmatprep.subr.mxu0 0.0
        %588 = vmatpush2.msra.mxu0 0.0
        %589 = vmatprep.mubr.f32.mxu0 0.0
        %v590 = vand.u32 %v288, 4294901760
        %v591 = vsub.f32 %v288, %v590
        %592 = vmatmul.mubr.f32.gmra.mxu0 %v591
        %v593 = vpop.f32.mrf.mxu0
        %v594 = vadd.f32 %v496, %v593
        %v595 = vpop.f32.mrf.mxu0
        %596 = vmatprep.mubr.f32.mxu0 0.0
        %v597 = vand.u32 %v291, 4294901760
        %v598 = vsub.f32 %v291, %v597
        %599 = vmatmul.mubr.f32.gmra.mxu0 %v598
        %v600 = vpop.f32.mrf.mxu0
        %v601 = vadd.f32 %v502, %v600
        %v602 = vpop.f32.mrf.mxu0
        %603 = vmatprep.mubr.f32.mxu0 0.0
        %v604 = vand.u32 %v294, 4294901760
        %v605 = vsub.f32 %v294, %v604
        %606 = vmatmul.mubr.f32.gmra.mxu0 %v605
        %v607 = vpop.f32.mrf.mxu0
        %v608 = vadd.f32 %v508, %v607
        %v609 = vpop.f32.mrf.mxu0
        %610 = vmatprep.mubr.f32.mxu0 0.0
        %v611 = vand.u32 %v297, 4294901760
        %v612 = vsub.f32 %v297, %v611
        %613 = vmatmul.mubr.f32.gmra.mxu0 %v612
        %v614 = vpop.f32.mrf.mxu0
        %v615 = vadd.f32 %v514, %v614
        %v616 = vpop.f32.mrf.mxu0
        %617 = vdwg.mxu0
        %618 = vmatprep.subr.mxu0 0.0
        %619 = vmatpush1.msra.mxu0 0.0
        %620 = vmatprep.subr.mxu0 0.0
        %621 = vmatpush1.msra.mxu0 0.0
        %622 = vmatprep.subr.mxu0 0.0
        %623 = vmatpush1.msra.mxu0 0.0
        %624 = vmatprep.subr.mxu0 0.0
        %625 = vmatpush1.msra.mxu0 0.0
        %626 = vmatprep.subr.mxu0 0.0
        %627 = vmatpush1.msra.mxu0 0.0
        %628 = vmatprep.subr.mxu0 0.0
        %629 = vmatpush1.msra.mxu0 0.0
        %630 = vmatprep.subr.mxu0 0.0
        %631 = vmatpush1.msra.mxu0 0.0
        %632 = vmatprep.subr.mxu0 0.0
        %633 = vmatpush1.msra.mxu0 0.0
        %634 = vmatprep.subr.mxu0 0.0
        %635 = vmatpush1.msra.mxu0 0.0
        %636 = vmatprep.subr.mxu0 0.0
        %637 = vmatpush1.msra.mxu0 0.0
        %638 = vmatprep.subr.mxu0 0.0
        %639 = vmatpush1.msra.mxu0 0.0
        %640 = vmatprep.subr.mxu0 0.0
        %641 = vmatpush1.msra.mxu0 0.0
        %642 = vmatprep.subr.mxu0 0.0
        %v643 = vand.u32 %v285, 4294901760
        %644 = vmatpush1.msra.mxu0 %v643
        %645 = vmatprep.subr.mxu0 0.0
        %v646 = vand.u32 %v283, 4294901760
        %647 = vmatpush1.msra.mxu0 %v646
        %648 = vmatprep.subr.mxu0 0.0
        %v649 = vand.u32 %v281, 4294901760
        %650 = vmatpush1.msra.mxu0 %v649
        %651 = vmatprep.subr.mxu0 0.0
        %v652 = vand.u32 %v279, 4294901760
        %653 = vmatpush1.msra.mxu0 %v652
        %654 = vmatprep.subr.mxu0 0.0
        %655 = vmatpush2.msra.mxu0 0.0
        %656 = vmatprep.subr.mxu0 0.0
        %657 = vmatpush2.msra.mxu0 0.0
        %658 = vmatprep.subr.mxu0 0.0
        %659 = vmatpush2.msra.mxu0 0.0
        %660 = vmatprep.subr.mxu0 0.0
        %661 = vmatpush2.msra.mxu0 0.0
        %662 = vmatprep.subr.mxu0 0.0
        %663 = vmatpush2.msra.mxu0 0.0
        %664 = vmatprep.subr.mxu0 0.0
        %665 = vmatpush2.msra.mxu0 0.0
        %666 = vmatprep.subr.mxu0 0.0
        %667 = vmatpush2.msra.mxu0 0.0
        %668 = vmatprep.subr.mxu0 0.0
        %669 = vmatpush2.msra.mxu0 0.0
        %670 = vmatprep.subr.mxu0 0.0
        %671 = vmatpush2.msra.mxu0 0.0
        %672 = vmatprep.subr.mxu0 0.0
        %673 = vmatpush2.msra.mxu0 0.0
        %674 = vmatprep.subr.mxu0 0.0
        %675 = vmatpush2.msra.mxu0 0.0
        %676 = vmatprep.subr.mxu0 0.0
        %677 = vmatpush2.msra.mxu0 0.0
        %678 = vmatprep.subr.mxu0 0.0
        %679 = vmatpush2.msra.mxu0 0.0
        %680 = vmatprep.subr.mxu0 0.0
        %681 = vmatpush2.msra.mxu0 0.0
        %682 = vmatprep.subr.mxu0 0.0
        %683 = vmatpush2.msra.mxu0 0.0
        %684 = vmatprep.subr.mxu0 0.0
        %685 = vmatpush2.msra.mxu0 0.0
        %686 = vmatprep.mubr.f32.mxu0 0.0
        %v687 = vand.u32 %v288, 4294901760
        %v688 = vsub.f32 %v288, %v687
        %v689 = vand.u32 %v688, 4294901760
        %690 = vmatmul.mubr.f32.gmra.mxu0 %v689
        %v691 = vpop.f32.mrf.mxu0
        %v692 = vadd.f32 %v594, %v691
        %v693 = vpop.f32.mrf.mxu0
        %694 = vmatprep.mubr.f32.mxu0 0.0
        %v695 = vand.u32 %v291, 4294901760
        %v696 = vsub.f32 %v291, %v695
        %v697 = vand.u32 %v696, 4294901760
        %698 = vmatmul.mubr.f32.gmra.mxu0 %v697
        %v699 = vpop.f32.mrf.mxu0
        %v700 = vadd.f32 %v601, %v699
        %v701 = vpop.f32.mrf.mxu0
        %702 = vmatprep.mubr.f32.mxu0 0.0
        %v703 = vand.u32 %v294, 4294901760
        %v704 = vsub.f32 %v294, %v703
        %v705 = vand.u32 %v704, 4294901760
        %706 = vmatmul.mubr.f32.gmra.mxu0 %v705
        %v707 = vpop.f32.mrf.mxu0
        %v708 = vadd.f32 %v608, %v707
        %v709 = vpop.f32.mrf.mxu0
        %710 = vmatprep.mubr.f32.mxu0 0.0
        %v711 = vand.u32 %v297, 4294901760
        %v712 = vsub.f32 %v297, %v711
        %v713 = vand.u32 %v712, 4294901760
        %714 = vmatmul.mubr.f32.gmra.mxu0 %v713
        %v715 = vpop.f32.mrf.mxu0
        %v716 = vadd.f32 %v615, %v715
        %v717 = vpop.f32.mrf.mxu0
        %718 = vdwg.mxu0
        %719 = vmatprep.subr.mxu0 0.0
        %720 = vmatpush1.msra.mxu0 0.0
        %721 = vmatprep.subr.mxu0 0.0
        %722 = vmatpush1.msra.mxu0 0.0
        %723 = vmatprep.subr.mxu0 0.0
        %724 = vmatpush1.msra.mxu0 0.0
        %725 = vmatprep.subr.mxu0 0.0
        %726 = vmatpush1.msra.mxu0 0.0
        %727 = vmatprep.subr.mxu0 0.0
        %728 = vmatpush1.msra.mxu0 0.0
        %729 = vmatprep.subr.mxu0 0.0
        %730 = vmatpush1.msra.mxu0 0.0
        %731 = vmatprep.subr.mxu0 0.0
        %732 = vmatpush1.msra.mxu0 0.0
        %733 = vmatprep.subr.mxu0 0.0
        %734 = vmatpush1.msra.mxu0 0.0
        %735 = vmatprep.subr.mxu0 0.0
        %736 = vmatpush1.msra.mxu0 0.0
        %737 = vmatprep.subr.mxu0 0.0
        %738 = vmatpush1.msra.mxu0 0.0
        %739 = vmatprep.subr.mxu0 0.0
        %740 = vmatpush1.msra.mxu0 0.0
        %741 = vmatprep.subr.mxu0 0.0
        %742 = vmatpush1.msra.mxu0 0.0
        %743 = vmatprep.subr.mxu0 0.0
        %v744 = vand.u32 %v285, 4294901760
        %v745 = vsub.f32 %v285, %v744
        %v746 = vand.u32 %v745, 4294901760
        %747 = vmatpush1.msra.mxu0 %v746
        %748 = vmatprep.subr.mxu0 0.0
        %v749 = vand.u32 %v283, 4294901760
        %v750 = vsub.f32 %v283, %v749
        %v751 = vand.u32 %v750, 4294901760
        %752 = vmatpush1.msra.mxu0 %v751
        %753 = vmatprep.subr.mxu0 0.0
        %v754 = vand.u32 %v281, 4294901760
        %v755 = vsub.f32 %v281, %v754
        %v756 = vand.u32 %v755, 4294901760
        %757 = vmatpush1.msra.mxu0 %v756
        %758 = vmatprep.subr.mxu0 0.0
        %v759 = vand.u32 %v279, 4294901760
        %v760 = vsub.f32 %v279, %v759
        %v761 = vand.u32 %v760, 4294901760
        %762 = vmatpush1.msra.mxu0 %v761
        %763 = vmatprep.subr.mxu0 0.0
        %764 = vmatpush2.msra.mxu0 0.0
        %765 = vmatprep.subr.mxu0 0.0
        %766 = vmatpush2.msra.mxu0 0.0
        %767 = vmatprep.subr.mxu0 0.0
        %768 = vmatpush2.msra.mxu0 0.0
        %769 = vmatprep.subr.mxu0 0.0
        %770 = vmatpush2.msra.mxu0 0.0
        %771 = vmatprep.subr.mxu0 0.0
        %772 = vmatpush2.msra.mxu0 0.0
        %773 = vmatprep.subr.mxu0 0.0
        %774 = vmatpush2.msra.mxu0 0.0
        %775 = vmatprep.subr.mxu0 0.0
        %776 = vmatpush2.msra.mxu0 0.0
        %777 = vmatprep.subr.mxu0 0.0
        %778 = vmatpush2.msra.mxu0 0.0
        %779 = vmatprep.subr.mxu0 0.0
        %780 = vmatpush2.msra.mxu0 0.0
        %781 = vmatprep.subr.mxu0 0.0
        %782 = vmatpush2.msra.mxu0 0.0
        %783 = vmatprep.subr.mxu0 0.0
        %784 = vmatpush2.msra.mxu0 0.0
        %785 = vmatprep.subr.mxu0 0.0
        %786 = vmatpush2.msra.mxu0 0.0
        %787 = vmatprep.subr.mxu0 0.0
        %788 = vmatpush2.msra.mxu0 0.0
        %789 = vmatprep.subr.mxu0 0.0
        %790 = vmatpush2.msra.mxu0 0.0
        %791 = vmatprep.subr.mxu0 0.0
        %792 = vmatpush2.msra.mxu0 0.0
        %793 = vmatprep.subr.mxu0 0.0
        %794 = vmatpush2.msra.mxu0 0.0
        %795 = vmatprep.mubr.f32.mxu0 0.0
        %v796 = vand.u32 %v288, 4294901760
        %797 = vmatmul.mubr.f32.gmra.mxu0 %v796
        %v798 = vpop.f32.mrf.mxu0
        %v799 = vadd.f32 %v692, %v798
        %v800 = vpop.f32.mrf.mxu0
        %801 = vmatprep.mubr.f32.mxu0 0.0
        %v802 = vand.u32 %v291, 4294901760
        %803 = vmatmul.mubr.f32.gmra.mxu0 %v802
        %v804 = vpop.f32.mrf.mxu0
        %v805 = vadd.f32 %v700, %v804
        %v806 = vpop.f32.mrf.mxu0
        %807 = vmatprep.mubr.f32.mxu0 0.0
        %v808 = vand.u32 %v294, 4294901760
        %809 = vmatmul.mubr.f32.gmra.mxu0 %v808
        %v810 = vpop.f32.mrf.mxu0
        %v811 = vadd.f32 %v708, %v810
        %v812 = vpop.f32.mrf.mxu0
        %813 = vmatprep.mubr.f32.mxu0 0.0
        %v814 = vand.u32 %v297, 4294901760
        %815 = vmatmul.mubr.f32.gmra.mxu0 %v814
        %v816 = vpop.f32.mrf.mxu0
        %v817 = vadd.f32 %v716, %v816
        %v818 = vpop.f32.mrf.mxu0
        %819 = vdwg.mxu0
        %820 = vmatprep.subr.mxu0 0.0
        %821 = vmatpush1.msra.mxu0 0.0
        %822 = vmatprep.subr.mxu0 0.0
        %823 = vmatpush1.msra.mxu0 0.0
        %824 = vmatprep.subr.mxu0 0.0
        %825 = vmatpush1.msra.mxu0 0.0
        %826 = vmatprep.subr.mxu0 0.0
        %827 = vmatpush1.msra.mxu0 0.0
        %828 = vmatprep.subr.mxu0 0.0
        %829 = vmatpush1.msra.mxu0 0.0
        %830 = vmatprep.subr.mxu0 0.0
        %831 = vmatpush1.msra.mxu0 0.0
        %832 = vmatprep.subr.mxu0 0.0
        %833 = vmatpush1.msra.mxu0 0.0
        %834 = vmatprep.subr.mxu0 0.0
        %835 = vmatpush1.msra.mxu0 0.0
        %836 = vmatprep.subr.mxu0 0.0
        %837 = vmatpush1.msra.mxu0 0.0
        %838 = vmatprep.subr.mxu0 0.0
        %839 = vmatpush1.msra.mxu0 0.0
        %840 = vmatprep.subr.mxu0 0.0
        %841 = vmatpush1.msra.mxu0 0.0
        %842 = vmatprep.subr.mxu0 0.0
        %843 = vmatpush1.msra.mxu0 0.0
        %844 = vmatprep.subr.mxu0 0.0
        %v845 = vand.u32 %v285, 4294901760
        %846 = vmatpush1.msra.mxu0 %v845
        %847 = vmatprep.subr.mxu0 0.0
        %v848 = vand.u32 %v283, 4294901760
        %849 = vmatpush1.msra.mxu0 %v848
        %850 = vmatprep.subr.mxu0 0.0
        %v851 = vand.u32 %v281, 4294901760
        %852 = vmatpush1.msra.mxu0 %v851
        %853 = vmatprep.subr.mxu0 0.0
        %v854 = vand.u32 %v279, 4294901760
        %855 = vmatpush1.msra.mxu0 %v854
        %856 = vmatprep.subr.mxu0 0.0
        %857 = vmatpush2.msra.mxu0 0.0
        %858 = vmatprep.subr.mxu0 0.0
        %859 = vmatpush2.msra.mxu0 0.0
        %860 = vmatprep.subr.mxu0 0.0
        %861 = vmatpush2.msra.mxu0 0.0
        %862 = vmatprep.subr.mxu0 0.0
        %863 = vmatpush2.msra.mxu0 0.0
        %864 = vmatprep.subr.mxu0 0.0
        %865 = vmatpush2.msra.mxu0 0.0
        %866 = vmatprep.subr.mxu0 0.0
        %867 = vmatpush2.msra.mxu0 0.0
        %868 = vmatprep.subr.mxu0 0.0
        %869 = vmatpush2.msra.mxu0 0.0
        %870 = vmatprep.subr.mxu0 0.0
        %871 = vmatpush2.msra.mxu0 0.0
        %872 = vmatprep.subr.mxu0 0.0
        %873 = vmatpush2.msra.mxu0 0.0
        %874 = vmatprep.subr.mxu0 0.0
        %875 = vmatpush2.msra.mxu0 0.0
        %876 = vmatprep.subr.mxu0 0.0
        %877 = vmatpush2.msra.mxu0 0.0
        %878 = vmatprep.subr.mxu0 0.0
        %879 = vmatpush2.msra.mxu0 0.0
        %880 = vmatprep.subr.mxu0 0.0
        %881 = vmatpush2.msra.mxu0 0.0
        %882 = vmatprep.subr.mxu0 0.0
        %883 = vmatpush2.msra.mxu0 0.0
        %884 = vmatprep.subr.mxu0 0.0
        %885 = vmatpush2.msra.mxu0 0.0
        %886 = vmatprep.subr.mxu0 0.0
        %887 = vmatpush2.msra.mxu0 0.0
        %888 = vmatprep.mubr.f32.mxu0 0.0
        %v889 = vand.u32 %v288, 4294901760
        %890 = vmatmul.mubr.f32.gmra.mxu0 %v889
        %v891 = vpop.f32.mrf.mxu0
        %v892 = vadd.f32 %v799, %v891
        %v893 = vpop.f32.mrf.mxu0
        %894 = vmatprep.mubr.f32.mxu0 0.0
        %v895 = vand.u32 %v291, 4294901760
        %896 = vmatmul.mubr.f32.gmra.mxu0 %v895
        %v897 = vpop.f32.mrf.mxu0
        %v898 = vadd.f32 %v805, %v897
        %v899 = vpop.f32.mrf.mxu0
        %900 = vmatprep.mubr.f32.mxu0 0.0
        %v901 = vand.u32 %v294, 4294901760
        %902 = vmatmul.mubr.f32.gmra.mxu0 %v901
        %v903 = vpop.f32.mrf.mxu0
        %v904 = vadd.f32 %v811, %v903
        %v905 = vpop.f32.mrf.mxu0
        %906 = vmatprep.mubr.f32.mxu0 0.0
        %v907 = vand.u32 %v297, 4294901760
        %908 = vmatmul.mubr.f32.gmra.mxu0 %v907
        %v909 = vpop.f32.mrf.mxu0
        %v910 = vadd.f32 %v817, %v909
        %v911 = vpop.f32.mrf.mxu0
        %912 = vdwg.mxu0
        %v913 = vmul.u32 %v245, 4
        %v914 = vmul.u32 %v246, 4
        %vm915 = vcmp.eq.s32.totalorder %v250, %v913
        %vm916 = vcmp.eq.s32.totalorder %v250, %v914
        %v917 = vsel %vm915, 1, 0
        %v918 = vsel %vm916, 1, 0
        %v919 = vcvt.s32.f32 %v917
        %v920 = vcvt.s32.f32 %v918
        %vm921 = vcmask 130048
        %v923 = vsel %vm921, %v892, 0
        %v926 = vsel %vm921, %v898, 0
        %v929 = vsel %vm921, %v904, 0
        %v932 = vsel %vm921, %v910, 0
        %934 = vmatprep.subr.mxu0 0.0
        %935 = vmatpush1.msra.mxu0 0.0
        %936 = vmatprep.subr.mxu0 0.0
        %937 = vmatpush1.msra.mxu0 0.0
        %938 = vmatprep.subr.mxu0 0.0
        %939 = vmatpush1.msra.mxu0 0.0
        %940 = vmatprep.subr.mxu0 0.0
        %941 = vmatpush1.msra.mxu0 0.0
        %942 = vmatprep.subr.mxu0 0.0
        %943 = vmatpush1.msra.mxu0 0.0
        %944 = vmatprep.subr.mxu0 0.0
        %945 = vmatpush1.msra.mxu0 0.0
        %946 = vmatprep.subr.mxu0 0.0
        %947 = vmatpush1.msra.mxu0 0.0
        %948 = vmatprep.subr.mxu0 0.0
        %949 = vmatpush1.msra.mxu0 0.0
        %950 = vmatprep.subr.mxu0 0.0
        %951 = vmatpush1.msra.mxu0 0.0
        %952 = vmatprep.subr.mxu0 0.0
        %953 = vmatpush1.msra.mxu0 0.0
        %954 = vmatprep.subr.mxu0 0.0
        %955 = vmatpush1.msra.mxu0 0.0
        %956 = vmatprep.subr.mxu0 0.0
        %957 = vmatpush1.msra.mxu0 0.0
        %958 = vmatprep.subr.mxu0 0.0
        %959 = vmatpush1.msra.mxu0 0.0
        %960 = vmatprep.subr.mxu0 0.0
        %961 = vmatpush1.msra.mxu0 0.0
        %962 = vmatprep.subr.mxu0 0.0
        %v963 = vand.u32 %v920, 4294901760
        %964 = vmatpush1.msra.mxu0 %v963
        %965 = vmatprep.subr.mxu0 0.0
        %v966 = vand.u32 %v919, 4294901760
        %967 = vmatpush1.msra.mxu0 %v966
        %968 = vmatprep.subr.mxu0 0.0
        %969 = vmatpush2.msra.mxu0 0.0
        %970 = vmatprep.subr.mxu0 0.0
        %971 = vmatpush2.msra.mxu0 0.0
        %972 = vmatprep.subr.mxu0 0.0
        %973 = vmatpush2.msra.mxu0 0.0
        %974 = vmatprep.subr.mxu0 0.0
        %975 = vmatpush2.msra.mxu0 0.0
        %976 = vmatprep.subr.mxu0 0.0
        %977 = vmatpush2.msra.mxu0 0.0
        %978 = vmatprep.subr.mxu0 0.0
        %979 = vmatpush2.msra.mxu0 0.0
        %980 = vmatprep.subr.mxu0 0.0
        %981 = vmatpush2.msra.mxu0 0.0
        %982 = vmatprep.subr.mxu0 0.0
        %983 = vmatpush2.msra.mxu0 0.0
        %984 = vmatprep.subr.mxu0 0.0
        %985 = vmatpush2.msra.mxu0 0.0
        %986 = vmatprep.subr.mxu0 0.0
        %987 = vmatpush2.msra.mxu0 0.0
        %988 = vmatprep.subr.mxu0 0.0
        %989 = vmatpush2.msra.mxu0 0.0
        %990 = vmatprep.subr.mxu0 0.0
        %991 = vmatpush2.msra.mxu0 0.0
        %992 = vmatprep.subr.mxu0 0.0
        %993 = vmatpush2.msra.mxu0 0.0
        %994 = vmatprep.subr.mxu0 0.0
        %995 = vmatpush2.msra.mxu0 0.0
        %996 = vmatprep.subr.mxu0 0.0
        %997 = vmatpush2.msra.mxu0 0.0
        %998 = vmatprep.subr.mxu0 0.0
        %999 = vmatpush2.msra.mxu0 0.0
        %1000 = vmatprep.mubr.f32.mxu0 0.0
        %v1001 = vand.u32 %v923, 4294901760
        %v1002 = vsub.f32 %v923, %v1001
        %v1003 = vand.u32 %v1002, 4294901760
        %v1004 = vsub.f32 %v1002, %v1003
        %v1005 = vand.u32 %v1004, 4294901760
        %1006 = vmatmul.mubr.f32.gmra.mxu0 %v1005
        %v1007 = vpop.f32.mrf.mxu0
        %v1008 = vadd.f32 0.0, %v1007
        %v1009 = vpop.f32.mrf.mxu0
        %1010 = vmatprep.mubr.f32.mxu0 0.0
        %v1011 = vand.u32 %v926, 4294901760
        %v1012 = vsub.f32 %v926, %v1011
        %v1013 = vand.u32 %v1012, 4294901760
        %v1014 = vsub.f32 %v1012, %v1013
        %v1015 = vand.u32 %v1014, 4294901760
        %1016 = vmatmul.mubr.f32.gmra.mxu0 %v1015
        %v1017 = vpop.f32.mrf.mxu0
        %v1018 = vadd.f32 0.0, %v1017
        %v1019 = vpop.f32.mrf.mxu0
        %1020 = vmatprep.mubr.f32.mxu0 0.0
        %v1021 = vand.u32 %v929, 4294901760
        %v1022 = vsub.f32 %v929, %v1021
        %v1023 = vand.u32 %v1022, 4294901760
        %v1024 = vsub.f32 %v1022, %v1023
        %v1025 = vand.u32 %v1024, 4294901760
        %1026 = vmatmul.mubr.f32.gmra.mxu0 %v1025
        %v1027 = vpop.f32.mrf.mxu0
        %v1028 = vadd.f32 0.0, %v1027
        %v1029 = vpop.f32.mrf.mxu0
        %1030 = vmatprep.mubr.f32.mxu0 0.0
        %v1031 = vand.u32 %v932, 4294901760
        %v1032 = vsub.f32 %v932, %v1031
        %v1033 = vand.u32 %v1032, 4294901760
        %v1034 = vsub.f32 %v1032, %v1033
        %v1035 = vand.u32 %v1034, 4294901760
        %1036 = vmatmul.mubr.f32.gmra.mxu0 %v1035
        %v1037 = vpop.f32.mrf.mxu0
        %v1038 = vadd.f32 0.0, %v1037
        %v1039 = vpop.f32.mrf.mxu0
        %1040 = vdwg.mxu0
        %1041 = vmatprep.subr.mxu0 0.0
        %1042 = vmatpush1.msra.mxu0 0.0
        %1043 = vmatprep.subr.mxu0 0.0
        %1044 = vmatpush1.msra.mxu0 0.0
        %1045 = vmatprep.subr.mxu0 0.0
        %1046 = vmatpush1.msra.mxu0 0.0
        %1047 = vmatprep.subr.mxu0 0.0
        %1048 = vmatpush1.msra.mxu0 0.0
        %1049 = vmatprep.subr.mxu0 0.0
        %1050 = vmatpush1.msra.mxu0 0.0
        %1051 = vmatprep.subr.mxu0 0.0
        %1052 = vmatpush1.msra.mxu0 0.0
        %1053 = vmatprep.subr.mxu0 0.0
        %1054 = vmatpush1.msra.mxu0 0.0
        %1055 = vmatprep.subr.mxu0 0.0
        %1056 = vmatpush1.msra.mxu0 0.0
        %1057 = vmatprep.subr.mxu0 0.0
        %1058 = vmatpush1.msra.mxu0 0.0
        %1059 = vmatprep.subr.mxu0 0.0
        %1060 = vmatpush1.msra.mxu0 0.0
        %1061 = vmatprep.subr.mxu0 0.0
        %1062 = vmatpush1.msra.mxu0 0.0
        %1063 = vmatprep.subr.mxu0 0.0
        %1064 = vmatpush1.msra.mxu0 0.0
        %1065 = vmatprep.subr.mxu0 0.0
        %1066 = vmatpush1.msra.mxu0 0.0
        %1067 = vmatprep.subr.mxu0 0.0
        %1068 = vmatpush1.msra.mxu0 0.0
        %1069 = vmatprep.subr.mxu0 0.0
        %v1070 = vand.u32 %v920, 4294901760
        %v1071 = vsub.f32 %v920, %v1070
        %v1072 = vand.u32 %v1071, 4294901760
        %v1073 = vsub.f32 %v1071, %v1072
        %v1074 = vand.u32 %v1073, 4294901760
        %1075 = vmatpush1.msra.mxu0 %v1074
        %1076 = vmatprep.subr.mxu0 0.0
        %v1077 = vand.u32 %v919, 4294901760
        %v1078 = vsub.f32 %v919, %v1077
        %v1079 = vand.u32 %v1078, 4294901760
        %v1080 = vsub.f32 %v1078, %v1079
        %v1081 = vand.u32 %v1080, 4294901760
        %1082 = vmatpush1.msra.mxu0 %v1081
        %1083 = vmatprep.subr.mxu0 0.0
        %1084 = vmatpush2.msra.mxu0 0.0
        %1085 = vmatprep.subr.mxu0 0.0
        %1086 = vmatpush2.msra.mxu0 0.0
        %1087 = vmatprep.subr.mxu0 0.0
        %1088 = vmatpush2.msra.mxu0 0.0
        %1089 = vmatprep.subr.mxu0 0.0
        %1090 = vmatpush2.msra.mxu0 0.0
        %1091 = vmatprep.subr.mxu0 0.0
        %1092 = vmatpush2.msra.mxu0 0.0
        %1093 = vmatprep.subr.mxu0 0.0
        %1094 = vmatpush2.msra.mxu0 0.0
        %1095 = vmatprep.subr.mxu0 0.0
        %1096 = vmatpush2.msra.mxu0 0.0
        %1097 = vmatprep.subr.mxu0 0.0
        %1098 = vmatpush2.msra.mxu0 0.0
        %1099 = vmatprep.subr.mxu0 0.0
        %1100 = vmatpush2.msra.mxu0 0.0
        %1101 = vmatprep.subr.mxu0 0.0
        %1102 = vmatpush2.msra.mxu0 0.0
        %1103 = vmatprep.subr.mxu0 0.0
        %1104 = vmatpush2.msra.mxu0 0.0
        %1105 = vmatprep.subr.mxu0 0.0
        %1106 = vmatpush2.msra.mxu0 0.0
        %1107 = vmatprep.subr.mxu0 0.0
        %1108 = vmatpush2.msra.mxu0 0.0
        %1109 = vmatprep.subr.mxu0 0.0
        %1110 = vmatpush2.msra.mxu0 0.0
        %1111 = vmatprep.subr.mxu0 0.0
        %1112 = vmatpush2.msra.mxu0 0.0
        %1113 = vmatprep.subr.mxu0 0.0
        %1114 = vmatpush2.msra.mxu0 0.0
        %1115 = vmatprep.mubr.f32.mxu0 0.0
        %v1116 = vand.u32 %v923, 4294901760
        %1117 = vmatmul.mubr.f32.gmra.mxu0 %v1116
        %v1118 = vpop.f32.mrf.mxu0
        %v1119 = vadd.f32 %v1008, %v1118
        %v1120 = vpop.f32.mrf.mxu0
        %1121 = vmatprep.mubr.f32.mxu0 0.0
        %v1122 = vand.u32 %v926, 4294901760
        %1123 = vmatmul.mubr.f32.gmra.mxu0 %v1122
        %v1124 = vpop.f32.mrf.mxu0
        %v1125 = vadd.f32 %v1018, %v1124
        %v1126 = vpop.f32.mrf.mxu0
        %1127 = vmatprep.mubr.f32.mxu0 0.0
        %v1128 = vand.u32 %v929, 4294901760
        %1129 = vmatmul.mubr.f32.gmra.mxu0 %v1128
        %v1130 = vpop.f32.mrf.mxu0
        %v1131 = vadd.f32 %v1028, %v1130
        %v1132 = vpop.f32.mrf.mxu0
        %1133 = vmatprep.mubr.f32.mxu0 0.0
        %v1134 = vand.u32 %v932, 4294901760
        %1135 = vmatmul.mubr.f32.gmra.mxu0 %v1134
        %v1136 = vpop.f32.mrf.mxu0
        %v1137 = vadd.f32 %v1038, %v1136
        %v1138 = vpop.f32.mrf.mxu0
        %1139 = vdwg.mxu0
        %1140 = vmatprep.subr.mxu0 0.0
        %1141 = vmatpush1.msra.mxu0 0.0
        %1142 = vmatprep.subr.mxu0 0.0
        %1143 = vmatpush1.msra.mxu0 0.0
        %1144 = vmatprep.subr.mxu0 0.0
        %1145 = vmatpush1.msra.mxu0 0.0
        %1146 = vmatprep.subr.mxu0 0.0
        %1147 = vmatpush1.msra.mxu0 0.0
        %1148 = vmatprep.subr.mxu0 0.0
        %1149 = vmatpush1.msra.mxu0 0.0
        %1150 = vmatprep.subr.mxu0 0.0
        %1151 = vmatpush1.msra.mxu0 0.0
        %1152 = vmatprep.subr.mxu0 0.0
        %1153 = vmatpush1.msra.mxu0 0.0
        %1154 = vmatprep.subr.mxu0 0.0
        %1155 = vmatpush1.msra.mxu0 0.0
        %1156 = vmatprep.subr.mxu0 0.0
        %1157 = vmatpush1.msra.mxu0 0.0
        %1158 = vmatprep.subr.mxu0 0.0
        %1159 = vmatpush1.msra.mxu0 0.0
        %1160 = vmatprep.subr.mxu0 0.0
        %1161 = vmatpush1.msra.mxu0 0.0
        %1162 = vmatprep.subr.mxu0 0.0
        %1163 = vmatpush1.msra.mxu0 0.0
        %1164 = vmatprep.subr.mxu0 0.0
        %1165 = vmatpush1.msra.mxu0 0.0
        %1166 = vmatprep.subr.mxu0 0.0
        %1167 = vmatpush1.msra.mxu0 0.0
        %1168 = vmatprep.subr.mxu0 0.0
        %v1169 = vand.u32 %v920, 4294901760
        %v1170 = vsub.f32 %v920, %v1169
        %1171 = vmatpush1.msra.mxu0 %v1170
        %1172 = vmatprep.subr.mxu0 0.0
        %v1173 = vand.u32 %v919, 4294901760
        %v1174 = vsub.f32 %v919, %v1173
        %1175 = vmatpush1.msra.mxu0 %v1174
        %1176 = vmatprep.subr.mxu0 0.0
        %1177 = vmatpush2.msra.mxu0 0.0
        %1178 = vmatprep.subr.mxu0 0.0
        %1179 = vmatpush2.msra.mxu0 0.0
        %1180 = vmatprep.subr.mxu0 0.0
        %1181 = vmatpush2.msra.mxu0 0.0
        %1182 = vmatprep.subr.mxu0 0.0
        %1183 = vmatpush2.msra.mxu0 0.0
        %1184 = vmatprep.subr.mxu0 0.0
        %1185 = vmatpush2.msra.mxu0 0.0
        %1186 = vmatprep.subr.mxu0 0.0
        %1187 = vmatpush2.msra.mxu0 0.0
        %1188 = vmatprep.subr.mxu0 0.0
        %1189 = vmatpush2.msra.mxu0 0.0
        %1190 = vmatprep.subr.mxu0 0.0
        %1191 = vmatpush2.msra.mxu0 0.0
        %1192 = vmatprep.subr.mxu0 0.0
        %1193 = vmatpush2.msra.mxu0 0.0
        %1194 = vmatprep.subr.mxu0 0.0
        %1195 = vmatpush2.msra.mxu0 0.0
        %1196 = vmatprep.subr.mxu0 0.0
        %1197 = vmatpush2.msra.mxu0 0.0
        %1198 = vmatprep.subr.mxu0 0.0
        %1199 = vmatpush2.msra.mxu0 0.0
        %1200 = vmatprep.subr.mxu0 0.0
        %1201 = vmatpush2.msra.mxu0 0.0
        %1202 = vmatprep.subr.mxu0 0.0
        %1203 = vmatpush2.msra.mxu0 0.0
        %1204 = vmatprep.subr.mxu0 0.0
        %1205 = vmatpush2.msra.mxu0 0.0
        %1206 = vmatprep.subr.mxu0 0.0
        %1207 = vmatpush2.msra.mxu0 0.0
        %1208 = vmatprep.mubr.f32.mxu0 0.0
        %v1209 = vand.u32 %v923, 4294901760
        %v1210 = vsub.f32 %v923, %v1209
        %1211 = vmatmul.mubr.f32.gmra.mxu0 %v1210
        %v1212 = vpop.f32.mrf.mxu0
        %v1213 = vadd.f32 %v1119, %v1212
        %v1214 = vpop.f32.mrf.mxu0
        %1215 = vmatprep.mubr.f32.mxu0 0.0
        %v1216 = vand.u32 %v926, 4294901760
        %v1217 = vsub.f32 %v926, %v1216
        %1218 = vmatmul.mubr.f32.gmra.mxu0 %v1217
        %v1219 = vpop.f32.mrf.mxu0
        %v1220 = vadd.f32 %v1125, %v1219
        %v1221 = vpop.f32.mrf.mxu0
        %1222 = vmatprep.mubr.f32.mxu0 0.0
        %v1223 = vand.u32 %v929, 4294901760
        %v1224 = vsub.f32 %v929, %v1223
        %1225 = vmatmul.mubr.f32.gmra.mxu0 %v1224
        %v1226 = vpop.f32.mrf.mxu0
        %v1227 = vadd.f32 %v1131, %v1226
        %v1228 = vpop.f32.mrf.mxu0
        %1229 = vmatprep.mubr.f32.mxu0 0.0
        %v1230 = vand.u32 %v932, 4294901760
        %v1231 = vsub.f32 %v932, %v1230
        %1232 = vmatmul.mubr.f32.gmra.mxu0 %v1231
        %v1233 = vpop.f32.mrf.mxu0
        %v1234 = vadd.f32 %v1137, %v1233
        %v1235 = vpop.f32.mrf.mxu0
        %1236 = vdwg.mxu0
        %1237 = vmatprep.subr.mxu0 0.0
        %1238 = vmatpush1.msra.mxu0 0.0
        %1239 = vmatprep.subr.mxu0 0.0
        %1240 = vmatpush1.msra.mxu0 0.0
        %1241 = vmatprep.subr.mxu0 0.0
        %1242 = vmatpush1.msra.mxu0 0.0
        %1243 = vmatprep.subr.mxu0 0.0
        %1244 = vmatpush1.msra.mxu0 0.0
        %1245 = vmatprep.subr.mxu0 0.0
        %1246 = vmatpush1.msra.mxu0 0.0
        %1247 = vmatprep.subr.mxu0 0.0
        %1248 = vmatpush1.msra.mxu0 0.0
        %1249 = vmatprep.subr.mxu0 0.0
        %1250 = vmatpush1.msra.mxu0 0.0
        %1251 = vmatprep.subr.mxu0 0.0
        %1252 = vmatpush1.msra.mxu0 0.0
        %1253 = vmatprep.subr.mxu0 0.0
        %1254 = vmatpush1.msra.mxu0 0.0
        %1255 = vmatprep.subr.mxu0 0.0
        %1256 = vmatpush1.msra.mxu0 0.0
        %1257 = vmatprep.subr.mxu0 0.0
        %1258 = vmatpush1.msra.mxu0 0.0
        %1259 = vmatprep.subr.mxu0 0.0
        %1260 = vmatpush1.msra.mxu0 0.0
        %1261 = vmatprep.subr.mxu0 0.0
        %1262 = vmatpush1.msra.mxu0 0.0
        %1263 = vmatprep.subr.mxu0 0.0
        %1264 = vmatpush1.msra.mxu0 0.0
        %1265 = vmatprep.subr.mxu0 0.0
        %v1266 = vand.u32 %v920, 4294901760
        %1267 = vmatpush1.msra.mxu0 %v1266
        %1268 = vmatprep.subr.mxu0 0.0
        %v1269 = vand.u32 %v919, 4294901760
        %1270 = vmatpush1.msra.mxu0 %v1269
        %1271 = vmatprep.subr.mxu0 0.0
        %1272 = vmatpush2.msra.mxu0 0.0
        %1273 = vmatprep.subr.mxu0 0.0
        %1274 = vmatpush2.msra.mxu0 0.0
        %1275 = vmatprep.subr.mxu0 0.0
        %1276 = vmatpush2.msra.mxu0 0.0
        %1277 = vmatprep.subr.mxu0 0.0
        %1278 = vmatpush2.msra.mxu0 0.0
        %1279 = vmatprep.subr.mxu0 0.0
        %1280 = vmatpush2.msra.mxu0 0.0
        %1281 = vmatprep.subr.mxu0 0.0
        %1282 = vmatpush2.msra.mxu0 0.0
        %1283 = vmatprep.subr.mxu0 0.0
        %1284 = vmatpush2.msra.mxu0 0.0
        %1285 = vmatprep.subr.mxu0 0.0
        %1286 = vmatpush2.msra.mxu0 0.0
        %1287 = vmatprep.subr.mxu0 0.0
        %1288 = vmatpush2.msra.mxu0 0.0
        %1289 = vmatprep.subr.mxu0 0.0
        %1290 = vmatpush2.msra.mxu0 0.0
        %1291 = vmatprep.subr.mxu0 0.0
        %1292 = vmatpush2.msra.mxu0 0.0
        %1293 = vmatprep.subr.mxu0 0.0
        %1294 = vmatpush2.msra.mxu0 0.0
        %1295 = vmatprep.subr.mxu0 0.0
        %1296 = vmatpush2.msra.mxu0 0.0
        %1297 = vmatprep.subr.mxu0 0.0
        %1298 = vmatpush2.msra.mxu0 0.0
        %1299 = vmatprep.subr.mxu0 0.0
        %1300 = vmatpush2.msra.mxu0 0.0
        %1301 = vmatprep.subr.mxu0 0.0
        %1302 = vmatpush2.msra.mxu0 0.0
        %1303 = vmatprep.mubr.f32.mxu0 0.0
        %v1304 = vand.u32 %v923, 4294901760
        %v1305 = vsub.f32 %v923, %v1304
        %v1306 = vand.u32 %v1305, 4294901760
        %1307 = vmatmul.mubr.f32.gmra.mxu0 %v1306
        %v1308 = vpop.f32.mrf.mxu0
        %v1309 = vadd.f32 %v1213, %v1308
        %v1310 = vpop.f32.mrf.mxu0
        %1311 = vmatprep.mubr.f32.mxu0 0.0
        %v1312 = vand.u32 %v926, 4294901760
        %v1313 = vsub.f32 %v926, %v1312
        %v1314 = vand.u32 %v1313, 4294901760
        %1315 = vmatmul.mubr.f32.gmra.mxu0 %v1314
        %v1316 = vpop.f32.mrf.mxu0
        %v1317 = vadd.f32 %v1220, %v1316
        %v1318 = vpop.f32.mrf.mxu0
        %1319 = vmatprep.mubr.f32.mxu0 0.0
        %v1320 = vand.u32 %v929, 4294901760
        %v1321 = vsub.f32 %v929, %v1320
        %v1322 = vand.u32 %v1321, 4294901760
        %1323 = vmatmul.mubr.f32.gmra.mxu0 %v1322
        %v1324 = vpop.f32.mrf.mxu0
        %v1325 = vadd.f32 %v1227, %v1324
        %v1326 = vpop.f32.mrf.mxu0
        %1327 = vmatprep.mubr.f32.mxu0 0.0
        %v1328 = vand.u32 %v932, 4294901760
        %v1329 = vsub.f32 %v932, %v1328
        %v1330 = vand.u32 %v1329, 4294901760
        %1331 = vmatmul.mubr.f32.gmra.mxu0 %v1330
        %v1332 = vpop.f32.mrf.mxu0
        %v1333 = vadd.f32 %v1234, %v1332
        %v1334 = vpop.f32.mrf.mxu0
        %1335 = vdwg.mxu0
        %1336 = vmatprep.subr.mxu0 0.0
        %1337 = vmatpush1.msra.mxu0 0.0
        %1338 = vmatprep.subr.mxu0 0.0
        %1339 = vmatpush1.msra.mxu0 0.0
        %1340 = vmatprep.subr.mxu0 0.0
        %1341 = vmatpush1.msra.mxu0 0.0
        %1342 = vmatprep.subr.mxu0 0.0
        %1343 = vmatpush1.msra.mxu0 0.0
        %1344 = vmatprep.subr.mxu0 0.0
        %1345 = vmatpush1.msra.mxu0 0.0
        %1346 = vmatprep.subr.mxu0 0.0
        %1347 = vmatpush1.msra.mxu0 0.0
        %1348 = vmatprep.subr.mxu0 0.0
        %1349 = vmatpush1.msra.mxu0 0.0
        %1350 = vmatprep.subr.mxu0 0.0
        %1351 = vmatpush1.msra.mxu0 0.0
        %1352 = vmatprep.subr.mxu0 0.0
        %1353 = vmatpush1.msra.mxu0 0.0
        %1354 = vmatprep.subr.mxu0 0.0
        %1355 = vmatpush1.msra.mxu0 0.0
        %1356 = vmatprep.subr.mxu0 0.0
        %1357 = vmatpush1.msra.mxu0 0.0
        %1358 = vmatprep.subr.mxu0 0.0
        %1359 = vmatpush1.msra.mxu0 0.0
        %1360 = vmatprep.subr.mxu0 0.0
        %1361 = vmatpush1.msra.mxu0 0.0
        %1362 = vmatprep.subr.mxu0 0.0
        %1363 = vmatpush1.msra.mxu0 0.0
        %1364 = vmatprep.subr.mxu0 0.0
        %v1365 = vand.u32 %v920, 4294901760
        %v1366 = vsub.f32 %v920, %v1365
        %v1367 = vand.u32 %v1366, 4294901760
        %1368 = vmatpush1.msra.mxu0 %v1367
        %1369 = vmatprep.subr.mxu0 0.0
        %v1370 = vand.u32 %v919, 4294901760
        %v1371 = vsub.f32 %v919, %v1370
        %v1372 = vand.u32 %v1371, 4294901760
        %1373 = vmatpush1.msra.mxu0 %v1372
        %1374 = vmatprep.subr.mxu0 0.0
        %1375 = vmatpush2.msra.mxu0 0.0
        %1376 = vmatprep.subr.mxu0 0.0
        %1377 = vmatpush2.msra.mxu0 0.0
        %1378 = vmatprep.subr.mxu0 0.0
        %1379 = vmatpush2.msra.mxu0 0.0
        %1380 = vmatprep.subr.mxu0 0.0
        %1381 = vmatpush2.msra.mxu0 0.0
        %1382 = vmatprep.subr.mxu0 0.0
        %1383 = vmatpush2.msra.mxu0 0.0
        %1384 = vmatprep.subr.mxu0 0.0
        %1385 = vmatpush2.msra.mxu0 0.0
        %1386 = vmatprep.subr.mxu0 0.0
        %1387 = vmatpush2.msra.mxu0 0.0
        %1388 = vmatprep.subr.mxu0 0.0
        %1389 = vmatpush2.msra.mxu0 0.0
        %1390 = vmatprep.subr.mxu0 0.0
        %1391 = vmatpush2.msra.mxu0 0.0
        %1392 = vmatprep.subr.mxu0 0.0
        %1393 = vmatpush2.msra.mxu0 0.0
        %1394 = vmatprep.subr.mxu0 0.0
        %1395 = vmatpush2.msra.mxu0 0.0
        %1396 = vmatprep.subr.mxu0 0.0
        %1397 = vmatpush2.msra.mxu0 0.0
        %1398 = vmatprep.subr.mxu0 0.0
        %1399 = vmatpush2.msra.mxu0 0.0
        %1400 = vmatprep.subr.mxu0 0.0
        %1401 = vmatpush2.msra.mxu0 0.0
        %1402 = vmatprep.subr.mxu0 0.0
        %1403 = vmatpush2.msra.mxu0 0.0
        %1404 = vmatprep.subr.mxu0 0.0
        %1405 = vmatpush2.msra.mxu0 0.0
        %1406 = vmatprep.mubr.f32.mxu0 0.0
        %v1407 = vand.u32 %v923, 4294901760
        %1408 = vmatmul.mubr.f32.gmra.mxu0 %v1407
        %v1409 = vpop.f32.mrf.mxu0
        %v1410 = vadd.f32 %v1309, %v1409
        %v1411 = vpop.f32.mrf.mxu0
        %1412 = vmatprep.mubr.f32.mxu0 0.0
        %v1413 = vand.u32 %v926, 4294901760
        %1414 = vmatmul.mubr.f32.gmra.mxu0 %v1413
        %v1415 = vpop.f32.mrf.mxu0
        %v1416 = vadd.f32 %v1317, %v1415
        %v1417 = vpop.f32.mrf.mxu0
        %1418 = vmatprep.mubr.f32.mxu0 0.0
        %v1419 = vand.u32 %v929, 4294901760
        %1420 = vmatmul.mubr.f32.gmra.mxu0 %v1419
        %v1421 = vpop.f32.mrf.mxu0
        %v1422 = vadd.f32 %v1325, %v1421
        %v1423 = vpop.f32.mrf.mxu0
        %1424 = vmatprep.mubr.f32.mxu0 0.0
        %v1425 = vand.u32 %v932, 4294901760
        %1426 = vmatmul.mubr.f32.gmra.mxu0 %v1425
        %v1427 = vpop.f32.mrf.mxu0
        %v1428 = vadd.f32 %v1333, %v1427
        %v1429 = vpop.f32.mrf.mxu0
        %1430 = vdwg.mxu0
        %1431 = vmatprep.subr.mxu0 0.0
        %1432 = vmatpush1.msra.mxu0 0.0
        %1433 = vmatprep.subr.mxu0 0.0
        %1434 = vmatpush1.msra.mxu0 0.0
        %1435 = vmatprep.subr.mxu0 0.0
        %1436 = vmatpush1.msra.mxu0 0.0
        %1437 = vmatprep.subr.mxu0 0.0
        %1438 = vmatpush1.msra.mxu0 0.0
        %1439 = vmatprep.subr.mxu0 0.0
        %1440 = vmatpush1.msra.mxu0 0.0
        %1441 = vmatprep.subr.mxu0 0.0
        %1442 = vmatpush1.msra.mxu0 0.0
        %1443 = vmatprep.subr.mxu0 0.0
        %1444 = vmatpush1.msra.mxu0 0.0
        %1445 = vmatprep.subr.mxu0 0.0
        %1446 = vmatpush1.msra.mxu0 0.0
        %1447 = vmatprep.subr.mxu0 0.0
        %1448 = vmatpush1.msra.mxu0 0.0
        %1449 = vmatprep.subr.mxu0 0.0
        %1450 = vmatpush1.msra.mxu0 0.0
        %1451 = vmatprep.subr.mxu0 0.0
        %1452 = vmatpush1.msra.mxu0 0.0
        %1453 = vmatprep.subr.mxu0 0.0
        %1454 = vmatpush1.msra.mxu0 0.0
        %1455 = vmatprep.subr.mxu0 0.0
        %1456 = vmatpush1.msra.mxu0 0.0
        %1457 = vmatprep.subr.mxu0 0.0
        %1458 = vmatpush1.msra.mxu0 0.0
        %1459 = vmatprep.subr.mxu0 0.0
        %v1460 = vand.u32 %v920, 4294901760
        %1461 = vmatpush1.msra.mxu0 %v1460
        %1462 = vmatprep.subr.mxu0 0.0
        %v1463 = vand.u32 %v919, 4294901760
        %1464 = vmatpush1.msra.mxu0 %v1463
        %1465 = vmatprep.subr.mxu0 0.0
        %1466 = vmatpush2.msra.mxu0 0.0
        %1467 = vmatprep.subr.mxu0 0.0
        %1468 = vmatpush2.msra.mxu0 0.0
        %1469 = vmatprep.subr.mxu0 0.0
        %1470 = vmatpush2.msra.mxu0 0.0
        %1471 = vmatprep.subr.mxu0 0.0
        %1472 = vmatpush2.msra.mxu0 0.0
        %1473 = vmatprep.subr.mxu0 0.0
        %1474 = vmatpush2.msra.mxu0 0.0
        %1475 = vmatprep.subr.mxu0 0.0
        %1476 = vmatpush2.msra.mxu0 0.0
        %1477 = vmatprep.subr.mxu0 0.0
        %1478 = vmatpush2.msra.mxu0 0.0
        %1479 = vmatprep.subr.mxu0 0.0
        %1480 = vmatpush2.msra.mxu0 0.0
        %1481 = vmatprep.subr.mxu0 0.0
        %1482 = vmatpush2.msra.mxu0 0.0
        %1483 = vmatprep.subr.mxu0 0.0
        %1484 = vmatpush2.msra.mxu0 0.0
        %1485 = vmatprep.subr.mxu0 0.0
        %1486 = vmatpush2.msra.mxu0 0.0
        %1487 = vmatprep.subr.mxu0 0.0
        %1488 = vmatpush2.msra.mxu0 0.0
        %1489 = vmatprep.subr.mxu0 0.0
        %1490 = vmatpush2.msra.mxu0 0.0
        %1491 = vmatprep.subr.mxu0 0.0
        %1492 = vmatpush2.msra.mxu0 0.0
        %1493 = vmatprep.subr.mxu0 0.0
        %1494 = vmatpush2.msra.mxu0 0.0
        %1495 = vmatprep.subr.mxu0 0.0
        %1496 = vmatpush2.msra.mxu0 0.0
        %1497 = vmatprep.mubr.f32.mxu0 0.0
        %v1498 = vand.u32 %v923, 4294901760
        %1499 = vmatmul.mubr.f32.gmra.mxu0 %v1498
        %v1500 = vpop.f32.mrf.mxu0
        %v1501 = vadd.f32 %v1410, %v1500
        %v1502 = vpop.f32.mrf.mxu0
        %1503 = vmatprep.mubr.f32.mxu0 0.0
        %v1504 = vand.u32 %v926, 4294901760
        %1505 = vmatmul.mubr.f32.gmra.mxu0 %v1504
        %v1506 = vpop.f32.mrf.mxu0
        %v1507 = vadd.f32 %v1416, %v1506
        %v1508 = vpop.f32.mrf.mxu0
        %1509 = vmatprep.mubr.f32.mxu0 0.0
        %v1510 = vand.u32 %v929, 4294901760
        %1511 = vmatmul.mubr.f32.gmra.mxu0 %v1510
        %v1512 = vpop.f32.mrf.mxu0
        %v1513 = vadd.f32 %v1422, %v1512
        %v1514 = vpop.f32.mrf.mxu0
        %1515 = vmatprep.mubr.f32.mxu0 0.0
        %v1516 = vand.u32 %v932, 4294901760
        %1517 = vmatmul.mubr.f32.gmra.mxu0 %v1516
        %v1518 = vpop.f32.mrf.mxu0
        %v1519 = vadd.f32 %v1428, %v1518
        %v1520 = vpop.f32.mrf.mxu0
        %1521 = vdwg.mxu0
        %vm1522 = vcmask 523264
        %1523 = vst.msk [vmem:[%s241] sm:$0xff] %vm1522, %v1501
        %1524 = vst.msk [vmem:[%s241 + $0x8] sm:$0xff] %vm1522, %v1507
        %1525 = vst.msk [vmem:[%s241 + $0x10] sm:$0xff] %vm1522, %v1513
        %1526 = vst.msk [vmem:[%s241 + $0x18] sm:$0xff] %vm1522, %v1519
        %s1527 = scalar_lea.vmem %s225, 8 [#allocation2]
        %v1528 = vld [vmem:[%s1527] sm:$0xff]
        %s1529 = scalar_lea.vmem %s225, 40 [#allocation2]
        %v1530 = vld [vmem:[%s1529] sm:$0xff]
        %s1531 = scalar_lea.vmem %s225, 72 [#allocation2]
        %v1532 = vld [vmem:[%s1531] sm:$0xff]
        %s1533 = scalar_lea.vmem %s225, 104 [#allocation2]
        %v1534 = vld [vmem:[%s1533] sm:$0xff]
        %1535 = vmatprep.subr.mxu0 0.0
        %1536 = vmatpush1.msra.mxu0 0.0
        %1537 = vmatprep.subr.mxu0 0.0
        %1538 = vmatpush1.msra.mxu0 0.0
        %1539 = vmatprep.subr.mxu0 0.0
        %1540 = vmatpush1.msra.mxu0 0.0
        %1541 = vmatprep.subr.mxu0 0.0
        %1542 = vmatpush1.msra.mxu0 0.0
        %1543 = vmatprep.subr.mxu0 0.0
        %1544 = vmatpush1.msra.mxu0 0.0
        %1545 = vmatprep.subr.mxu0 0.0
        %1546 = vmatpush1.msra.mxu0 0.0
        %1547 = vmatprep.subr.mxu0 0.0
        %1548 = vmatpush1.msra.mxu0 0.0
        %1549 = vmatprep.subr.mxu0 0.0
        %1550 = vmatpush1.msra.mxu0 0.0
        %1551 = vmatprep.subr.mxu0 0.0
        %1552 = vmatpush1.msra.mxu0 0.0
        %1553 = vmatprep.subr.mxu0 0.0
        %1554 = vmatpush1.msra.mxu0 0.0
        %1555 = vmatprep.subr.mxu0 0.0
        %1556 = vmatpush1.msra.mxu0 0.0
        %1557 = vmatprep.subr.mxu0 0.0
        %1558 = vmatpush1.msra.mxu0 0.0
        %1559 = vmatprep.subr.mxu0 0.0
        %v1560 = vand.u32 %v1534, 4294901760
        %1561 = vmatpush1.msra.mxu0 %v1560
        %1562 = vmatprep.subr.mxu0 0.0
        %v1563 = vand.u32 %v1532, 4294901760
        %1564 = vmatpush1.msra.mxu0 %v1563
        %1565 = vmatprep.subr.mxu0 0.0
        %v1566 = vand.u32 %v1530, 4294901760
        %1567 = vmatpush1.msra.mxu0 %v1566
        %1568 = vmatprep.subr.mxu0 0.0
        %v1569 = vand.u32 %v1528, 4294901760
        %1570 = vmatpush1.msra.mxu0 %v1569
        %1571 = vmatprep.subr.mxu0 0.0
        %1572 = vmatpush2.msra.mxu0 0.0
        %1573 = vmatprep.subr.mxu0 0.0
        %1574 = vmatpush2.msra.mxu0 0.0
        %1575 = vmatprep.subr.mxu0 0.0
        %1576 = vmatpush2.msra.mxu0 0.0
        %1577 = vmatprep.subr.mxu0 0.0
        %1578 = vmatpush2.msra.mxu0 0.0
        %1579 = vmatprep.subr.mxu0 0.0
        %1580 = vmatpush2.msra.mxu0 0.0
        %1581 = vmatprep.subr.mxu0 0.0
        %1582 = vmatpush2.msra.mxu0 0.0
        %1583 = vmatprep.subr.mxu0 0.0
        %1584 = vmatpush2.msra.mxu0 0.0
        %1585 = vmatprep.subr.mxu0 0.0
        %1586 = vmatpush2.msra.mxu0 0.0
        %1587 = vmatprep.subr.mxu0 0.0
        %1588 = vmatpush2.msra.mxu0 0.0
        %1589 = vmatprep.subr.mxu0 0.0
        %1590 = vmatpush2.msra.mxu0 0.0
        %1591 = vmatprep.subr.mxu0 0.0
        %1592 = vmatpush2.msra.mxu0 0.0
        %1593 = vmatprep.subr.mxu0 0.0
        %1594 = vmatpush2.msra.mxu0 0.0
        %1595 = vmatprep.subr.mxu0 0.0
        %1596 = vmatpush2.msra.mxu0 0.0
        %1597 = vmatprep.subr.mxu0 0.0
        %1598 = vmatpush2.msra.mxu0 0.0
        %1599 = vmatprep.subr.mxu0 0.0
        %1600 = vmatpush2.msra.mxu0 0.0
        %1601 = vmatprep.subr.mxu0 0.0
        %1602 = vmatpush2.msra.mxu0 0.0
        %1603 = vmatprep.mubr.f32.mxu0 0.0
        %v1604 = vand.u32 %v288, 4294901760
        %v1605 = vsub.f32 %v288, %v1604
        %v1606 = vand.u32 %v1605, 4294901760
        %v1607 = vsub.f32 %v1605, %v1606
        %v1608 = vand.u32 %v1607, 4294901760
        %1609 = vmatmul.mubr.f32.gmra.mxu0 %v1608
        %v1610 = vpop.f32.mrf.mxu0
        %v1611 = vadd.f32 0.0, %v1610
        %v1612 = vpop.f32.mrf.mxu0
        %1613 = vmatprep.mubr.f32.mxu0 0.0
        %v1614 = vand.u32 %v291, 4294901760
        %v1615 = vsub.f32 %v291, %v1614
        %v1616 = vand.u32 %v1615, 4294901760
        %v1617 = vsub.f32 %v1615, %v1616
        %v1618 = vand.u32 %v1617, 4294901760
        %1619 = vmatmul.mubr.f32.gmra.mxu0 %v1618
        %v1620 = vpop.f32.mrf.mxu0
        %v1621 = vadd.f32 0.0, %v1620
        %v1622 = vpop.f32.mrf.mxu0
        %1623 = vmatprep.mubr.f32.mxu0 0.0
        %v1624 = vand.u32 %v294, 4294901760
        %v1625 = vsub.f32 %v294, %v1624
        %v1626 = vand.u32 %v1625, 4294901760
        %v1627 = vsub.f32 %v1625, %v1626
        %v1628 = vand.u32 %v1627, 4294901760
        %1629 = vmatmul.mubr.f32.gmra.mxu0 %v1628
        %v1630 = vpop.f32.mrf.mxu0
        %v1631 = vadd.f32 0.0, %v1630
        %v1632 = vpop.f32.mrf.mxu0
        %1633 = vmatprep.mubr.f32.mxu0 0.0
        %v1634 = vand.u32 %v297, 4294901760
        %v1635 = vsub.f32 %v297, %v1634
        %v1636 = vand.u32 %v1635, 4294901760
        %v1637 = vsub.f32 %v1635, %v1636
        %v1638 = vand.u32 %v1637, 4294901760
        %1639 = vmatmul.mubr.f32.gmra.mxu0 %v1638
        %v1640 = vpop.f32.mrf.mxu0
        %v1641 = vadd.f32 0.0, %v1640
        %v1642 = vpop.f32.mrf.mxu0
        %1643 = vdwg.mxu0
        %1644 = vmatprep.subr.mxu0 0.0
        %1645 = vmatpush1.msra.mxu0 0.0
        %1646 = vmatprep.subr.mxu0 0.0
        %1647 = vmatpush1.msra.mxu0 0.0
        %1648 = vmatprep.subr.mxu0 0.0
        %1649 = vmatpush1.msra.mxu0 0.0
        %1650 = vmatprep.subr.mxu0 0.0
        %1651 = vmatpush1.msra.mxu0 0.0
        %1652 = vmatprep.subr.mxu0 0.0
        %1653 = vmatpush1.msra.mxu0 0.0
        %1654 = vmatprep.subr.mxu0 0.0
        %1655 = vmatpush1.msra.mxu0 0.0
        %1656 = vmatprep.subr.mxu0 0.0
        %1657 = vmatpush1.msra.mxu0 0.0
        %1658 = vmatprep.subr.mxu0 0.0
        %1659 = vmatpush1.msra.mxu0 0.0
        %1660 = vmatprep.subr.mxu0 0.0
        %1661 = vmatpush1.msra.mxu0 0.0
        %1662 = vmatprep.subr.mxu0 0.0
        %1663 = vmatpush1.msra.mxu0 0.0
        %1664 = vmatprep.subr.mxu0 0.0
        %1665 = vmatpush1.msra.mxu0 0.0
        %1666 = vmatprep.subr.mxu0 0.0
        %1667 = vmatpush1.msra.mxu0 0.0
        %1668 = vmatprep.subr.mxu0 0.0
        %v1669 = vand.u32 %v1534, 4294901760
        %v1670 = vsub.f32 %v1534, %v1669
        %v1671 = vand.u32 %v1670, 4294901760
        %v1672 = vsub.f32 %v1670, %v1671
        %v1673 = vand.u32 %v1672, 4294901760
        %1674 = vmatpush1.msra.mxu0 %v1673
        %1675 = vmatprep.subr.mxu0 0.0
        %v1676 = vand.u32 %v1532, 4294901760
        %v1677 = vsub.f32 %v1532, %v1676
        %v1678 = vand.u32 %v1677, 4294901760
        %v1679 = vsub.f32 %v1677, %v1678
        %v1680 = vand.u32 %v1679, 4294901760
        %1681 = vmatpush1.msra.mxu0 %v1680
        %1682 = vmatprep.subr.mxu0 0.0
        %v1683 = vand.u32 %v1530, 4294901760
        %v1684 = vsub.f32 %v1530, %v1683
        %v1685 = vand.u32 %v1684, 4294901760
        %v1686 = vsub.f32 %v1684, %v1685
        %v1687 = vand.u32 %v1686, 4294901760
        %1688 = vmatpush1.msra.mxu0 %v1687
        %1689 = vmatprep.subr.mxu0 0.0
        %v1690 = vand.u32 %v1528, 4294901760
        %v1691 = vsub.f32 %v1528, %v1690
        %v1692 = vand.u32 %v1691, 4294901760
        %v1693 = vsub.f32 %v1691, %v1692
        %v1694 = vand.u32 %v1693, 4294901760
        %1695 = vmatpush1.msra.mxu0 %v1694
        %1696 = vmatprep.subr.mxu0 0.0
        %1697 = vmatpush2.msra.mxu0 0.0
        %1698 = vmatprep.subr.mxu0 0.0
        %1699 = vmatpush2.msra.mxu0 0.0
        %1700 = vmatprep.subr.mxu0 0.0
        %1701 = vmatpush2.msra.mxu0 0.0
        %1702 = vmatprep.subr.mxu0 0.0
        %1703 = vmatpush2.msra.mxu0 0.0
        %1704 = vmatprep.subr.mxu0 0.0
        %1705 = vmatpush2.msra.mxu0 0.0
        %1706 = vmatprep.subr.mxu0 0.0
        %1707 = vmatpush2.msra.mxu0 0.0
        %1708 = vmatprep.subr.mxu0 0.0
        %1709 = vmatpush2.msra.mxu0 0.0
        %1710 = vmatprep.subr.mxu0 0.0
        %1711 = vmatpush2.msra.mxu0 0.0
        %1712 = vmatprep.subr.mxu0 0.0
        %1713 = vmatpush2.msra.mxu0 0.0
        %1714 = vmatprep.subr.mxu0 0.0
        %1715 = vmatpush2.msra.mxu0 0.0
        %1716 = vmatprep.subr.mxu0 0.0
        %1717 = vmatpush2.msra.mxu0 0.0
        %1718 = vmatprep.subr.mxu0 0.0
        %1719 = vmatpush2.msra.mxu0 0.0
        %1720 = vmatprep.subr.mxu0 0.0
        %1721 = vmatpush2.msra.mxu0 0.0
        %1722 = vmatprep.subr.mxu0 0.0
        %1723 = vmatpush2.msra.mxu0 0.0
        %1724 = vmatprep.subr.mxu0 0.0
        %1725 = vmatpush2.msra.mxu0 0.0
        %1726 = vmatprep.subr.mxu0 0.0
        %1727 = vmatpush2.msra.mxu0 0.0
        %1728 = vmatprep.mubr.f32.mxu0 0.0
        %v1729 = vand.u32 %v288, 4294901760
        %1730 = vmatmul.mubr.f32.gmra.mxu0 %v1729
        %v1731 = vpop.f32.mrf.mxu0
        %v1732 = vadd.f32 %v1611, %v1731
        %v1733 = vpop.f32.mrf.mxu0
        %1734 = vmatprep.mubr.f32.mxu0 0.0
        %v1735 = vand.u32 %v291, 4294901760
        %1736 = vmatmul.mubr.f32.gmra.mxu0 %v1735
        %v1737 = vpop.f32.mrf.mxu0
        %v1738 = vadd.f32 %v1621, %v1737
        %v1739 = vpop.f32.mrf.mxu0
        %1740 = vmatprep.mubr.f32.mxu0 0.0
        %v1741 = vand.u32 %v294, 4294901760
        %1742 = vmatmul.mubr.f32.gmra.mxu0 %v1741
        %v1743 = vpop.f32.mrf.mxu0
        %v1744 = vadd.f32 %v1631, %v1743
        %v1745 = vpop.f32.mrf.mxu0
        %1746 = vmatprep.mubr.f32.mxu0 0.0
        %v1747 = vand.u32 %v297, 4294901760
        %1748 = vmatmul.mubr.f32.gmra.mxu0 %v1747
        %v1749 = vpop.f32.mrf.mxu0
        %v1750 = vadd.f32 %v1641, %v1749
        %v1751 = vpop.f32.mrf.mxu0
        %1752 = vdwg.mxu0
        %1753 = vmatprep.subr.mxu0 0.0
        %1754 = vmatpush1.msra.mxu0 0.0
        %1755 = vmatprep.subr.mxu0 0.0
        %1756 = vmatpush1.msra.mxu0 0.0
        %1757 = vmatprep.subr.mxu0 0.0
        %1758 = vmatpush1.msra.mxu0 0.0
        %1759 = vmatprep.subr.mxu0 0.0
        %1760 = vmatpush1.msra.mxu0 0.0
        %1761 = vmatprep.subr.mxu0 0.0
        %1762 = vmatpush1.msra.mxu0 0.0
        %1763 = vmatprep.subr.mxu0 0.0
        %1764 = vmatpush1.msra.mxu0 0.0
        %1765 = vmatprep.subr.mxu0 0.0
        %1766 = vmatpush1.msra.mxu0 0.0
        %1767 = vmatprep.subr.mxu0 0.0
        %1768 = vmatpush1.msra.mxu0 0.0
        %1769 = vmatprep.subr.mxu0 0.0
        %1770 = vmatpush1.msra.mxu0 0.0
        %1771 = vmatprep.subr.mxu0 0.0
        %1772 = vmatpush1.msra.mxu0 0.0
        %1773 = vmatprep.subr.mxu0 0.0
        %1774 = vmatpush1.msra.mxu0 0.0
        %1775 = vmatprep.subr.mxu0 0.0
        %1776 = vmatpush1.msra.mxu0 0.0
        %1777 = vmatprep.subr.mxu0 0.0
        %v1778 = vand.u32 %v1534, 4294901760
        %v1779 = vsub.f32 %v1534, %v1778
        %1780 = vmatpush1.msra.mxu0 %v1779
        %1781 = vmatprep.subr.mxu0 0.0
        %v1782 = vand.u32 %v1532, 4294901760
        %v1783 = vsub.f32 %v1532, %v1782
        %1784 = vmatpush1.msra.mxu0 %v1783
        %1785 = vmatprep.subr.mxu0 0.0
        %v1786 = vand.u32 %v1530, 4294901760
        %v1787 = vsub.f32 %v1530, %v1786
        %1788 = vmatpush1.msra.mxu0 %v1787
        %1789 = vmatprep.subr.mxu0 0.0
        %v1790 = vand.u32 %v1528, 4294901760
        %v1791 = vsub.f32 %v1528, %v1790
        %1792 = vmatpush1.msra.mxu0 %v1791
        %1793 = vmatprep.subr.mxu0 0.0
        %1794 = vmatpush2.msra.mxu0 0.0
        %1795 = vmatprep.subr.mxu0 0.0
        %1796 = vmatpush2.msra.mxu0 0.0
        %1797 = vmatprep.subr.mxu0 0.0
        %1798 = vmatpush2.msra.mxu0 0.0
        %1799 = vmatprep.subr.mxu0 0.0
        %1800 = vmatpush2.msra.mxu0 0.0
        %1801 = vmatprep.subr.mxu0 0.0
        %1802 = vmatpush2.msra.mxu0 0.0
        %1803 = vmatprep.subr.mxu0 0.0
        %1804 = vmatpush2.msra.mxu0 0.0
        %1805 = vmatprep.subr.mxu0 0.0
        %1806 = vmatpush2.msra.mxu0 0.0
        %1807 = vmatprep.subr.mxu0 0.0
        %1808 = vmatpush2.msra.mxu0 0.0
        %1809 = vmatprep.subr.mxu0 0.0
        %1810 = vmatpush2.msra.mxu0 0.0
        %1811 = vmatprep.subr.mxu0 0.0
        %1812 = vmatpush2.msra.mxu0 0.0
        %1813 = vmatprep.subr.mxu0 0.0
        %1814 = vmatpush2.msra.mxu0 0.0
        %1815 = vmatprep.subr.mxu0 0.0
        %1816 = vmatpush2.msra.mxu0 0.0
        %1817 = vmatprep.subr.mxu0 0.0
        %1818 = vmatpush2.msra.mxu0 0.0
        %1819 = vmatprep.subr.mxu0 0.0
        %1820 = vmatpush2.msra.mxu0 0.0
        %1821 = vmatprep.subr.mxu0 0.0
        %1822 = vmatpush2.msra.mxu0 0.0
        %1823 = vmatprep.subr.mxu0 0.0
        %1824 = vmatpush2.msra.mxu0 0.0
        %1825 = vmatprep.mubr.f32.mxu0 0.0
        %v1826 = vand.u32 %v288, 4294901760
        %v1827 = vsub.f32 %v288, %v1826
        %1828 = vmatmul.mubr.f32.gmra.mxu0 %v1827
        %v1829 = vpop.f32.mrf.mxu0
        %v1830 = vadd.f32 %v1732, %v1829
        %v1831 = vpop.f32.mrf.mxu0
        %1832 = vmatprep.mubr.f32.mxu0 0.0
        %v1833 = vand.u32 %v291, 4294901760
        %v1834 = vsub.f32 %v291, %v1833
        %1835 = vmatmul.mubr.f32.gmra.mxu0 %v1834
        %v1836 = vpop.f32.mrf.mxu0
        %v1837 = vadd.f32 %v1738, %v1836
        %v1838 = vpop.f32.mrf.mxu0
        %1839 = vmatprep.mubr.f32.mxu0 0.0
        %v1840 = vand.u32 %v294, 4294901760
        %v1841 = vsub.f32 %v294, %v1840
        %1842 = vmatmul.mubr.f32.gmra.mxu0 %v1841
        %v1843 = vpop.f32.mrf.mxu0
        %v1844 = vadd.f32 %v1744, %v1843
        %v1845 = vpop.f32.mrf.mxu0
        %1846 = vmatprep.mubr.f32.mxu0 0.0
        %v1847 = vand.u32 %v297, 4294901760
        %v1848 = vsub.f32 %v297, %v1847
        %1849 = vmatmul.mubr.f32.gmra.mxu0 %v1848
        %v1850 = vpop.f32.mrf.mxu0
        %v1851 = vadd.f32 %v1750, %v1850
        %v1852 = vpop.f32.mrf.mxu0
        %1853 = vdwg.mxu0
        %1854 = vmatprep.subr.mxu0 0.0
        %1855 = vmatpush1.msra.mxu0 0.0
        %1856 = vmatprep.subr.mxu0 0.0
        %1857 = vmatpush1.msra.mxu0 0.0
        %1858 = vmatprep.subr.mxu0 0.0
        %1859 = vmatpush1.msra.mxu0 0.0
        %1860 = vmatprep.subr.mxu0 0.0
        %1861 = vmatpush1.msra.mxu0 0.0
        %1862 = vmatprep.subr.mxu0 0.0
        %1863 = vmatpush1.msra.mxu0 0.0
        %1864 = vmatprep.subr.mxu0 0.0
        %1865 = vmatpush1.msra.mxu0 0.0
        %1866 = vmatprep.subr.mxu0 0.0
        %1867 = vmatpush1.msra.mxu0 0.0
        %1868 = vmatprep.subr.mxu0 0.0
        %1869 = vmatpush1.msra.mxu0 0.0
        %1870 = vmatprep.subr.mxu0 0.0
        %1871 = vmatpush1.msra.mxu0 0.0
        %1872 = vmatprep.subr.mxu0 0.0
        %1873 = vmatpush1.msra.mxu0 0.0
        %1874 = vmatprep.subr.mxu0 0.0
        %1875 = vmatpush1.msra.mxu0 0.0
        %1876 = vmatprep.subr.mxu0 0.0
        %1877 = vmatpush1.msra.mxu0 0.0
        %1878 = vmatprep.subr.mxu0 0.0
        %v1879 = vand.u32 %v1534, 4294901760
        %1880 = vmatpush1.msra.mxu0 %v1879
        %1881 = vmatprep.subr.mxu0 0.0
        %v1882 = vand.u32 %v1532, 4294901760
        %1883 = vmatpush1.msra.mxu0 %v1882
        %1884 = vmatprep.subr.mxu0 0.0
        %v1885 = vand.u32 %v1530, 4294901760
        %1886 = vmatpush1.msra.mxu0 %v1885
        %1887 = vmatprep.subr.mxu0 0.0
        %v1888 = vand.u32 %v1528, 4294901760
        %1889 = vmatpush1.msra.mxu0 %v1888
        %1890 = vmatprep.subr.mxu0 0.0
        %1891 = vmatpush2.msra.mxu0 0.0
        %1892 = vmatprep.subr.mxu0 0.0
        %1893 = vmatpush2.msra.mxu0 0.0
        %1894 = vmatprep.subr.mxu0 0.0
        %1895 = vmatpush2.msra.mxu0 0.0
        %1896 = vmatprep.subr.mxu0 0.0
        %1897 = vmatpush2.msra.mxu0 0.0
        %1898 = vmatprep.subr.mxu0 0.0
        %1899 = vmatpush2.msra.mxu0 0.0
        %1900 = vmatprep.subr.mxu0 0.0
        %1901 = vmatpush2.msra.mxu0 0.0
        %1902 = vmatprep.subr.mxu0 0.0
        %1903 = vmatpush2.msra.mxu0 0.0
        %1904 = vmatprep.subr.mxu0 0.0
        %1905 = vmatpush2.msra.mxu0 0.0
        %1906 = vmatprep.subr.mxu0 0.0
        %1907 = vmatpush2.msra.mxu0 0.0
        %1908 = vmatprep.subr.mxu0 0.0
        %1909 = vmatpush2.msra.mxu0 0.0
        %1910 = vmatprep.subr.mxu0 0.0
        %1911 = vmatpush2.msra.mxu0 0.0
        %1912 = vmatprep.subr.mxu0 0.0
        %1913 = vmatpush2.msra.mxu0 0.0
        %1914 = vmatprep.subr.mxu0 0.0
        %1915 = vmatpush2.msra.mxu0 0.0
        %1916 = vmatprep.subr.mxu0 0.0
        %1917 = vmatpush2.msra.mxu0 0.0
        %1918 = vmatprep.subr.mxu0 0.0
        %1919 = vmatpush2.msra.mxu0 0.0
        %1920 = vmatprep.subr.mxu0 0.0
        %1921 = vmatpush2.msra.mxu0 0.0
        %1922 = vmatprep.mubr.f32.mxu0 0.0
        %v1923 = vand.u32 %v288, 4294901760
        %v1924 = vsub.f32 %v288, %v1923
        %v1925 = vand.u32 %v1924, 4294901760
        %1926 = vmatmul.mubr.f32.gmra.mxu0 %v1925
        %v1927 = vpop.f32.mrf.mxu0
        %v1928 = vadd.f32 %v1830, %v1927
        %v1929 = vpop.f32.mrf.mxu0
        %1930 = vmatprep.mubr.f32.mxu0 0.0
        %v1931 = vand.u32 %v291, 4294901760
        %v1932 = vsub.f32 %v291, %v1931
        %v1933 = vand.u32 %v1932, 4294901760
        %1934 = vmatmul.mubr.f32.gmra.mxu0 %v1933
        %v1935 = vpop.f32.mrf.mxu0
        %v1936 = vadd.f32 %v1837, %v1935
        %v1937 = vpop.f32.mrf.mxu0
        %1938 = vmatprep.mubr.f32.mxu0 0.0
        %v1939 = vand.u32 %v294, 4294901760
        %v1940 = vsub.f32 %v294, %v1939
        %v1941 = vand.u32 %v1940, 4294901760
        %1942 = vmatmul.mubr.f32.gmra.mxu0 %v1941
        %v1943 = vpop.f32.mrf.mxu0
        %v1944 = vadd.f32 %v1844, %v1943
        %v1945 = vpop.f32.mrf.mxu0
        %1946 = vmatprep.mubr.f32.mxu0 0.0
        %v1947 = vand.u32 %v297, 4294901760
        %v1948 = vsub.f32 %v297, %v1947
        %v1949 = vand.u32 %v1948, 4294901760
        %1950 = vmatmul.mubr.f32.gmra.mxu0 %v1949
        %v1951 = vpop.f32.mrf.mxu0
        %v1952 = vadd.f32 %v1851, %v1951
        %v1953 = vpop.f32.mrf.mxu0
        %1954 = vdwg.mxu0
        %1955 = vmatprep.subr.mxu0 0.0
        %1956 = vmatpush1.msra.mxu0 0.0
        %1957 = vmatprep.subr.mxu0 0.0
        %1958 = vmatpush1.msra.mxu0 0.0
        %1959 = vmatprep.subr.mxu0 0.0
        %1960 = vmatpush1.msra.mxu0 0.0
        %1961 = vmatprep.subr.mxu0 0.0
        %1962 = vmatpush1.msra.mxu0 0.0
        %1963 = vmatprep.subr.mxu0 0.0
        %1964 = vmatpush1.msra.mxu0 0.0
        %1965 = vmatprep.subr.mxu0 0.0
        %1966 = vmatpush1.msra.mxu0 0.0
        %1967 = vmatprep.subr.mxu0 0.0
        %1968 = vmatpush1.msra.mxu0 0.0
        %1969 = vmatprep.subr.mxu0 0.0
        %1970 = vmatpush1.msra.mxu0 0.0
        %1971 = vmatprep.subr.mxu0 0.0
        %1972 = vmatpush1.msra.mxu0 0.0
        %1973 = vmatprep.subr.mxu0 0.0
        %1974 = vmatpush1.msra.mxu0 0.0
        %1975 = vmatprep.subr.mxu0 0.0
        %1976 = vmatpush1.msra.mxu0 0.0
        %1977 = vmatprep.subr.mxu0 0.0
        %1978 = vmatpush1.msra.mxu0 0.0
        %1979 = vmatprep.subr.mxu0 0.0
        %v1980 = vand.u32 %v1534, 4294901760
        %v1981 = vsub.f32 %v1534, %v1980
        %v1982 = vand.u32 %v1981, 4294901760
        %1983 = vmatpush1.msra.mxu0 %v1982
        %1984 = vmatprep.subr.mxu0 0.0
        %v1985 = vand.u32 %v1532, 4294901760
        %v1986 = vsub.f32 %v1532, %v1985
        %v1987 = vand.u32 %v1986, 4294901760
        %1988 = vmatpush1.msra.mxu0 %v1987
        %1989 = vmatprep.subr.mxu0 0.0
        %v1990 = vand.u32 %v1530, 4294901760
        %v1991 = vsub.f32 %v1530, %v1990
        %v1992 = vand.u32 %v1991, 4294901760
        %1993 = vmatpush1.msra.mxu0 %v1992
        %1994 = vmatprep.subr.mxu0 0.0
        %v1995 = vand.u32 %v1528, 4294901760
        %v1996 = vsub.f32 %v1528, %v1995
        %v1997 = vand.u32 %v1996, 4294901760
        %1998 = vmatpush1.msra.mxu0 %v1997
        %1999 = vmatprep.subr.mxu0 0.0
        %2000 = vmatpush2.msra.mxu0 0.0
        %2001 = vmatprep.subr.mxu0 0.0
        %2002 = vmatpush2.msra.mxu0 0.0
        %2003 = vmatprep.subr.mxu0 0.0
        %2004 = vmatpush2.msra.mxu0 0.0
        %2005 = vmatprep.subr.mxu0 0.0
        %2006 = vmatpush2.msra.mxu0 0.0
        %2007 = vmatprep.subr.mxu0 0.0
        %2008 = vmatpush2.msra.mxu0 0.0
        %2009 = vmatprep.subr.mxu0 0.0
        %2010 = vmatpush2.msra.mxu0 0.0
        %2011 = vmatprep.subr.mxu0 0.0
        %2012 = vmatpush2.msra.mxu0 0.0
        %2013 = vmatprep.subr.mxu0 0.0
        %2014 = vmatpush2.msra.mxu0 0.0
        %2015 = vmatprep.subr.mxu0 0.0
        %2016 = vmatpush2.msra.mxu0 0.0
        %2017 = vmatprep.subr.mxu0 0.0
        %2018 = vmatpush2.msra.mxu0 0.0
        %2019 = vmatprep.subr.mxu0 0.0
        %2020 = vmatpush2.msra.mxu0 0.0
        %2021 = vmatprep.subr.mxu0 0.0
        %2022 = vmatpush2.msra.mxu0 0.0
        %2023 = vmatprep.subr.mxu0 0.0
        %2024 = vmatpush2.msra.mxu0 0.0
        %2025 = vmatprep.subr.mxu0 0.0
        %2026 = vmatpush2.msra.mxu0 0.0
        %2027 = vmatprep.subr.mxu0 0.0
        %2028 = vmatpush2.msra.mxu0 0.0
        %2029 = vmatprep.subr.mxu0 0.0
        %2030 = vmatpush2.msra.mxu0 0.0
        %2031 = vmatprep.mubr.f32.mxu0 0.0
        %v2032 = vand.u32 %v288, 4294901760
        %2033 = vmatmul.mubr.f32.gmra.mxu0 %v2032
        %v2034 = vpop.f32.mrf.mxu0
        %v2035 = vadd.f32 %v1928, %v2034
        %v2036 = vpop.f32.mrf.mxu0
        %2037 = vmatprep.mubr.f32.mxu0 0.0
        %v2038 = vand.u32 %v291, 4294901760
        %2039 = vmatmul.mubr.f32.gmra.mxu0 %v2038
        %v2040 = vpop.f32.mrf.mxu0
        %v2041 = vadd.f32 %v1936, %v2040
        %v2042 = vpop.f32.mrf.mxu0
        %2043 = vmatprep.mubr.f32.mxu0 0.0
        %v2044 = vand.u32 %v294, 4294901760
        %2045 = vmatmul.mubr.f32.gmra.mxu0 %v2044
        %v2046 = vpop.f32.mrf.mxu0
        %v2047 = vadd.f32 %v1944, %v2046
        %v2048 = vpop.f32.mrf.mxu0
        %2049 = vmatprep.mubr.f32.mxu0 0.0
        %v2050 = vand.u32 %v297, 4294901760
        %2051 = vmatmul.mubr.f32.gmra.mxu0 %v2050
        %v2052 = vpop.f32.mrf.mxu0
        %v2053 = vadd.f32 %v1952, %v2052
        %v2054 = vpop.f32.mrf.mxu0
        %2055 = vdwg.mxu0
        %2056 = vmatprep.subr.mxu0 0.0
        %2057 = vmatpush1.msra.mxu0 0.0
        %2058 = vmatprep.subr.mxu0 0.0
        %2059 = vmatpush1.msra.mxu0 0.0
        %2060 = vmatprep.subr.mxu0 0.0
        %2061 = vmatpush1.msra.mxu0 0.0
        %2062 = vmatprep.subr.mxu0 0.0
        %2063 = vmatpush1.msra.mxu0 0.0
        %2064 = vmatprep.subr.mxu0 0.0
        %2065 = vmatpush1.msra.mxu0 0.0
        %2066 = vmatprep.subr.mxu0 0.0
        %2067 = vmatpush1.msra.mxu0 0.0
        %2068 = vmatprep.subr.mxu0 0.0
        %2069 = vmatpush1.msra.mxu0 0.0
        %2070 = vmatprep.subr.mxu0 0.0
        %2071 = vmatpush1.msra.mxu0 0.0
        %2072 = vmatprep.subr.mxu0 0.0
        %2073 = vmatpush1.msra.mxu0 0.0
        %2074 = vmatprep.subr.mxu0 0.0
        %2075 = vmatpush1.msra.mxu0 0.0
        %2076 = vmatprep.subr.mxu0 0.0
        %2077 = vmatpush1.msra.mxu0 0.0
        %2078 = vmatprep.subr.mxu0 0.0
        %2079 = vmatpush1.msra.mxu0 0.0
        %2080 = vmatprep.subr.mxu0 0.0
        %v2081 = vand.u32 %v1534, 4294901760
        %2082 = vmatpush1.msra.mxu0 %v2081
        %2083 = vmatprep.subr.mxu0 0.0
        %v2084 = vand.u32 %v1532, 4294901760
        %2085 = vmatpush1.msra.mxu0 %v2084
        %2086 = vmatprep.subr.mxu0 0.0
        %v2087 = vand.u32 %v1530, 4294901760
        %2088 = vmatpush1.msra.mxu0 %v2087
        %2089 = vmatprep.subr.mxu0 0.0
        %v2090 = vand.u32 %v1528, 4294901760
        %2091 = vmatpush1.msra.mxu0 %v2090
        %2092 = vmatprep.subr.mxu0 0.0
        %2093 = vmatpush2.msra.mxu0 0.0
        %2094 = vmatprep.subr.mxu0 0.0
        %2095 = vmatpush2.msra.mxu0 0.0
        %2096 = vmatprep.subr.mxu0 0.0
        %2097 = vmatpush2.msra.mxu0 0.0
        %2098 = vmatprep.subr.mxu0 0.0
        %2099 = vmatpush2.msra.mxu0 0.0
        %2100 = vmatprep.subr.mxu0 0.0
        %2101 = vmatpush2.msra.mxu0 0.0
        %2102 = vmatprep.subr.mxu0 0.0
        %2103 = vmatpush2.msra.mxu0 0.0
        %2104 = vmatprep.subr.mxu0 0.0
        %2105 = vmatpush2.msra.mxu0 0.0
        %2106 = vmatprep.subr.mxu0 0.0
        %2107 = vmatpush2.msra.mxu0 0.0
        %2108 = vmatprep.subr.mxu0 0.0
        %2109 = vmatpush2.msra.mxu0 0.0
        %2110 = vmatprep.subr.mxu0 0.0
        %2111 = vmatpush2.msra.mxu0 0.0
        %2112 = vmatprep.subr.mxu0 0.0
        %2113 = vmatpush2.msra.mxu0 0.0
        %2114 = vmatprep.subr.mxu0 0.0
        %2115 = vmatpush2.msra.mxu0 0.0
        %2116 = vmatprep.subr.mxu0 0.0
        %2117 = vmatpush2.msra.mxu0 0.0
        %2118 = vmatprep.subr.mxu0 0.0
        %2119 = vmatpush2.msra.mxu0 0.0
        %2120 = vmatprep.subr.mxu0 0.0
        %2121 = vmatpush2.msra.mxu0 0.0
        %2122 = vmatprep.subr.mxu0 0.0
        %2123 = vmatpush2.msra.mxu0 0.0
        %2124 = vmatprep.mubr.f32.mxu0 0.0
        %v2125 = vand.u32 %v288, 4294901760
        %2126 = vmatmul.mubr.f32.gmra.mxu0 %v2125
        %v2127 = vpop.f32.mrf.mxu0
        %v2128 = vadd.f32 %v2035, %v2127
        %v2129 = vpop.f32.mrf.mxu0
        %2130 = vmatprep.mubr.f32.mxu0 0.0
        %v2131 = vand.u32 %v291, 4294901760
        %2132 = vmatmul.mubr.f32.gmra.mxu0 %v2131
        %v2133 = vpop.f32.mrf.mxu0
        %v2134 = vadd.f32 %v2041, %v2133
        %v2135 = vpop.f32.mrf.mxu0
        %2136 = vmatprep.mubr.f32.mxu0 0.0
        %v2137 = vand.u32 %v294, 4294901760
        %2138 = vmatmul.mubr.f32.gmra.mxu0 %v2137
        %v2139 = vpop.f32.mrf.mxu0
        %v2140 = vadd.f32 %v2047, %v2139
        %v2141 = vpop.f32.mrf.mxu0
        %2142 = vmatprep.mubr.f32.mxu0 0.0
        %v2143 = vand.u32 %v297, 4294901760
        %2144 = vmatmul.mubr.f32.gmra.mxu0 %v2143
        %v2145 = vpop.f32.mrf.mxu0
        %v2146 = vadd.f32 %v2053, %v2145
        %v2147 = vpop.f32.mrf.mxu0
        %2148 = vdwg.mxu0
        %v2149 = vadd.s32 %v913, 1
        %v2150 = vadd.s32 %v914, 1
        %vm2151 = vcmp.eq.s32.totalorder %v250, %v2149
        %vm2152 = vcmp.eq.s32.totalorder %v250, %v2150
        %v2153 = vsel %vm2151, 1, 0
        %v2154 = vsel %vm2152, 1, 0
        %v2155 = vcvt.s32.f32 %v2153
        %v2156 = vcvt.s32.f32 %v2154
        %v2158 = vsel %vm921, %v2128, 0
        %v2161 = vsel %vm921, %v2134, 0
        %v2164 = vsel %vm921, %v2140, 0
        %v2167 = vsel %vm921, %v2146, 0
        %2169 = vmatprep.subr.mxu0 0.0
        %2170 = vmatpush1.msra.mxu0 0.0
        %2171 = vmatprep.subr.mxu0 0.0
        %2172 = vmatpush1.msra.mxu0 0.0
        %2173 = vmatprep.subr.mxu0 0.0
        %2174 = vmatpush1.msra.mxu0 0.0
        %2175 = vmatprep.subr.mxu0 0.0
        %2176 = vmatpush1.msra.mxu0 0.0
        %2177 = vmatprep.subr.mxu0 0.0
        %2178 = vmatpush1.msra.mxu0 0.0
        %2179 = vmatprep.subr.mxu0 0.0
        %2180 = vmatpush1.msra.mxu0 0.0
        %2181 = vmatprep.subr.mxu0 0.0
        %2182 = vmatpush1.msra.mxu0 0.0
        %2183 = vmatprep.subr.mxu0 0.0
        %2184 = vmatpush1.msra.mxu0 0.0
        %2185 = vmatprep.subr.mxu0 0.0
        %2186 = vmatpush1.msra.mxu0 0.0
        %2187 = vmatprep.subr.mxu0 0.0
        %2188 = vmatpush1.msra.mxu0 0.0
        %2189 = vmatprep.subr.mxu0 0.0
        %2190 = vmatpush1.msra.mxu0 0.0
        %2191 = vmatprep.subr.mxu0 0.0
        %2192 = vmatpush1.msra.mxu0 0.0
        %2193 = vmatprep.subr.mxu0 0.0
        %2194 = vmatpush1.msra.mxu0 0.0
        %2195 = vmatprep.subr.mxu0 0.0
        %2196 = vmatpush1.msra.mxu0 0.0
        %2197 = vmatprep.subr.mxu0 0.0
        %v2198 = vand.u32 %v2156, 4294901760
        %2199 = vmatpush1.msra.mxu0 %v2198
        %2200 = vmatprep.subr.mxu0 0.0
        %v2201 = vand.u32 %v2155, 4294901760
        %2202 = vmatpush1.msra.mxu0 %v2201
        %2203 = vmatprep.subr.mxu0 0.0
        %2204 = vmatpush2.msra.mxu0 0.0
        %2205 = vmatprep.subr.mxu0 0.0
        %2206 = vmatpush2.msra.mxu0 0.0
        %2207 = vmatprep.subr.mxu0 0.0
        %2208 = vmatpush2.msra.mxu0 0.0
        %2209 = vmatprep.subr.mxu0 0.0
        %2210 = vmatpush2.msra.mxu0 0.0
        %2211 = vmatprep.subr.mxu0 0.0
        %2212 = vmatpush2.msra.mxu0 0.0
        %2213 = vmatprep.subr.mxu0 0.0
        %2214 = vmatpush2.msra.mxu0 0.0
        %2215 = vmatprep.subr.mxu0 0.0
        %2216 = vmatpush2.msra.mxu0 0.0
        %2217 = vmatprep.subr.mxu0 0.0
        %2218 = vmatpush2.msra.mxu0 0.0
        %2219 = vmatprep.subr.mxu0 0.0
        %2220 = vmatpush2.msra.mxu0 0.0
        %2221 = vmatprep.subr.mxu0 0.0
        %2222 = vmatpush2.msra.mxu0 0.0
        %2223 = vmatprep.subr.mxu0 0.0
        %2224 = vmatpush2.msra.mxu0 0.0
        %2225 = vmatprep.subr.mxu0 0.0
        %2226 = vmatpush2.msra.mxu0 0.0
        %2227 = vmatprep.subr.mxu0 0.0
        %2228 = vmatpush2.msra.mxu0 0.0
        %2229 = vmatprep.subr.mxu0 0.0
        %2230 = vmatpush2.msra.mxu0 0.0
        %2231 = vmatprep.subr.mxu0 0.0
        %2232 = vmatpush2.msra.mxu0 0.0
        %2233 = vmatprep.subr.mxu0 0.0
        %2234 = vmatpush2.msra.mxu0 0.0
        %2235 = vmatprep.mubr.f32.mxu0 0.0
        %v2236 = vand.u32 %v2158, 4294901760
        %v2237 = vsub.f32 %v2158, %v2236
        %v2238 = vand.u32 %v2237, 4294901760
        %v2239 = vsub.f32 %v2237, %v2238
        %v2240 = vand.u32 %v2239, 4294901760
        %2241 = vmatmul.mubr.f32.gmra.mxu0 %v2240
        %v2242 = vpop.f32.mrf.mxu0
        %v2243 = vadd.f32 0.0, %v2242
        %v2244 = vpop.f32.mrf.mxu0
        %2245 = vmatprep.mubr.f32.mxu0 0.0
        %v2246 = vand.u32 %v2161, 4294901760
        %v2247 = vsub.f32 %v2161, %v2246
        %v2248 = vand.u32 %v2247, 4294901760
        %v2249 = vsub.f32 %v2247, %v2248
        %v2250 = vand.u32 %v2249, 4294901760
        %2251 = vmatmul.mubr.f32.gmra.mxu0 %v2250
        %v2252 = vpop.f32.mrf.mxu0
        %v2253 = vadd.f32 0.0, %v2252
        %v2254 = vpop.f32.mrf.mxu0
        %2255 = vmatprep.mubr.f32.mxu0 0.0
        %v2256 = vand.u32 %v2164, 4294901760
        %v2257 = vsub.f32 %v2164, %v2256
        %v2258 = vand.u32 %v2257, 4294901760
        %v2259 = vsub.f32 %v2257, %v2258
        %v2260 = vand.u32 %v2259, 4294901760
        %2261 = vmatmul.mubr.f32.gmra.mxu0 %v2260
        %v2262 = vpop.f32.mrf.mxu0
        %v2263 = vadd.f32 0.0, %v2262
        %v2264 = vpop.f32.mrf.mxu0
        %2265 = vmatprep.mubr.f32.mxu0 0.0
        %v2266 = vand.u32 %v2167, 4294901760
        %v2267 = vsub.f32 %v2167, %v2266
        %v2268 = vand.u32 %v2267, 4294901760
        %v2269 = vsub.f32 %v2267, %v2268
        %v2270 = vand.u32 %v2269, 4294901760
        %2271 = vmatmul.mubr.f32.gmra.mxu0 %v2270
        %v2272 = vpop.f32.mrf.mxu0
        %v2273 = vadd.f32 0.0, %v2272
        %v2274 = vpop.f32.mrf.mxu0
        %2275 = vdwg.mxu0
        %2276 = vmatprep.subr.mxu0 0.0
        %2277 = vmatpush1.msra.mxu0 0.0
        %2278 = vmatprep.subr.mxu0 0.0
        %2279 = vmatpush1.msra.mxu0 0.0
        %2280 = vmatprep.subr.mxu0 0.0
        %2281 = vmatpush1.msra.mxu0 0.0
        %2282 = vmatprep.subr.mxu0 0.0
        %2283 = vmatpush1.msra.mxu0 0.0
        %2284 = vmatprep.subr.mxu0 0.0
        %2285 = vmatpush1.msra.mxu0 0.0
        %2286 = vmatprep.subr.mxu0 0.0
        %2287 = vmatpush1.msra.mxu0 0.0
        %2288 = vmatprep.subr.mxu0 0.0
        %2289 = vmatpush1.msra.mxu0 0.0
        %2290 = vmatprep.subr.mxu0 0.0
        %2291 = vmatpush1.msra.mxu0 0.0
        %2292 = vmatprep.subr.mxu0 0.0
        %2293 = vmatpush1.msra.mxu0 0.0
        %2294 = vmatprep.subr.mxu0 0.0
        %2295 = vmatpush1.msra.mxu0 0.0
        %2296 = vmatprep.subr.mxu0 0.0
        %2297 = vmatpush1.msra.mxu0 0.0
        %2298 = vmatprep.subr.mxu0 0.0
        %2299 = vmatpush1.msra.mxu0 0.0
        %2300 = vmatprep.subr.mxu0 0.0
        %2301 = vmatpush1.msra.mxu0 0.0
        %2302 = vmatprep.subr.mxu0 0.0
        %2303 = vmatpush1.msra.mxu0 0.0
        %2304 = vmatprep.subr.mxu0 0.0
        %v2305 = vand.u32 %v2156, 4294901760
        %v2306 = vsub.f32 %v2156, %v2305
        %v2307 = vand.u32 %v2306, 4294901760
        %v2308 = vsub.f32 %v2306, %v2307
        %v2309 = vand.u32 %v2308, 4294901760
        %2310 = vmatpush1.msra.mxu0 %v2309
        %2311 = vmatprep.subr.mxu0 0.0
        %v2312 = vand.u32 %v2155, 4294901760
        %v2313 = vsub.f32 %v2155, %v2312
        %v2314 = vand.u32 %v2313, 4294901760
        %v2315 = vsub.f32 %v2313, %v2314
        %v2316 = vand.u32 %v2315, 4294901760
        %2317 = vmatpush1.msra.mxu0 %v2316
        %2318 = vmatprep.subr.mxu0 0.0
        %2319 = vmatpush2.msra.mxu0 0.0
        %2320 = vmatprep.subr.mxu0 0.0
        %2321 = vmatpush2.msra.mxu0 0.0
        %2322 = vmatprep.subr.mxu0 0.0
        %2323 = vmatpush2.msra.mxu0 0.0
        %2324 = vmatprep.subr.mxu0 0.0
        %2325 = vmatpush2.msra.mxu0 0.0
        %2326 = vmatprep.subr.mxu0 0.0
        %2327 = vmatpush2.msra.mxu0 0.0
        %2328 = vmatprep.subr.mxu0 0.0
        %2329 = vmatpush2.msra.mxu0 0.0
        %2330 = vmatprep.subr.mxu0 0.0
        %2331 = vmatpush2.msra.mxu0 0.0
        %2332 = vmatprep.subr.mxu0 0.0
        %2333 = vmatpush2.msra.mxu0 0.0
        %2334 = vmatprep.subr.mxu0 0.0
        %2335 = vmatpush2.msra.mxu0 0.0
        %2336 = vmatprep.subr.mxu0 0.0
        %2337 = vmatpush2.msra.mxu0 0.0
        %2338 = vmatprep.subr.mxu0 0.0
        %2339 = vmatpush2.msra.mxu0 0.0
        %2340 = vmatprep.subr.mxu0 0.0
        %2341 = vmatpush2.msra.mxu0 0.0
        %2342 = vmatprep.subr.mxu0 0.0
        %2343 = vmatpush2.msra.mxu0 0.0
        %2344 = vmatprep.subr.mxu0 0.0
        %2345 = vmatpush2.msra.mxu0 0.0
        %2346 = vmatprep.subr.mxu0 0.0
        %2347 = vmatpush2.msra.mxu0 0.0
        %2348 = vmatprep.subr.mxu0 0.0
        %2349 = vmatpush2.msra.mxu0 0.0
        %2350 = vmatprep.mubr.f32.mxu0 0.0
        %v2351 = vand.u32 %v2158, 4294901760
        %2352 = vmatmul.mubr.f32.gmra.mxu0 %v2351
        %v2353 = vpop.f32.mrf.mxu0
        %v2354 = vadd.f32 %v2243, %v2353
        %v2355 = vpop.f32.mrf.mxu0
        %2356 = vmatprep.mubr.f32.mxu0 0.0
        %v2357 = vand.u32 %v2161, 4294901760
        %2358 = vmatmul.mubr.f32.gmra.mxu0 %v2357
        %v2359 = vpop.f32.mrf.mxu0
        %v2360 = vadd.f32 %v2253, %v2359
        %v2361 = vpop.f32.mrf.mxu0
        %2362 = vmatprep.mubr.f32.mxu0 0.0
        %v2363 = vand.u32 %v2164, 4294901760
        %2364 = vmatmul.mubr.f32.gmra.mxu0 %v2363
        %v2365 = vpop.f32.mrf.mxu0
        %v2366 = vadd.f32 %v2263, %v2365
        %v2367 = vpop.f32.mrf.mxu0
        %2368 = vmatprep.mubr.f32.mxu0 0.0
        %v2369 = vand.u32 %v2167, 4294901760
        %2370 = vmatmul.mubr.f32.gmra.mxu0 %v2369
        %v2371 = vpop.f32.mrf.mxu0
        %v2372 = vadd.f32 %v2273, %v2371
        %v2373 = vpop.f32.mrf.mxu0
        %2374 = vdwg.mxu0
        %2375 = vmatprep.subr.mxu0 0.0
        %2376 = vmatpush1.msra.mxu0 0.0
        %2377 = vmatprep.subr.mxu0 0.0
        %2378 = vmatpush1.msra.mxu0 0.0
        %2379 = vmatprep.subr.mxu0 0.0
        %2380 = vmatpush1.msra.mxu0 0.0
        %2381 = vmatprep.subr.mxu0 0.0
        %2382 = vmatpush1.msra.mxu0 0.0
        %2383 = vmatprep.subr.mxu0 0.0
        %2384 = vmatpush1.msra.mxu0 0.0
        %2385 = vmatprep.subr.mxu0 0.0
        %2386 = vmatpush1.msra.mxu0 0.0
        %2387 = vmatprep.subr.mxu0 0.0
        %2388 = vmatpush1.msra.mxu0 0.0
        %2389 = vmatprep.subr.mxu0 0.0
        %2390 = vmatpush1.msra.mxu0 0.0
        %2391 = vmatprep.subr.mxu0 0.0
        %2392 = vmatpush1.msra.mxu0 0.0
        %2393 = vmatprep.subr.mxu0 0.0
        %2394 = vmatpush1.msra.mxu0 0.0
        %2395 = vmatprep.subr.mxu0 0.0
        %2396 = vmatpush1.msra.mxu0 0.0
        %2397 = vmatprep.subr.mxu0 0.0
        %2398 = vmatpush1.msra.mxu0 0.0
        %2399 = vmatprep.subr.mxu0 0.0
        %2400 = vmatpush1.msra.mxu0 0.0
        %2401 = vmatprep.subr.mxu0 0.0
        %2402 = vmatpush1.msra.mxu0 0.0
        %2403 = vmatprep.subr.mxu0 0.0
        %v2404 = vand.u32 %v2156, 4294901760
        %v2405 = vsub.f32 %v2156, %v2404
        %2406 = vmatpush1.msra.mxu0 %v2405
        %2407 = vmatprep.subr.mxu0 0.0
        %v2408 = vand.u32 %v2155, 4294901760
        %v2409 = vsub.f32 %v2155, %v2408
        %2410 = vmatpush1.msra.mxu0 %v2409
        %2411 = vmatprep.subr.mxu0 0.0
        %2412 = vmatpush2.msra.mxu0 0.0
        %2413 = vmatprep.subr.mxu0 0.0
        %2414 = vmatpush2.msra.mxu0 0.0
        %2415 = vmatprep.subr.mxu0 0.0
        %2416 = vmatpush2.msra.mxu0 0.0
        %2417 = vmatprep.subr.mxu0 0.0
        %2418 = vmatpush2.msra.mxu0 0.0
        %2419 = vmatprep.subr.mxu0 0.0
        %2420 = vmatpush2.msra.mxu0 0.0
        %2421 = vmatprep.subr.mxu0 0.0
        %2422 = vmatpush2.msra.mxu0 0.0
        %2423 = vmatprep.subr.mxu0 0.0
        %2424 = vmatpush2.msra.mxu0 0.0
        %2425 = vmatprep.subr.mxu0 0.0
        %2426 = vmatpush2.msra.mxu0 0.0
        %2427 = vmatprep.subr.mxu0 0.0
        %2428 = vmatpush2.msra.mxu0 0.0
        %2429 = vmatprep.subr.mxu0 0.0
        %2430 = vmatpush2.msra.mxu0 0.0
        %2431 = vmatprep.subr.mxu0 0.0
        %2432 = vmatpush2.msra.mxu0 0.0
        %2433 = vmatprep.subr.mxu0 0.0
        %2434 = vmatpush2.msra.mxu0 0.0
        %2435 = vmatprep.subr.mxu0 0.0
        %2436 = vmatpush2.msra.mxu0 0.0
        %2437 = vmatprep.subr.mxu0 0.0
        %2438 = vmatpush2.msra.mxu0 0.0
        %2439 = vmatprep.subr.mxu0 0.0
        %2440 = vmatpush2.msra.mxu0 0.0
        %2441 = vmatprep.subr.mxu0 0.0
        %2442 = vmatpush2.msra.mxu0 0.0
        %2443 = vmatprep.mubr.f32.mxu0 0.0
        %v2444 = vand.u32 %v2158, 4294901760
        %v2445 = vsub.f32 %v2158, %v2444
        %2446 = vmatmul.mubr.f32.gmra.mxu0 %v2445
        %v2447 = vpop.f32.mrf.mxu0
        %v2448 = vadd.f32 %v2354, %v2447
        %v2449 = vpop.f32.mrf.mxu0
        %2450 = vmatprep.mubr.f32.mxu0 0.0
        %v2451 = vand.u32 %v2161, 4294901760
        %v2452 = vsub.f32 %v2161, %v2451
        %2453 = vmatmul.mubr.f32.gmra.mxu0 %v2452
        %v2454 = vpop.f32.mrf.mxu0
        %v2455 = vadd.f32 %v2360, %v2454
        %v2456 = vpop.f32.mrf.mxu0
        %2457 = vmatprep.mubr.f32.mxu0 0.0
        %v2458 = vand.u32 %v2164, 4294901760
        %v2459 = vsub.f32 %v2164, %v2458
        %2460 = vmatmul.mubr.f32.gmra.mxu0 %v2459
        %v2461 = vpop.f32.mrf.mxu0
        %v2462 = vadd.f32 %v2366, %v2461
        %v2463 = vpop.f32.mrf.mxu0
        %2464 = vmatprep.mubr.f32.mxu0 0.0
        %v2465 = vand.u32 %v2167, 4294901760
        %v2466 = vsub.f32 %v2167, %v2465
        %2467 = vmatmul.mubr.f32.gmra.mxu0 %v2466
        %v2468 = vpop.f32.mrf.mxu0
        %v2469 = vadd.f32 %v2372, %v2468
        %v2470 = vpop.f32.mrf.mxu0
        %2471 = vdwg.mxu0
        %2472 = vmatprep.subr.mxu0 0.0
        %2473 = vmatpush1.msra.mxu0 0.0
        %2474 = vmatprep.subr.mxu0 0.0
        %2475 = vmatpush1.msra.mxu0 0.0
        %2476 = vmatprep.subr.mxu0 0.0
        %2477 = vmatpush1.msra.mxu0 0.0
        %2478 = vmatprep.subr.mxu0 0.0
        %2479 = vmatpush1.msra.mxu0 0.0
        %2480 = vmatprep.subr.mxu0 0.0
        %2481 = vmatpush1.msra.mxu0 0.0
        %2482 = vmatprep.subr.mxu0 0.0
        %2483 = vmatpush1.msra.mxu0 0.0
        %2484 = vmatprep.subr.mxu0 0.0
        %2485 = vmatpush1.msra.mxu0 0.0
        %2486 = vmatprep.subr.mxu0 0.0
        %2487 = vmatpush1.msra.mxu0 0.0
        %2488 = vmatprep.subr.mxu0 0.0
        %2489 = vmatpush1.msra.mxu0 0.0
        %2490 = vmatprep.subr.mxu0 0.0
        %2491 = vmatpush1.msra.mxu0 0.0
        %2492 = vmatprep.subr.mxu0 0.0
        %2493 = vmatpush1.msra.mxu0 0.0
        %2494 = vmatprep.subr.mxu0 0.0
        %2495 = vmatpush1.msra.mxu0 0.0
        %2496 = vmatprep.subr.mxu0 0.0
        %2497 = vmatpush1.msra.mxu0 0.0
        %2498 = vmatprep.subr.mxu0 0.0
        %2499 = vmatpush1.msra.mxu0 0.0
        %2500 = vmatprep.subr.mxu0 0.0
        %v2501 = vand.u32 %v2156, 4294901760
        %2502 = vmatpush1.msra.mxu0 %v2501
        %2503 = vmatprep.subr.mxu0 0.0
        %v2504 = vand.u32 %v2155, 4294901760
        %2505 = vmatpush1.msra.mxu0 %v2504
        %2506 = vmatprep.subr.mxu0 0.0
        %2507 = vmatpush2.msra.mxu0 0.0
        %2508 = vmatprep.subr.mxu0 0.0
        %2509 = vmatpush2.msra.mxu0 0.0
        %2510 = vmatprep.subr.mxu0 0.0
        %2511 = vmatpush2.msra.mxu0 0.0
        %2512 = vmatprep.subr.mxu0 0.0
        %2513 = vmatpush2.msra.mxu0 0.0
        %2514 = vmatprep.subr.mxu0 0.0
        %2515 = vmatpush2.msra.mxu0 0.0
        %2516 = vmatprep.subr.mxu0 0.0
        %2517 = vmatpush2.msra.mxu0 0.0
        %2518 = vmatprep.subr.mxu0 0.0
        %2519 = vmatpush2.msra.mxu0 0.0
        %2520 = vmatprep.subr.mxu0 0.0
        %2521 = vmatpush2.msra.mxu0 0.0
        %2522 = vmatprep.subr.mxu0 0.0
        %2523 = vmatpush2.msra.mxu0 0.0
        %2524 = vmatprep.subr.mxu0 0.0
        %2525 = vmatpush2.msra.mxu0 0.0
        %2526 = vmatprep.subr.mxu0 0.0
        %2527 = vmatpush2.msra.mxu0 0.0
        %2528 = vmatprep.subr.mxu0 0.0
        %2529 = vmatpush2.msra.mxu0 0.0
        %2530 = vmatprep.subr.mxu0 0.0
        %2531 = vmatpush2.msra.mxu0 0.0
        %2532 = vmatprep.subr.mxu0 0.0
        %2533 = vmatpush2.msra.mxu0 0.0
        %2534 = vmatprep.subr.mxu0 0.0
        %2535 = vmatpush2.msra.mxu0 0.0
        %2536 = vmatprep.subr.mxu0 0.0
        %2537 = vmatpush2.msra.mxu0 0.0
        %2538 = vmatprep.mubr.f32.mxu0 0.0
        %v2539 = vand.u32 %v2158, 4294901760
        %v2540 = vsub.f32 %v2158, %v2539
        %v2541 = vand.u32 %v2540, 4294901760
        %2542 = vmatmul.mubr.f32.gmra.mxu0 %v2541
        %v2543 = vpop.f32.mrf.mxu0
        %v2544 = vadd.f32 %v2448, %v2543
        %v2545 = vpop.f32.mrf.mxu0
        %2546 = vmatprep.mubr.f32.mxu0 0.0
        %v2547 = vand.u32 %v2161, 4294901760
        %v2548 = vsub.f32 %v2161, %v2547
        %v2549 = vand.u32 %v2548, 4294901760
        %2550 = vmatmul.mubr.f32.gmra.mxu0 %v2549
        %v2551 = vpop.f32.mrf.mxu0
        %v2552 = vadd.f32 %v2455, %v2551
        %v2553 = vpop.f32.mrf.mxu0
        %2554 = vmatprep.mubr.f32.mxu0 0.0
        %v2555 = vand.u32 %v2164, 4294901760
        %v2556 = vsub.f32 %v2164, %v2555
        %v2557 = vand.u32 %v2556, 4294901760
        %2558 = vmatmul.mubr.f32.gmra.mxu0 %v2557
        %v2559 = vpop.f32.mrf.mxu0
        %v2560 = vadd.f32 %v2462, %v2559
        %v2561 = vpop.f32.mrf.mxu0
        %2562 = vmatprep.mubr.f32.mxu0 0.0
        %v2563 = vand.u32 %v2167, 4294901760
        %v2564 = vsub.f32 %v2167, %v2563
        %v2565 = vand.u32 %v2564, 4294901760
        %2566 = vmatmul.mubr.f32.gmra.mxu0 %v2565
        %v2567 = vpop.f32.mrf.mxu0
        %v2568 = vadd.f32 %v2469, %v2567
        %v2569 = vpop.f32.mrf.mxu0
        %2570 = vdwg.mxu0
        %2571 = vmatprep.subr.mxu0 0.0
        %2572 = vmatpush1.msra.mxu0 0.0
        %2573 = vmatprep.subr.mxu0 0.0
        %2574 = vmatpush1.msra.mxu0 0.0
        %2575 = vmatprep.subr.mxu0 0.0
        %2576 = vmatpush1.msra.mxu0 0.0
        %2577 = vmatprep.subr.mxu0 0.0
        %2578 = vmatpush1.msra.mxu0 0.0
        %2579 = vmatprep.subr.mxu0 0.0
        %2580 = vmatpush1.msra.mxu0 0.0
        %2581 = vmatprep.subr.mxu0 0.0
        %2582 = vmatpush1.msra.mxu0 0.0
        %2583 = vmatprep.subr.mxu0 0.0
        %2584 = vmatpush1.msra.mxu0 0.0
        %2585 = vmatprep.subr.mxu0 0.0
        %2586 = vmatpush1.msra.mxu0 0.0
        %2587 = vmatprep.subr.mxu0 0.0
        %2588 = vmatpush1.msra.mxu0 0.0
        %2589 = vmatprep.subr.mxu0 0.0
        %2590 = vmatpush1.msra.mxu0 0.0
        %2591 = vmatprep.subr.mxu0 0.0
        %2592 = vmatpush1.msra.mxu0 0.0
        %2593 = vmatprep.subr.mxu0 0.0
        %2594 = vmatpush1.msra.mxu0 0.0
        %2595 = vmatprep.subr.mxu0 0.0
        %2596 = vmatpush1.msra.mxu0 0.0
        %2597 = vmatprep.subr.mxu0 0.0
        %2598 = vmatpush1.msra.mxu0 0.0
        %2599 = vmatprep.subr.mxu0 0.0
        %v2600 = vand.u32 %v2156, 4294901760
        %v2601 = vsub.f32 %v2156, %v2600
        %v2602 = vand.u32 %v2601, 4294901760
        %2603 = vmatpush1.msra.mxu0 %v2602
        %2604 = vmatprep.subr.mxu0 0.0
        %v2605 = vand.u32 %v2155, 4294901760
        %v2606 = vsub.f32 %v2155, %v2605
        %v2607 = vand.u32 %v2606, 4294901760
        %2608 = vmatpush1.msra.mxu0 %v2607
        %2609 = vmatprep.subr.mxu0 0.0
        %2610 = vmatpush2.msra.mxu0 0.0
        %2611 = vmatprep.subr.mxu0 0.0
        %2612 = vmatpush2.msra.mxu0 0.0
        %2613 = vmatprep.subr.mxu0 0.0
        %2614 = vmatpush2.msra.mxu0 0.0
        %2615 = vmatprep.subr.mxu0 0.0
        %2616 = vmatpush2.msra.mxu0 0.0
        %2617 = vmatprep.subr.mxu0 0.0
        %2618 = vmatpush2.msra.mxu0 0.0
        %2619 = vmatprep.subr.mxu0 0.0
        %2620 = vmatpush2.msra.mxu0 0.0
        %2621 = vmatprep.subr.mxu0 0.0
        %2622 = vmatpush2.msra.mxu0 0.0
        %2623 = vmatprep.subr.mxu0 0.0
        %2624 = vmatpush2.msra.mxu0 0.0
        %2625 = vmatprep.subr.mxu0 0.0
        %2626 = vmatpush2.msra.mxu0 0.0
        %2627 = vmatprep.subr.mxu0 0.0
        %2628 = vmatpush2.msra.mxu0 0.0
        %2629 = vmatprep.subr.mxu0 0.0
        %2630 = vmatpush2.msra.mxu0 0.0
        %2631 = vmatprep.subr.mxu0 0.0
        %2632 = vmatpush2.msra.mxu0 0.0
        %2633 = vmatprep.subr.mxu0 0.0
        %2634 = vmatpush2.msra.mxu0 0.0
        %2635 = vmatprep.subr.mxu0 0.0
        %2636 = vmatpush2.msra.mxu0 0.0
        %2637 = vmatprep.subr.mxu0 0.0
        %2638 = vmatpush2.msra.mxu0 0.0
        %2639 = vmatprep.subr.mxu0 0.0
        %2640 = vmatpush2.msra.mxu0 0.0
        %2641 = vmatprep.mubr.f32.mxu0 0.0
        %v2642 = vand.u32 %v2158, 4294901760
        %2643 = vmatmul.mubr.f32.gmra.mxu0 %v2642
        %v2644 = vpop.f32.mrf.mxu0
        %v2645 = vadd.f32 %v2544, %v2644
        %v2646 = vpop.f32.mrf.mxu0
        %2647 = vmatprep.mubr.f32.mxu0 0.0
        %v2648 = vand.u32 %v2161, 4294901760
        %2649 = vmatmul.mubr.f32.gmra.mxu0 %v2648
        %v2650 = vpop.f32.mrf.mxu0
        %v2651 = vadd.f32 %v2552, %v2650
        %v2652 = vpop.f32.mrf.mxu0
        %2653 = vmatprep.mubr.f32.mxu0 0.0
        %v2654 = vand.u32 %v2164, 4294901760
        %2655 = vmatmul.mubr.f32.gmra.mxu0 %v2654
        %v2656 = vpop.f32.mrf.mxu0
        %v2657 = vadd.f32 %v2560, %v2656
        %v2658 = vpop.f32.mrf.mxu0
        %2659 = vmatprep.mubr.f32.mxu0 0.0
        %v2660 = vand.u32 %v2167, 4294901760
        %2661 = vmatmul.mubr.f32.gmra.mxu0 %v2660
        %v2662 = vpop.f32.mrf.mxu0
        %v2663 = vadd.f32 %v2568, %v2662
        %v2664 = vpop.f32.mrf.mxu0
        %2665 = vdwg.mxu0
        %2666 = vmatprep.subr.mxu0 0.0
        %2667 = vmatpush1.msra.mxu0 0.0
        %2668 = vmatprep.subr.mxu0 0.0
        %2669 = vmatpush1.msra.mxu0 0.0
        %2670 = vmatprep.subr.mxu0 0.0
        %2671 = vmatpush1.msra.mxu0 0.0
        %2672 = vmatprep.subr.mxu0 0.0
        %2673 = vmatpush1.msra.mxu0 0.0
        %2674 = vmatprep.subr.mxu0 0.0
        %2675 = vmatpush1.msra.mxu0 0.0
        %2676 = vmatprep.subr.mxu0 0.0
        %2677 = vmatpush1.msra.mxu0 0.0
        %2678 = vmatprep.subr.mxu0 0.0
        %2679 = vmatpush1.msra.mxu0 0.0
        %2680 = vmatprep.subr.mxu0 0.0
        %2681 = vmatpush1.msra.mxu0 0.0
        %2682 = vmatprep.subr.mxu0 0.0
        %2683 = vmatpush1.msra.mxu0 0.0
        %2684 = vmatprep.subr.mxu0 0.0
        %2685 = vmatpush1.msra.mxu0 0.0
        %2686 = vmatprep.subr.mxu0 0.0
        %2687 = vmatpush1.msra.mxu0 0.0
        %2688 = vmatprep.subr.mxu0 0.0
        %2689 = vmatpush1.msra.mxu0 0.0
        %2690 = vmatprep.subr.mxu0 0.0
        %2691 = vmatpush1.msra.mxu0 0.0
        %2692 = vmatprep.subr.mxu0 0.0
        %2693 = vmatpush1.msra.mxu0 0.0
        %2694 = vmatprep.subr.mxu0 0.0
        %v2695 = vand.u32 %v2156, 4294901760
        %2696 = vmatpush1.msra.mxu0 %v2695
        %2697 = vmatprep.subr.mxu0 0.0
        %v2698 = vand.u32 %v2155, 4294901760
        %2699 = vmatpush1.msra.mxu0 %v2698
        %2700 = vmatprep.subr.mxu0 0.0
        %2701 = vmatpush2.msra.mxu0 0.0
        %2702 = vmatprep.subr.mxu0 0.0
        %2703 = vmatpush2.msra.mxu0 0.0
        %2704 = vmatprep.subr.mxu0 0.0
        %2705 = vmatpush2.msra.mxu0 0.0
        %2706 = vmatprep.subr.mxu0 0.0
        %2707 = vmatpush2.msra.mxu0 0.0
        %2708 = vmatprep.subr.mxu0 0.0
        %2709 = vmatpush2.msra.mxu0 0.0
        %2710 = vmatprep.subr.mxu0 0.0
        %2711 = vmatpush2.msra.mxu0 0.0
        %2712 = vmatprep.subr.mxu0 0.0
        %2713 = vmatpush2.msra.mxu0 0.0
        %2714 = vmatprep.subr.mxu0 0.0
        %2715 = vmatpush2.msra.mxu0 0.0
        %2716 = vmatprep.subr.mxu0 0.0
        %2717 = vmatpush2.msra.mxu0 0.0
        %2718 = vmatprep.subr.mxu0 0.0
        %2719 = vmatpush2.msra.mxu0 0.0
        %2720 = vmatprep.subr.mxu0 0.0
        %2721 = vmatpush2.msra.mxu0 0.0
        %2722 = vmatprep.subr.mxu0 0.0
        %2723 = vmatpush2.msra.mxu0 0.0
        %2724 = vmatprep.subr.mxu0 0.0
        %2725 = vmatpush2.msra.mxu0 0.0
        %2726 = vmatprep.subr.mxu0 0.0
        %2727 = vmatpush2.msra.mxu0 0.0
        %2728 = vmatprep.subr.mxu0 0.0
        %2729 = vmatpush2.msra.mxu0 0.0
        %2730 = vmatprep.subr.mxu0 0.0
        %2731 = vmatpush2.msra.mxu0 0.0
        %2732 = vmatprep.mubr.f32.mxu0 0.0
        %v2733 = vand.u32 %v2158, 4294901760
        %2734 = vmatmul.mubr.f32.gmra.mxu0 %v2733
        %v2735 = vpop.f32.mrf.mxu0
        %v2736 = vadd.f32 %v2645, %v2735
        %v2737 = vpop.f32.mrf.mxu0
        %2738 = vmatprep.mubr.f32.mxu0 0.0
        %v2739 = vand.u32 %v2161, 4294901760
        %2740 = vmatmul.mubr.f32.gmra.mxu0 %v2739
        %v2741 = vpop.f32.mrf.mxu0
        %v2742 = vadd.f32 %v2651, %v2741
        %v2743 = vpop.f32.mrf.mxu0
        %2744 = vmatprep.mubr.f32.mxu0 0.0
        %v2745 = vand.u32 %v2164, 4294901760
        %2746 = vmatmul.mubr.f32.gmra.mxu0 %v2745
        %v2747 = vpop.f32.mrf.mxu0
        %v2748 = vadd.f32 %v2657, %v2747
        %v2749 = vpop.f32.mrf.mxu0
        %2750 = vmatprep.mubr.f32.mxu0 0.0
        %v2751 = vand.u32 %v2167, 4294901760
        %2752 = vmatmul.mubr.f32.gmra.mxu0 %v2751
        %v2753 = vpop.f32.mrf.mxu0
        %v2754 = vadd.f32 %v2663, %v2753
        %v2755 = vpop.f32.mrf.mxu0
        %2756 = vdwg.mxu0
        %v2757 = vld [vmem:[%s241] sm:$0xff]
        %v2758 = vld [vmem:[%s241 + $0x8] sm:$0xff]
        %v2759 = vld [vmem:[%s241 + $0x10] sm:$0xff]
        %v2760 = vld [vmem:[%s241 + $0x18] sm:$0xff]
        %v2761 = vadd.f32 %v2757, %v2736
        %v2762 = vadd.f32 %v2758, %v2742
        %v2763 = vadd.f32 %v2759, %v2748
        %v2764 = vadd.f32 %v2760, %v2754
        %2765 = vst.msk [vmem:[%s241] sm:$0xff] %vm1522, %v2761
        %2766 = vst.msk [vmem:[%s241 + $0x8] sm:$0xff] %vm1522, %v2762
        %2767 = vst.msk [vmem:[%s241 + $0x10] sm:$0xff] %vm1522, %v2763
        %2768 = vst.msk [vmem:[%s241 + $0x18] sm:$0xff] %vm1522, %v2764
        %s2769 = scalar_lea.vmem %s225, 16 [#allocation2]
        %v2770 = vld [vmem:[%s2769] sm:$0xff]
        %s2771 = scalar_lea.vmem %s225, 48 [#allocation2]
        %v2772 = vld [vmem:[%s2771] sm:$0xff]
        %s2773 = scalar_lea.vmem %s225, 80 [#allocation2]
        %v2774 = vld [vmem:[%s2773] sm:$0xff]
        %s2775 = scalar_lea.vmem %s225, 112 [#allocation2]
        %v2776 = vld [vmem:[%s2775] sm:$0xff]
        %2777 = vmatprep.subr.mxu0 0.0
        %2778 = vmatpush1.msra.mxu0 0.0
        %2779 = vmatprep.subr.mxu0 0.0
        %2780 = vmatpush1.msra.mxu0 0.0
        %2781 = vmatprep.subr.mxu0 0.0
        %2782 = vmatpush1.msra.mxu0 0.0
        %2783 = vmatprep.subr.mxu0 0.0
        %2784 = vmatpush1.msra.mxu0 0.0
        %2785 = vmatprep.subr.mxu0 0.0
        %2786 = vmatpush1.msra.mxu0 0.0
        %2787 = vmatprep.subr.mxu0 0.0
        %2788 = vmatpush1.msra.mxu0 0.0
        %2789 = vmatprep.subr.mxu0 0.0
        %2790 = vmatpush1.msra.mxu0 0.0
        %2791 = vmatprep.subr.mxu0 0.0
        %2792 = vmatpush1.msra.mxu0 0.0
        %2793 = vmatprep.subr.mxu0 0.0
        %2794 = vmatpush1.msra.mxu0 0.0
        %2795 = vmatprep.subr.mxu0 0.0
        %2796 = vmatpush1.msra.mxu0 0.0
        %2797 = vmatprep.subr.mxu0 0.0
        %2798 = vmatpush1.msra.mxu0 0.0
        %2799 = vmatprep.subr.mxu0 0.0
        %2800 = vmatpush1.msra.mxu0 0.0
        %2801 = vmatprep.subr.mxu0 0.0
        %v2802 = vand.u32 %v2776, 4294901760
        %2803 = vmatpush1.msra.mxu0 %v2802
        %2804 = vmatprep.subr.mxu0 0.0
        %v2805 = vand.u32 %v2774, 4294901760
        %2806 = vmatpush1.msra.mxu0 %v2805
        %2807 = vmatprep.subr.mxu0 0.0
        %v2808 = vand.u32 %v2772, 4294901760
        %2809 = vmatpush1.msra.mxu0 %v2808
        %2810 = vmatprep.subr.mxu0 0.0
        %v2811 = vand.u32 %v2770, 4294901760
        %2812 = vmatpush1.msra.mxu0 %v2811
        %2813 = vmatprep.subr.mxu0 0.0
        %2814 = vmatpush2.msra.mxu0 0.0
        %2815 = vmatprep.subr.mxu0 0.0
        %2816 = vmatpush2.msra.mxu0 0.0
        %2817 = vmatprep.subr.mxu0 0.0
        %2818 = vmatpush2.msra.mxu0 0.0
        %2819 = vmatprep.subr.mxu0 0.0
        %2820 = vmatpush2.msra.mxu0 0.0
        %2821 = vmatprep.subr.mxu0 0.0
        %2822 = vmatpush2.msra.mxu0 0.0
        %2823 = vmatprep.subr.mxu0 0.0
        %2824 = vmatpush2.msra.mxu0 0.0
        %2825 = vmatprep.subr.mxu0 0.0
        %2826 = vmatpush2.msra.mxu0 0.0
        %2827 = vmatprep.subr.mxu0 0.0
        %2828 = vmatpush2.msra.mxu0 0.0
        %2829 = vmatprep.subr.mxu0 0.0
        %2830 = vmatpush2.msra.mxu0 0.0
        %2831 = vmatprep.subr.mxu0 0.0
        %2832 = vmatpush2.msra.mxu0 0.0
        %2833 = vmatprep.subr.mxu0 0.0
        %2834 = vmatpush2.msra.mxu0 0.0
        %2835 = vmatprep.subr.mxu0 0.0
        %2836 = vmatpush2.msra.mxu0 0.0
        %2837 = vmatprep.subr.mxu0 0.0
        %2838 = vmatpush2.msra.mxu0 0.0
        %2839 = vmatprep.subr.mxu0 0.0
        %2840 = vmatpush2.msra.mxu0 0.0
        %2841 = vmatprep.subr.mxu0 0.0
        %2842 = vmatpush2.msra.mxu0 0.0
        %2843 = vmatprep.subr.mxu0 0.0
        %2844 = vmatpush2.msra.mxu0 0.0
        %2845 = vmatprep.mubr.f32.mxu0 0.0
        %v2846 = vand.u32 %v288, 4294901760
        %v2847 = vsub.f32 %v288, %v2846
        %v2848 = vand.u32 %v2847, 4294901760
        %v2849 = vsub.f32 %v2847, %v2848
        %v2850 = vand.u32 %v2849, 4294901760
        %2851 = vmatmul.mubr.f32.gmra.mxu0 %v2850
        %v2852 = vpop.f32.mrf.mxu0
        %v2853 = vadd.f32 0.0, %v2852
        %v2854 = vpop.f32.mrf.mxu0
        %2855 = vmatprep.mubr.f32.mxu0 0.0
        %v2856 = vand.u32 %v291, 4294901760
        %v2857 = vsub.f32 %v291, %v2856
        %v2858 = vand.u32 %v2857, 4294901760
        %v2859 = vsub.f32 %v2857, %v2858
        %v2860 = vand.u32 %v2859, 4294901760
        %2861 = vmatmul.mubr.f32.gmra.mxu0 %v2860
        %v2862 = vpop.f32.mrf.mxu0
        %v2863 = vadd.f32 0.0, %v2862
        %v2864 = vpop.f32.mrf.mxu0
        %2865 = vmatprep.mubr.f32.mxu0 0.0
        %v2866 = vand.u32 %v294, 4294901760
        %v2867 = vsub.f32 %v294, %v2866
        %v2868 = vand.u32 %v2867, 4294901760
        %v2869 = vsub.f32 %v2867, %v2868
        %v2870 = vand.u32 %v2869, 4294901760
        %2871 = vmatmul.mubr.f32.gmra.mxu0 %v2870
        %v2872 = vpop.f32.mrf.mxu0
        %v2873 = vadd.f32 0.0, %v2872
        %v2874 = vpop.f32.mrf.mxu0
        %2875 = vmatprep.mubr.f32.mxu0 0.0
        %v2876 = vand.u32 %v297, 4294901760
        %v2877 = vsub.f32 %v297, %v2876
        %v2878 = vand.u32 %v2877, 4294901760
        %v2879 = vsub.f32 %v2877, %v2878
        %v2880 = vand.u32 %v2879, 4294901760
        %2881 = vmatmul.mubr.f32.gmra.mxu0 %v2880
        %v2882 = vpop.f32.mrf.mxu0
        %v2883 = vadd.f32 0.0, %v2882
        %v2884 = vpop.f32.mrf.mxu0
        %2885 = vdwg.mxu0
        %2886 = vmatprep.subr.mxu0 0.0
        %2887 = vmatpush1.msra.mxu0 0.0
        %2888 = vmatprep.subr.mxu0 0.0
        %2889 = vmatpush1.msra.mxu0 0.0
        %2890 = vmatprep.subr.mxu0 0.0
        %2891 = vmatpush1.msra.mxu0 0.0
        %2892 = vmatprep.subr.mxu0 0.0
        %2893 = vmatpush1.msra.mxu0 0.0
        %2894 = vmatprep.subr.mxu0 0.0
        %2895 = vmatpush1.msra.mxu0 0.0
        %2896 = vmatprep.subr.mxu0 0.0
        %2897 = vmatpush1.msra.mxu0 0.0
        %2898 = vmatprep.subr.mxu0 0.0
        %2899 = vmatpush1.msra.mxu0 0.0
        %2900 = vmatprep.subr.mxu0 0.0
        %2901 = vmatpush1.msra.mxu0 0.0
        %2902 = vmatprep.subr.mxu0 0.0
        %2903 = vmatpush1.msra.mxu0 0.0
        %2904 = vmatprep.subr.mxu0 0.0
        %2905 = vmatpush1.msra.mxu0 0.0
        %2906 = vmatprep.subr.mxu0 0.0
        %2907 = vmatpush1.msra.mxu0 0.0
        %2908 = vmatprep.subr.mxu0 0.0
        %2909 = vmatpush1.msra.mxu0 0.0
        %2910 = vmatprep.subr.mxu0 0.0
        %v2911 = vand.u32 %v2776, 4294901760
        %v2912 = vsub.f32 %v2776, %v2911
        %v2913 = vand.u32 %v2912, 4294901760
        %v2914 = vsub.f32 %v2912, %v2913
        %v2915 = vand.u32 %v2914, 4294901760
        %2916 = vmatpush1.msra.mxu0 %v2915
        %2917 = vmatprep.subr.mxu0 0.0
        %v2918 = vand.u32 %v2774, 4294901760
        %v2919 = vsub.f32 %v2774, %v2918
        %v2920 = vand.u32 %v2919, 4294901760
        %v2921 = vsub.f32 %v2919, %v2920
        %v2922 = vand.u32 %v2921, 4294901760
        %2923 = vmatpush1.msra.mxu0 %v2922
        %2924 = vmatprep.subr.mxu0 0.0
        %v2925 = vand.u32 %v2772, 4294901760
        %v2926 = vsub.f32 %v2772, %v2925
        %v2927 = vand.u32 %v2926, 4294901760
        %v2928 = vsub.f32 %v2926, %v2927
        %v2929 = vand.u32 %v2928, 4294901760
        %2930 = vmatpush1.msra.mxu0 %v2929
        %2931 = vmatprep.subr.mxu0 0.0
        %v2932 = vand.u32 %v2770, 4294901760
        %v2933 = vsub.f32 %v2770, %v2932
        %v2934 = vand.u32 %v2933, 4294901760
        %v2935 = vsub.f32 %v2933, %v2934
        %v2936 = vand.u32 %v2935, 4294901760
        %2937 = vmatpush1.msra.mxu0 %v2936
        %2938 = vmatprep.subr.mxu0 0.0
        %2939 = vmatpush2.msra.mxu0 0.0
        %2940 = vmatprep.subr.mxu0 0.0
        %2941 = vmatpush2.msra.mxu0 0.0
        %2942 = vmatprep.subr.mxu0 0.0
        %2943 = vmatpush2.msra.mxu0 0.0
        %2944 = vmatprep.subr.mxu0 0.0
        %2945 = vmatpush2.msra.mxu0 0.0
        %2946 = vmatprep.subr.mxu0 0.0
        %2947 = vmatpush2.msra.mxu0 0.0
        %2948 = vmatprep.subr.mxu0 0.0
        %2949 = vmatpush2.msra.mxu0 0.0
        %2950 = vmatprep.subr.mxu0 0.0
        %2951 = vmatpush2.msra.mxu0 0.0
        %2952 = vmatprep.subr.mxu0 0.0
        %2953 = vmatpush2.msra.mxu0 0.0
        %2954 = vmatprep.subr.mxu0 0.0
        %2955 = vmatpush2.msra.mxu0 0.0
        %2956 = vmatprep.subr.mxu0 0.0
        %2957 = vmatpush2.msra.mxu0 0.0
        %2958 = vmatprep.subr.mxu0 0.0
        %2959 = vmatpush2.msra.mxu0 0.0
        %2960 = vmatprep.subr.mxu0 0.0
        %2961 = vmatpush2.msra.mxu0 0.0
        %2962 = vmatprep.subr.mxu0 0.0
        %2963 = vmatpush2.msra.mxu0 0.0
        %2964 = vmatprep.subr.mxu0 0.0
        %2965 = vmatpush2.msra.mxu0 0.0
        %2966 = vmatprep.subr.mxu0 0.0
        %2967 = vmatpush2.msra.mxu0 0.0
        %2968 = vmatprep.subr.mxu0 0.0
        %2969 = vmatpush2.msra.mxu0 0.0
        %2970 = vmatprep.mubr.f32.mxu0 0.0
        %v2971 = vand.u32 %v288, 4294901760
        %2972 = vmatmul.mubr.f32.gmra.mxu0 %v2971
        %v2973 = vpop.f32.mrf.mxu0
        %v2974 = vadd.f32 %v2853, %v2973
        %v2975 = vpop.f32.mrf.mxu0
        %2976 = vmatprep.mubr.f32.mxu0 0.0
        %v2977 = vand.u32 %v291, 4294901760
        %2978 = vmatmul.mubr.f32.gmra.mxu0 %v2977
        %v2979 = vpop.f32.mrf.mxu0
        %v2980 = vadd.f32 %v2863, %v2979
        %v2981 = vpop.f32.mrf.mxu0
        %2982 = vmatprep.mubr.f32.mxu0 0.0
        %v2983 = vand.u32 %v294, 4294901760
        %2984 = vmatmul.mubr.f32.gmra.mxu0 %v2983
        %v2985 = vpop.f32.mrf.mxu0
        %v2986 = vadd.f32 %v2873, %v2985
        %v2987 = vpop.f32.mrf.mxu0
        %2988 = vmatprep.mubr.f32.mxu0 0.0
        %v2989 = vand.u32 %v297, 4294901760
        %2990 = vmatmul.mubr.f32.gmra.mxu0 %v2989
        %v2991 = vpop.f32.mrf.mxu0
        %v2992 = vadd.f32 %v2883, %v2991
        %v2993 = vpop.f32.mrf.mxu0
        %2994 = vdwg.mxu0
        %2995 = vmatprep.subr.mxu0 0.0
        %2996 = vmatpush1.msra.mxu0 0.0
        %2997 = vmatprep.subr.mxu0 0.0
        %2998 = vmatpush1.msra.mxu0 0.0
        %2999 = vmatprep.subr.mxu0 0.0
        %3000 = vmatpush1.msra.mxu0 0.0
        %3001 = vmatprep.subr.mxu0 0.0
        %3002 = vmatpush1.msra.mxu0 0.0
        %3003 = vmatprep.subr.mxu0 0.0
        %3004 = vmatpush1.msra.mxu0 0.0
        %3005 = vmatprep.subr.mxu0 0.0
        %3006 = vmatpush1.msra.mxu0 0.0
        %3007 = vmatprep.subr.mxu0 0.0
        %3008 = vmatpush1.msra.mxu0 0.0
        %3009 = vmatprep.subr.mxu0 0.0
        %3010 = vmatpush1.msra.mxu0 0.0
        %3011 = vmatprep.subr.mxu0 0.0
        %3012 = vmatpush1.msra.mxu0 0.0
        %3013 = vmatprep.subr.mxu0 0.0
        %3014 = vmatpush1.msra.mxu0 0.0
        %3015 = vmatprep.subr.mxu0 0.0
        %3016 = vmatpush1.msra.mxu0 0.0
        %3017 = vmatprep.subr.mxu0 0.0
        %3018 = vmatpush1.msra.mxu0 0.0
        %3019 = vmatprep.subr.mxu0 0.0
        %v3020 = vand.u32 %v2776, 4294901760
        %v3021 = vsub.f32 %v2776, %v3020
        %3022 = vmatpush1.msra.mxu0 %v3021
        %3023 = vmatprep.subr.mxu0 0.0
        %v3024 = vand.u32 %v2774, 4294901760
        %v3025 = vsub.f32 %v2774, %v3024
        %3026 = vmatpush1.msra.mxu0 %v3025
        %3027 = vmatprep.subr.mxu0 0.0
        %v3028 = vand.u32 %v2772, 4294901760
        %v3029 = vsub.f32 %v2772, %v3028
        %3030 = vmatpush1.msra.mxu0 %v3029
        %3031 = vmatprep.subr.mxu0 0.0
        %v3032 = vand.u32 %v2770, 4294901760
        %v3033 = vsub.f32 %v2770, %v3032
        %3034 = vmatpush1.msra.mxu0 %v3033
        %3035 = vmatprep.subr.mxu0 0.0
        %3036 = vmatpush2.msra.mxu0 0.0
        %3037 = vmatprep.subr.mxu0 0.0
        %3038 = vmatpush2.msra.mxu0 0.0
        %3039 = vmatprep.subr.mxu0 0.0
        %3040 = vmatpush2.msra.mxu0 0.0
        %3041 = vmatprep.subr.mxu0 0.0
        %3042 = vmatpush2.msra.mxu0 0.0
        %3043 = vmatprep.subr.mxu0 0.0
        %3044 = vmatpush2.msra.mxu0 0.0
        %3045 = vmatprep.subr.mxu0 0.0
        %3046 = vmatpush2.msra.mxu0 0.0
        %3047 = vmatprep.subr.mxu0 0.0
        %3048 = vmatpush2.msra.mxu0 0.0
        %3049 = vmatprep.subr.mxu0 0.0
        %3050 = vmatpush2.msra.mxu0 0.0
        %3051 = vmatprep.subr.mxu0 0.0
        %3052 = vmatpush2.msra.mxu0 0.0
        %3053 = vmatprep.subr.mxu0 0.0
        %3054 = vmatpush2.msra.mxu0 0.0
        %3055 = vmatprep.subr.mxu0 0.0
        %3056 = vmatpush2.msra.mxu0 0.0
        %3057 = vmatprep.subr.mxu0 0.0
        %3058 = vmatpush2.msra.mxu0 0.0
        %3059 = vmatprep.subr.mxu0 0.0
        %3060 = vmatpush2.msra.mxu0 0.0
        %3061 = vmatprep.subr.mxu0 0.0
        %3062 = vmatpush2.msra.mxu0 0.0
        %3063 = vmatprep.subr.mxu0 0.0
        %3064 = vmatpush2.msra.mxu0 0.0
        %3065 = vmatprep.subr.mxu0 0.0
        %3066 = vmatpush2.msra.mxu0 0.0
        %3067 = vmatprep.mubr.f32.mxu0 0.0
        %v3068 = vand.u32 %v288, 4294901760
        %v3069 = vsub.f32 %v288, %v3068
        %3070 = vmatmul.mubr.f32.gmra.mxu0 %v3069
        %v3071 = vpop.f32.mrf.mxu0
        %v3072 = vadd.f32 %v2974, %v3071
        %v3073 = vpop.f32.mrf.mxu0
        %3074 = vmatprep.mubr.f32.mxu0 0.0
        %v3075 = vand.u32 %v291, 4294901760
        %v3076 = vsub.f32 %v291, %v3075
        %3077 = vmatmul.mubr.f32.gmra.mxu0 %v3076
        %v3078 = vpop.f32.mrf.mxu0
        %v3079 = vadd.f32 %v2980, %v3078
        %v3080 = vpop.f32.mrf.mxu0
        %3081 = vmatprep.mubr.f32.mxu0 0.0
        %v3082 = vand.u32 %v294, 4294901760
        %v3083 = vsub.f32 %v294, %v3082
        %3084 = vmatmul.mubr.f32.gmra.mxu0 %v3083
        %v3085 = vpop.f32.mrf.mxu0
        %v3086 = vadd.f32 %v2986, %v3085
        %v3087 = vpop.f32.mrf.mxu0
        %3088 = vmatprep.mubr.f32.mxu0 0.0
        %v3089 = vand.u32 %v297, 4294901760
        %v3090 = vsub.f32 %v297, %v3089
        %3091 = vmatmul.mubr.f32.gmra.mxu0 %v3090
        %v3092 = vpop.f32.mrf.mxu0
        %v3093 = vadd.f32 %v2992, %v3092
        %v3094 = vpop.f32.mrf.mxu0
        %3095 = vdwg.mxu0
        %3096 = vmatprep.subr.mxu0 0.0
        %3097 = vmatpush1.msra.mxu0 0.0
        %3098 = vmatprep.subr.mxu0 0.0
        %3099 = vmatpush1.msra.mxu0 0.0
        %3100 = vmatprep.subr.mxu0 0.0
        %3101 = vmatpush1.msra.mxu0 0.0
        %3102 = vmatprep.subr.mxu0 0.0
        %3103 = vmatpush1.msra.mxu0 0.0
        %3104 = vmatprep.subr.mxu0 0.0
        %3105 = vmatpush1.msra.mxu0 0.0
        %3106 = vmatprep.subr.mxu0 0.0
        %3107 = vmatpush1.msra.mxu0 0.0
        %3108 = vmatprep.subr.mxu0 0.0
        %3109 = vmatpush1.msra.mxu0 0.0
        %3110 = vmatprep.subr.mxu0 0.0
        %3111 = vmatpush1.msra.mxu0 0.0
        %3112 = vmatprep.subr.mxu0 0.0
        %3113 = vmatpush1.msra.mxu0 0.0
        %3114 = vmatprep.subr.mxu0 0.0
        %3115 = vmatpush1.msra.mxu0 0.0
        %3116 = vmatprep.subr.mxu0 0.0
        %3117 = vmatpush1.msra.mxu0 0.0
        %3118 = vmatprep.subr.mxu0 0.0
        %3119 = vmatpush1.msra.mxu0 0.0
        %3120 = vmatprep.subr.mxu0 0.0
        %v3121 = vand.u32 %v2776, 4294901760
        %3122 = vmatpush1.msra.mxu0 %v3121
        %3123 = vmatprep.subr.mxu0 0.0
        %v3124 = vand.u32 %v2774, 4294901760
        %3125 = vmatpush1.msra.mxu0 %v3124
        %3126 = vmatprep.subr.mxu0 0.0
        %v3127 = vand.u32 %v2772, 4294901760
        %3128 = vmatpush1.msra.mxu0 %v3127
        %3129 = vmatprep.subr.mxu0 0.0
        %v3130 = vand.u32 %v2770, 4294901760
        %3131 = vmatpush1.msra.mxu0 %v3130
        %3132 = vmatprep.subr.mxu0 0.0
        %3133 = vmatpush2.msra.mxu0 0.0
        %3134 = vmatprep.subr.mxu0 0.0
        %3135 = vmatpush2.msra.mxu0 0.0
        %3136 = vmatprep.subr.mxu0 0.0
        %3137 = vmatpush2.msra.mxu0 0.0
        %3138 = vmatprep.subr.mxu0 0.0
        %3139 = vmatpush2.msra.mxu0 0.0
        %3140 = vmatprep.subr.mxu0 0.0
        %3141 = vmatpush2.msra.mxu0 0.0
        %3142 = vmatprep.subr.mxu0 0.0
        %3143 = vmatpush2.msra.mxu0 0.0
        %3144 = vmatprep.subr.mxu0 0.0
        %3145 = vmatpush2.msra.mxu0 0.0
        %3146 = vmatprep.subr.mxu0 0.0
        %3147 = vmatpush2.msra.mxu0 0.0
        %3148 = vmatprep.subr.mxu0 0.0
        %3149 = vmatpush2.msra.mxu0 0.0
        %3150 = vmatprep.subr.mxu0 0.0
        %3151 = vmatpush2.msra.mxu0 0.0
        %3152 = vmatprep.subr.mxu0 0.0
        %3153 = vmatpush2.msra.mxu0 0.0
        %3154 = vmatprep.subr.mxu0 0.0
        %3155 = vmatpush2.msra.mxu0 0.0
        %3156 = vmatprep.subr.mxu0 0.0
        %3157 = vmatpush2.msra.mxu0 0.0
        %3158 = vmatprep.subr.mxu0 0.0
        %3159 = vmatpush2.msra.mxu0 0.0
        %3160 = vmatprep.subr.mxu0 0.0
        %3161 = vmatpush2.msra.mxu0 0.0
        %3162 = vmatprep.subr.mxu0 0.0
        %3163 = vmatpush2.msra.mxu0 0.0
        %3164 = vmatprep.mubr.f32.mxu0 0.0
        %v3165 = vand.u32 %v288, 4294901760
        %v3166 = vsub.f32 %v288, %v3165
        %v3167 = vand.u32 %v3166, 4294901760
        %3168 = vmatmul.mubr.f32.gmra.mxu0 %v3167
        %v3169 = vpop.f32.mrf.mxu0
        %v3170 = vadd.f32 %v3072, %v3169
        %v3171 = vpop.f32.mrf.mxu0
        %3172 = vmatprep.mubr.f32.mxu0 0.0
        %v3173 = vand.u32 %v291, 4294901760
        %v3174 = vsub.f32 %v291, %v3173
        %v3175 = vand.u32 %v3174, 4294901760
        %3176 = vmatmul.mubr.f32.gmra.mxu0 %v3175
        %v3177 = vpop.f32.mrf.mxu0
        %v3178 = vadd.f32 %v3079, %v3177
        %v3179 = vpop.f32.mrf.mxu0
        %3180 = vmatprep.mubr.f32.mxu0 0.0
        %v3181 = vand.u32 %v294, 4294901760
        %v3182 = vsub.f32 %v294, %v3181
        %v3183 = vand.u32 %v3182, 4294901760
        %3184 = vmatmul.mubr.f32.gmra.mxu0 %v3183
        %v3185 = vpop.f32.mrf.mxu0
        %v3186 = vadd.f32 %v3086, %v3185
        %v3187 = vpop.f32.mrf.mxu0
        %3188 = vmatprep.mubr.f32.mxu0 0.0
        %v3189 = vand.u32 %v297, 4294901760
        %v3190 = vsub.f32 %v297, %v3189
        %v3191 = vand.u32 %v3190, 4294901760
        %3192 = vmatmul.mubr.f32.gmra.mxu0 %v3191
        %v3193 = vpop.f32.mrf.mxu0
        %v3194 = vadd.f32 %v3093, %v3193
        %v3195 = vpop.f32.mrf.mxu0
        %3196 = vdwg.mxu0
        %3197 = vmatprep.subr.mxu0 0.0
        %3198 = vmatpush1.msra.mxu0 0.0
        %3199 = vmatprep.subr.mxu0 0.0
        %3200 = vmatpush1.msra.mxu0 0.0
        %3201 = vmatprep.subr.mxu0 0.0
        %3202 = vmatpush1.msra.mxu0 0.0
        %3203 = vmatprep.subr.mxu0 0.0
        %3204 = vmatpush1.msra.mxu0 0.0
        %3205 = vmatprep.subr.mxu0 0.0
        %3206 = vmatpush1.msra.mxu0 0.0
        %3207 = vmatprep.subr.mxu0 0.0
        %3208 = vmatpush1.msra.mxu0 0.0
        %3209 = vmatprep.subr.mxu0 0.0
        %3210 = vmatpush1.msra.mxu0 0.0
        %3211 = vmatprep.subr.mxu0 0.0
        %3212 = vmatpush1.msra.mxu0 0.0
        %3213 = vmatprep.subr.mxu0 0.0
        %3214 = vmatpush1.msra.mxu0 0.0
        %3215 = vmatprep.subr.mxu0 0.0
        %3216 = vmatpush1.msra.mxu0 0.0
        %3217 = vmatprep.subr.mxu0 0.0
        %3218 = vmatpush1.msra.mxu0 0.0
        %3219 = vmatprep.subr.mxu0 0.0
        %3220 = vmatpush1.msra.mxu0 0.0
        %3221 = vmatprep.subr.mxu0 0.0
        %v3222 = vand.u32 %v2776, 4294901760
        %v3223 = vsub.f32 %v2776, %v3222
        %v3224 = vand.u32 %v3223, 4294901760
        %3225 = vmatpush1.msra.mxu0 %v3224
        %3226 = vmatprep.subr.mxu0 0.0
        %v3227 = vand.u32 %v2774, 4294901760
        %v3228 = vsub.f32 %v2774, %v3227
        %v3229 = vand.u32 %v3228, 4294901760
        %3230 = vmatpush1.msra.mxu0 %v3229
        %3231 = vmatprep.subr.mxu0 0.0
        %v3232 = vand.u32 %v2772, 4294901760
        %v3233 = vsub.f32 %v2772, %v3232
        %v3234 = vand.u32 %v3233, 4294901760
        %3235 = vmatpush1.msra.mxu0 %v3234
        %3236 = vmatprep.subr.mxu0 0.0
        %v3237 = vand.u32 %v2770, 4294901760
        %v3238 = vsub.f32 %v2770, %v3237
        %v3239 = vand.u32 %v3238, 4294901760
        %3240 = vmatpush1.msra.mxu0 %v3239
        %3241 = vmatprep.subr.mxu0 0.0
        %3242 = vmatpush2.msra.mxu0 0.0
        %3243 = vmatprep.subr.mxu0 0.0
        %3244 = vmatpush2.msra.mxu0 0.0
        %3245 = vmatprep.subr.mxu0 0.0
        %3246 = vmatpush2.msra.mxu0 0.0
        %3247 = vmatprep.subr.mxu0 0.0
        %3248 = vmatpush2.msra.mxu0 0.0
        %3249 = vmatprep.subr.mxu0 0.0
        %3250 = vmatpush2.msra.mxu0 0.0
        %3251 = vmatprep.subr.mxu0 0.0
        %3252 = vmatpush2.msra.mxu0 0.0
        %3253 = vmatprep.subr.mxu0 0.0
        %3254 = vmatpush2.msra.mxu0 0.0
        %3255 = vmatprep.subr.mxu0 0.0
        %3256 = vmatpush2.msra.mxu0 0.0
        %3257 = vmatprep.subr.mxu0 0.0
        %3258 = vmatpush2.msra.mxu0 0.0
        %3259 = vmatprep.subr.mxu0 0.0
        %3260 = vmatpush2.msra.mxu0 0.0
        %3261 = vmatprep.subr.mxu0 0.0
        %3262 = vmatpush2.msra.mxu0 0.0
        %3263 = vmatprep.subr.mxu0 0.0
        %3264 = vmatpush2.msra.mxu0 0.0
        %3265 = vmatprep.subr.mxu0 0.0
        %3266 = vmatpush2.msra.mxu0 0.0
        %3267 = vmatprep.subr.mxu0 0.0
        %3268 = vmatpush2.msra.mxu0 0.0
        %3269 = vmatprep.subr.mxu0 0.0
        %3270 = vmatpush2.msra.mxu0 0.0
        %3271 = vmatprep.subr.mxu0 0.0
        %3272 = vmatpush2.msra.mxu0 0.0
        %3273 = vmatprep.mubr.f32.mxu0 0.0
        %v3274 = vand.u32 %v288, 4294901760
        %3275 = vmatmul.mubr.f32.gmra.mxu0 %v3274
        %v3276 = vpop.f32.mrf.mxu0
        %v3277 = vadd.f32 %v3170, %v3276
        %v3278 = vpop.f32.mrf.mxu0
        %3279 = vmatprep.mubr.f32.mxu0 0.0
        %v3280 = vand.u32 %v291, 4294901760
        %3281 = vmatmul.mubr.f32.gmra.mxu0 %v3280
        %v3282 = vpop.f32.mrf.mxu0
        %v3283 = vadd.f32 %v3178, %v3282
        %v3284 = vpop.f32.mrf.mxu0
        %3285 = vmatprep.mubr.f32.mxu0 0.0
        %v3286 = vand.u32 %v294, 4294901760
        %3287 = vmatmul.mubr.f32.gmra.mxu0 %v3286
        %v3288 = vpop.f32.mrf.mxu0
        %v3289 = vadd.f32 %v3186, %v3288
        %v3290 = vpop.f32.mrf.mxu0
        %3291 = vmatprep.mubr.f32.mxu0 0.0
        %v3292 = vand.u32 %v297, 4294901760
        %3293 = vmatmul.mubr.f32.gmra.mxu0 %v3292
        %v3294 = vpop.f32.mrf.mxu0
        %v3295 = vadd.f32 %v3194, %v3294
        %v3296 = vpop.f32.mrf.mxu0
        %3297 = vdwg.mxu0
        %3298 = vmatprep.subr.mxu0 0.0
        %3299 = vmatpush1.msra.mxu0 0.0
        %3300 = vmatprep.subr.mxu0 0.0
        %3301 = vmatpush1.msra.mxu0 0.0
        %3302 = vmatprep.subr.mxu0 0.0
        %3303 = vmatpush1.msra.mxu0 0.0
        %3304 = vmatprep.subr.mxu0 0.0
        %3305 = vmatpush1.msra.mxu0 0.0
        %3306 = vmatprep.subr.mxu0 0.0
        %3307 = vmatpush1.msra.mxu0 0.0
        %3308 = vmatprep.subr.mxu0 0.0
        %3309 = vmatpush1.msra.mxu0 0.0
        %3310 = vmatprep.subr.mxu0 0.0
        %3311 = vmatpush1.msra.mxu0 0.0
        %3312 = vmatprep.subr.mxu0 0.0
        %3313 = vmatpush1.msra.mxu0 0.0
        %3314 = vmatprep.subr.mxu0 0.0
        %3315 = vmatpush1.msra.mxu0 0.0
        %3316 = vmatprep.subr.mxu0 0.0
        %3317 = vmatpush1.msra.mxu0 0.0
        %3318 = vmatprep.subr.mxu0 0.0
        %3319 = vmatpush1.msra.mxu0 0.0
        %3320 = vmatprep.subr.mxu0 0.0
        %3321 = vmatpush1.msra.mxu0 0.0
        %3322 = vmatprep.subr.mxu0 0.0
        %v3323 = vand.u32 %v2776, 4294901760
        %3324 = vmatpush1.msra.mxu0 %v3323
        %3325 = vmatprep.subr.mxu0 0.0
        %v3326 = vand.u32 %v2774, 4294901760
        %3327 = vmatpush1.msra.mxu0 %v3326
        %3328 = vmatprep.subr.mxu0 0.0
        %v3329 = vand.u32 %v2772, 4294901760
        %3330 = vmatpush1.msra.mxu0 %v3329
        %3331 = vmatprep.subr.mxu0 0.0
        %v3332 = vand.u32 %v2770, 4294901760
        %3333 = vmatpush1.msra.mxu0 %v3332
        %3334 = vmatprep.subr.mxu0 0.0
        %3335 = vmatpush2.msra.mxu0 0.0
        %3336 = vmatprep.subr.mxu0 0.0
        %3337 = vmatpush2.msra.mxu0 0.0
        %3338 = vmatprep.subr.mxu0 0.0
        %3339 = vmatpush2.msra.mxu0 0.0
        %3340 = vmatprep.subr.mxu0 0.0
        %3341 = vmatpush2.msra.mxu0 0.0
        %3342 = vmatprep.subr.mxu0 0.0
        %3343 = vmatpush2.msra.mxu0 0.0
        %3344 = vmatprep.subr.mxu0 0.0
        %3345 = vmatpush2.msra.mxu0 0.0
        %3346 = vmatprep.subr.mxu0 0.0
        %3347 = vmatpush2.msra.mxu0 0.0
        %3348 = vmatprep.subr.mxu0 0.0
        %3349 = vmatpush2.msra.mxu0 0.0
        %3350 = vmatprep.subr.mxu0 0.0
        %3351 = vmatpush2.msra.mxu0 0.0
        %3352 = vmatprep.subr.mxu0 0.0
        %3353 = vmatpush2.msra.mxu0 0.0
        %3354 = vmatprep.subr.mxu0 0.0
        %3355 = vmatpush2.msra.mxu0 0.0
        %3356 = vmatprep.subr.mxu0 0.0
        %3357 = vmatpush2.msra.mxu0 0.0
        %3358 = vmatprep.subr.mxu0 0.0
        %3359 = vmatpush2.msra.mxu0 0.0
        %3360 = vmatprep.subr.mxu0 0.0
        %3361 = vmatpush2.msra.mxu0 0.0
        %3362 = vmatprep.subr.mxu0 0.0
        %3363 = vmatpush2.msra.mxu0 0.0
        %3364 = vmatprep.subr.mxu0 0.0
        %3365 = vmatpush2.msra.mxu0 0.0
        %3366 = vmatprep.mubr.f32.mxu0 0.0
        %v3367 = vand.u32 %v288, 4294901760
        %3368 = vmatmul.mubr.f32.gmra.mxu0 %v3367
        %v3369 = vpop.f32.mrf.mxu0
        %v3370 = vadd.f32 %v3277, %v3369
        %v3371 = vpop.f32.mrf.mxu0
        %3372 = vmatprep.mubr.f32.mxu0 0.0
        %v3373 = vand.u32 %v291, 4294901760
        %3374 = vmatmul.mubr.f32.gmra.mxu0 %v3373
        %v3375 = vpop.f32.mrf.mxu0
        %v3376 = vadd.f32 %v3283, %v3375
        %v3377 = vpop.f32.mrf.mxu0
        %3378 = vmatprep.mubr.f32.mxu0 0.0
        %v3379 = vand.u32 %v294, 4294901760
        %3380 = vmatmul.mubr.f32.gmra.mxu0 %v3379
        %v3381 = vpop.f32.mrf.mxu0
        %v3382 = vadd.f32 %v3289, %v3381
        %v3383 = vpop.f32.mrf.mxu0
        %3384 = vmatprep.mubr.f32.mxu0 0.0
        %v3385 = vand.u32 %v297, 4294901760
        %3386 = vmatmul.mubr.f32.gmra.mxu0 %v3385
        %v3387 = vpop.f32.mrf.mxu0
        %v3388 = vadd.f32 %v3295, %v3387
        %v3389 = vpop.f32.mrf.mxu0
        %3390 = vdwg.mxu0
        %v3391 = vadd.s32 %v913, 2
        %v3392 = vadd.s32 %v914, 2
        %vm3393 = vcmp.eq.s32.totalorder %v250, %v3391
        %vm3394 = vcmp.eq.s32.totalorder %v250, %v3392
        %v3395 = vsel %vm3393, 1, 0
        %v3396 = vsel %vm3394, 1, 0
        %v3397 = vcvt.s32.f32 %v3395
        %v3398 = vcvt.s32.f32 %v3396
        %v3400 = vsel %vm921, %v3370, 0
        %v3403 = vsel %vm921, %v3376, 0
        %v3406 = vsel %vm921, %v3382, 0
        %v3409 = vsel %vm921, %v3388, 0
        %3411 = vmatprep.subr.mxu0 0.0
        %3412 = vmatpush1.msra.mxu0 0.0
        %3413 = vmatprep.subr.mxu0 0.0
        %3414 = vmatpush1.msra.mxu0 0.0
        %3415 = vmatprep.subr.mxu0 0.0
        %3416 = vmatpush1.msra.mxu0 0.0
        %3417 = vmatprep.subr.mxu0 0.0
        %3418 = vmatpush1.msra.mxu0 0.0
        %3419 = vmatprep.subr.mxu0 0.0
        %3420 = vmatpush1.msra.mxu0 0.0
        %3421 = vmatprep.subr.mxu0 0.0
        %3422 = vmatpush1.msra.mxu0 0.0
        %3423 = vmatprep.subr.mxu0 0.0
        %3424 = vmatpush1.msra.mxu0 0.0
        %3425 = vmatprep.subr.mxu0 0.0
        %3426 = vmatpush1.msra.mxu0 0.0
        %3427 = vmatprep.subr.mxu0 0.0
        %3428 = vmatpush1.msra.mxu0 0.0
        %3429 = vmatprep.subr.mxu0 0.0
        %3430 = vmatpush1.msra.mxu0 0.0
        %3431 = vmatprep.subr.mxu0 0.0
        %3432 = vmatpush1.msra.mxu0 0.0
        %3433 = vmatprep.subr.mxu0 0.0
        %3434 = vmatpush1.msra.mxu0 0.0
        %3435 = vmatprep.subr.mxu0 0.0
        %3436 = vmatpush1.msra.mxu0 0.0
        %3437 = vmatprep.subr.mxu0 0.0
        %3438 = vmatpush1.msra.mxu0 0.0
        %3439 = vmatprep.subr.mxu0 0.0
        %v3440 = vand.u32 %v3398, 4294901760
        %3441 = vmatpush1.msra.mxu0 %v3440
        %3442 = vmatprep.subr.mxu0 0.0
        %v3443 = vand.u32 %v3397, 4294901760
        %3444 = vmatpush1.msra.mxu0 %v3443
        %3445 = vmatprep.subr.mxu0 0.0
        %3446 = vmatpush2.msra.mxu0 0.0
        %3447 = vmatprep.subr.mxu0 0.0
        %3448 = vmatpush2.msra.mxu0 0.0
        %3449 = vmatprep.subr.mxu0 0.0
        %3450 = vmatpush2.msra.mxu0 0.0
        %3451 = vmatprep.subr.mxu0 0.0
        %3452 = vmatpush2.msra.mxu0 0.0
        %3453 = vmatprep.subr.mxu0 0.0
        %3454 = vmatpush2.msra.mxu0 0.0
        %3455 = vmatprep.subr.mxu0 0.0
        %3456 = vmatpush2.msra.mxu0 0.0
        %3457 = vmatprep.subr.mxu0 0.0
        %3458 = vmatpush2.msra.mxu0 0.0
        %3459 = vmatprep.subr.mxu0 0.0
        %3460 = vmatpush2.msra.mxu0 0.0
        %3461 = vmatprep.subr.mxu0 0.0
        %3462 = vmatpush2.msra.mxu0 0.0
        %3463 = vmatprep.subr.mxu0 0.0
        %3464 = vmatpush2.msra.mxu0 0.0
        %3465 = vmatprep.subr.mxu0 0.0
        %3466 = vmatpush2.msra.mxu0 0.0
        %3467 = vmatprep.subr.mxu0 0.0
        %3468 = vmatpush2.msra.mxu0 0.0
        %3469 = vmatprep.subr.mxu0 0.0
        %3470 = vmatpush2.msra.mxu0 0.0
        %3471 = vmatprep.subr.mxu0 0.0
        %3472 = vmatpush2.msra.mxu0 0.0
        %3473 = vmatprep.subr.mxu0 0.0
        %3474 = vmatpush2.msra.mxu0 0.0
        %3475 = vmatprep.subr.mxu0 0.0
        %3476 = vmatpush2.msra.mxu0 0.0
        %3477 = vmatprep.mubr.f32.mxu0 0.0
        %v3478 = vand.u32 %v3400, 4294901760
        %v3479 = vsub.f32 %v3400, %v3478
        %v3480 = vand.u32 %v3479, 4294901760
        %v3481 = vsub.f32 %v3479, %v3480
        %v3482 = vand.u32 %v3481, 4294901760
        %3483 = vmatmul.mubr.f32.gmra.mxu0 %v3482
        %v3484 = vpop.f32.mrf.mxu0
        %v3485 = vadd.f32 0.0, %v3484
        %v3486 = vpop.f32.mrf.mxu0
        %3487 = vmatprep.mubr.f32.mxu0 0.0
        %v3488 = vand.u32 %v3403, 4294901760
        %v3489 = vsub.f32 %v3403, %v3488
        %v3490 = vand.u32 %v3489, 4294901760
        %v3491 = vsub.f32 %v3489, %v3490
        %v3492 = vand.u32 %v3491, 4294901760
        %3493 = vmatmul.mubr.f32.gmra.mxu0 %v3492
        %v3494 = vpop.f32.mrf.mxu0
        %v3495 = vadd.f32 0.0, %v3494
        %v3496 = vpop.f32.mrf.mxu0
        %3497 = vmatprep.mubr.f32.mxu0 0.0
        %v3498 = vand.u32 %v3406, 4294901760
        %v3499 = vsub.f32 %v3406, %v3498
        %v3500 = vand.u32 %v3499, 4294901760
        %v3501 = vsub.f32 %v3499, %v3500
        %v3502 = vand.u32 %v3501, 4294901760
        %3503 = vmatmul.mubr.f32.gmra.mxu0 %v3502
        %v3504 = vpop.f32.mrf.mxu0
        %v3505 = vadd.f32 0.0, %v3504
        %v3506 = vpop.f32.mrf.mxu0
        %3507 = vmatprep.mubr.f32.mxu0 0.0
        %v3508 = vand.u32 %v3409, 4294901760
        %v3509 = vsub.f32 %v3409, %v3508
        %v3510 = vand.u32 %v3509, 4294901760
        %v3511 = vsub.f32 %v3509, %v3510
        %v3512 = vand.u32 %v3511, 4294901760
        %3513 = vmatmul.mubr.f32.gmra.mxu0 %v3512
        %v3514 = vpop.f32.mrf.mxu0
        %v3515 = vadd.f32 0.0, %v3514
        %v3516 = vpop.f32.mrf.mxu0
        %3517 = vdwg.mxu0
        %3518 = vmatprep.subr.mxu0 0.0
        %3519 = vmatpush1.msra.mxu0 0.0
        %3520 = vmatprep.subr.mxu0 0.0
        %3521 = vmatpush1.msra.mxu0 0.0
        %3522 = vmatprep.subr.mxu0 0.0
        %3523 = vmatpush1.msra.mxu0 0.0
        %3524 = vmatprep.subr.mxu0 0.0
        %3525 = vmatpush1.msra.mxu0 0.0
        %3526 = vmatprep.subr.mxu0 0.0
        %3527 = vmatpush1.msra.mxu0 0.0
        %3528 = vmatprep.subr.mxu0 0.0
        %3529 = vmatpush1.msra.mxu0 0.0
        %3530 = vmatprep.subr.mxu0 0.0
        %3531 = vmatpush1.msra.mxu0 0.0
        %3532 = vmatprep.subr.mxu0 0.0
        %3533 = vmatpush1.msra.mxu0 0.0
        %3534 = vmatprep.subr.mxu0 0.0
        %3535 = vmatpush1.msra.mxu0 0.0
        %3536 = vmatprep.subr.mxu0 0.0
        %3537 = vmatpush1.msra.mxu0 0.0
        %3538 = vmatprep.subr.mxu0 0.0
        %3539 = vmatpush1.msra.mxu0 0.0
        %3540 = vmatprep.subr.mxu0 0.0
        %3541 = vmatpush1.msra.mxu0 0.0
        %3542 = vmatprep.subr.mxu0 0.0
        %3543 = vmatpush1.msra.mxu0 0.0
        %3544 = vmatprep.subr.mxu0 0.0
        %3545 = vmatpush1.msra.mxu0 0.0
        %3546 = vmatprep.subr.mxu0 0.0
        %v3547 = vand.u32 %v3398, 4294901760
        %v3548 = vsub.f32 %v3398, %v3547
        %v3549 = vand.u32 %v3548, 4294901760
        %v3550 = vsub.f32 %v3548, %v3549
        %v3551 = vand.u32 %v3550, 4294901760
        %3552 = vmatpush1.msra.mxu0 %v3551
        %3553 = vmatprep.subr.mxu0 0.0
        %v3554 = vand.u32 %v3397, 4294901760
        %v3555 = vsub.f32 %v3397, %v3554
        %v3556 = vand.u32 %v3555, 4294901760
        %v3557 = vsub.f32 %v3555, %v3556
        %v3558 = vand.u32 %v3557, 4294901760
        %3559 = vmatpush1.msra.mxu0 %v3558
        %3560 = vmatprep.subr.mxu0 0.0
        %3561 = vmatpush2.msra.mxu0 0.0
        %3562 = vmatprep.subr.mxu0 0.0
        %3563 = vmatpush2.msra.mxu0 0.0
        %3564 = vmatprep.subr.mxu0 0.0
        %3565 = vmatpush2.msra.mxu0 0.0
        %3566 = vmatprep.subr.mxu0 0.0
        %3567 = vmatpush2.msra.mxu0 0.0
        %3568 = vmatprep.subr.mxu0 0.0
        %3569 = vmatpush2.msra.mxu0 0.0
        %3570 = vmatprep.subr.mxu0 0.0
        %3571 = vmatpush2.msra.mxu0 0.0
        %3572 = vmatprep.subr.mxu0 0.0
        %3573 = vmatpush2.msra.mxu0 0.0
        %3574 = vmatprep.subr.mxu0 0.0
        %3575 = vmatpush2.msra.mxu0 0.0
        %3576 = vmatprep.subr.mxu0 0.0
        %3577 = vmatpush2.msra.mxu0 0.0
        %3578 = vmatprep.subr.mxu0 0.0
        %3579 = vmatpush2.msra.mxu0 0.0
        %3580 = vmatprep.subr.mxu0 0.0
        %3581 = vmatpush2.msra.mxu0 0.0
        %3582 = vmatprep.subr.mxu0 0.0
        %3583 = vmatpush2.msra.mxu0 0.0
        %3584 = vmatprep.subr.mxu0 0.0
        %3585 = vmatpush2.msra.mxu0 0.0
        %3586 = vmatprep.subr.mxu0 0.0
        %3587 = vmatpush2.msra.mxu0 0.0
        %3588 = vmatprep.subr.mxu0 0.0
        %3589 = vmatpush2.msra.mxu0 0.0
        %3590 = vmatprep.subr.mxu0 0.0
        %3591 = vmatpush2.msra.mxu0 0.0
        %3592 = vmatprep.mubr.f32.mxu0 0.0
        %v3593 = vand.u32 %v3400, 4294901760
        %3594 = vmatmul.mubr.f32.gmra.mxu0 %v3593
        %v3595 = vpop.f32.mrf.mxu0
        %v3596 = vadd.f32 %v3485, %v3595
        %v3597 = vpop.f32.mrf.mxu0
        %3598 = vmatprep.mubr.f32.mxu0 0.0
        %v3599 = vand.u32 %v3403, 4294901760
        %3600 = vmatmul.mubr.f32.gmra.mxu0 %v3599
        %v3601 = vpop.f32.mrf.mxu0
        %v3602 = vadd.f32 %v3495, %v3601
        %v3603 = vpop.f32.mrf.mxu0
        %3604 = vmatprep.mubr.f32.mxu0 0.0
        %v3605 = vand.u32 %v3406, 4294901760
        %3606 = vmatmul.mubr.f32.gmra.mxu0 %v3605
        %v3607 = vpop.f32.mrf.mxu0
        %v3608 = vadd.f32 %v3505, %v3607
        %v3609 = vpop.f32.mrf.mxu0
        %3610 = vmatprep.mubr.f32.mxu0 0.0
        %v3611 = vand.u32 %v3409, 4294901760
        %3612 = vmatmul.mubr.f32.gmra.mxu0 %v3611
        %v3613 = vpop.f32.mrf.mxu0
        %v3614 = vadd.f32 %v3515, %v3613
        %v3615 = vpop.f32.mrf.mxu0
        %3616 = vdwg.mxu0
        %3617 = vmatprep.subr.mxu0 0.0
        %3618 = vmatpush1.msra.mxu0 0.0
        %3619 = vmatprep.subr.mxu0 0.0
        %3620 = vmatpush1.msra.mxu0 0.0
        %3621 = vmatprep.subr.mxu0 0.0
        %3622 = vmatpush1.msra.mxu0 0.0
        %3623 = vmatprep.subr.mxu0 0.0
        %3624 = vmatpush1.msra.mxu0 0.0
        %3625 = vmatprep.subr.mxu0 0.0
        %3626 = vmatpush1.msra.mxu0 0.0
        %3627 = vmatprep.subr.mxu0 0.0
        %3628 = vmatpush1.msra.mxu0 0.0
        %3629 = vmatprep.subr.mxu0 0.0
        %3630 = vmatpush1.msra.mxu0 0.0
        %3631 = vmatprep.subr.mxu0 0.0
        %3632 = vmatpush1.msra.mxu0 0.0
        %3633 = vmatprep.subr.mxu0 0.0
        %3634 = vmatpush1.msra.mxu0 0.0
        %3635 = vmatprep.subr.mxu0 0.0
        %3636 = vmatpush1.msra.mxu0 0.0
        %3637 = vmatprep.subr.mxu0 0.0
        %3638 = vmatpush1.msra.mxu0 0.0
        %3639 = vmatprep.subr.mxu0 0.0
        %3640 = vmatpush1.msra.mxu0 0.0
        %3641 = vmatprep.subr.mxu0 0.0
        %3642 = vmatpush1.msra.mxu0 0.0
        %3643 = vmatprep.subr.mxu0 0.0
        %3644 = vmatpush1.msra.mxu0 0.0
        %3645 = vmatprep.subr.mxu0 0.0
        %v3646 = vand.u32 %v3398, 4294901760
        %v3647 = vsub.f32 %v3398, %v3646
        %3648 = vmatpush1.msra.mxu0 %v3647
        %3649 = vmatprep.subr.mxu0 0.0
        %v3650 = vand.u32 %v3397, 4294901760
        %v3651 = vsub.f32 %v3397, %v3650
        %3652 = vmatpush1.msra.mxu0 %v3651
        %3653 = vmatprep.subr.mxu0 0.0
        %3654 = vmatpush2.msra.mxu0 0.0
        %3655 = vmatprep.subr.mxu0 0.0
        %3656 = vmatpush2.msra.mxu0 0.0
        %3657 = vmatprep.subr.mxu0 0.0
        %3658 = vmatpush2.msra.mxu0 0.0
        %3659 = vmatprep.subr.mxu0 0.0
        %3660 = vmatpush2.msra.mxu0 0.0
        %3661 = vmatprep.subr.mxu0 0.0
        %3662 = vmatpush2.msra.mxu0 0.0
        %3663 = vmatprep.subr.mxu0 0.0
        %3664 = vmatpush2.msra.mxu0 0.0
        %3665 = vmatprep.subr.mxu0 0.0
        %3666 = vmatpush2.msra.mxu0 0.0
        %3667 = vmatprep.subr.mxu0 0.0
        %3668 = vmatpush2.msra.mxu0 0.0
        %3669 = vmatprep.subr.mxu0 0.0
        %3670 = vmatpush2.msra.mxu0 0.0
        %3671 = vmatprep.subr.mxu0 0.0
        %3672 = vmatpush2.msra.mxu0 0.0
        %3673 = vmatprep.subr.mxu0 0.0
        %3674 = vmatpush2.msra.mxu0 0.0
        %3675 = vmatprep.subr.mxu0 0.0
        %3676 = vmatpush2.msra.mxu0 0.0
        %3677 = vmatprep.subr.mxu0 0.0
        %3678 = vmatpush2.msra.mxu0 0.0
        %3679 = vmatprep.subr.mxu0 0.0
        %3680 = vmatpush2.msra.mxu0 0.0
        %3681 = vmatprep.subr.mxu0 0.0
        %3682 = vmatpush2.msra.mxu0 0.0
        %3683 = vmatprep.subr.mxu0 0.0
        %3684 = vmatpush2.msra.mxu0 0.0
        %3685 = vmatprep.mubr.f32.mxu0 0.0
        %v3686 = vand.u32 %v3400, 4294901760
        %v3687 = vsub.f32 %v3400, %v3686
        %3688 = vmatmul.mubr.f32.gmra.mxu0 %v3687
        %v3689 = vpop.f32.mrf.mxu0
        %v3690 = vadd.f32 %v3596, %v3689
        %v3691 = vpop.f32.mrf.mxu0
        %3692 = vmatprep.mubr.f32.mxu0 0.0
        %v3693 = vand.u32 %v3403, 4294901760
        %v3694 = vsub.f32 %v3403, %v3693
        %3695 = vmatmul.mubr.f32.gmra.mxu0 %v3694
        %v3696 = vpop.f32.mrf.mxu0
        %v3697 = vadd.f32 %v3602, %v3696
        %v3698 = vpop.f32.mrf.mxu0
        %3699 = vmatprep.mubr.f32.mxu0 0.0
        %v3700 = vand.u32 %v3406, 4294901760
        %v3701 = vsub.f32 %v3406, %v3700
        %3702 = vmatmul.mubr.f32.gmra.mxu0 %v3701
        %v3703 = vpop.f32.mrf.mxu0
        %v3704 = vadd.f32 %v3608, %v3703
        %v3705 = vpop.f32.mrf.mxu0
        %3706 = vmatprep.mubr.f32.mxu0 0.0
        %v3707 = vand.u32 %v3409, 4294901760
        %v3708 = vsub.f32 %v3409, %v3707
        %3709 = vmatmul.mubr.f32.gmra.mxu0 %v3708
        %v3710 = vpop.f32.mrf.mxu0
        %v3711 = vadd.f32 %v3614, %v3710
        %v3712 = vpop.f32.mrf.mxu0
        %3713 = vdwg.mxu0
        %3714 = vmatprep.subr.mxu0 0.0
        %3715 = vmatpush1.msra.mxu0 0.0
        %3716 = vmatprep.subr.mxu0 0.0
        %3717 = vmatpush1.msra.mxu0 0.0
        %3718 = vmatprep.subr.mxu0 0.0
        %3719 = vmatpush1.msra.mxu0 0.0
        %3720 = vmatprep.subr.mxu0 0.0
        %3721 = vmatpush1.msra.mxu0 0.0
        %3722 = vmatprep.subr.mxu0 0.0
        %3723 = vmatpush1.msra.mxu0 0.0
        %3724 = vmatprep.subr.mxu0 0.0
        %3725 = vmatpush1.msra.mxu0 0.0
        %3726 = vmatprep.subr.mxu0 0.0
        %3727 = vmatpush1.msra.mxu0 0.0
        %3728 = vmatprep.subr.mxu0 0.0
        %3729 = vmatpush1.msra.mxu0 0.0
        %3730 = vmatprep.subr.mxu0 0.0
        %3731 = vmatpush1.msra.mxu0 0.0
        %3732 = vmatprep.subr.mxu0 0.0
        %3733 = vmatpush1.msra.mxu0 0.0
        %3734 = vmatprep.subr.mxu0 0.0
        %3735 = vmatpush1.msra.mxu0 0.0
        %3736 = vmatprep.subr.mxu0 0.0
        %3737 = vmatpush1.msra.mxu0 0.0
        %3738 = vmatprep.subr.mxu0 0.0
        %3739 = vmatpush1.msra.mxu0 0.0
        %3740 = vmatprep.subr.mxu0 0.0
        %3741 = vmatpush1.msra.mxu0 0.0
        %3742 = vmatprep.subr.mxu0 0.0
        %v3743 = vand.u32 %v3398, 4294901760
        %3744 = vmatpush1.msra.mxu0 %v3743
        %3745 = vmatprep.subr.mxu0 0.0
        %v3746 = vand.u32 %v3397, 4294901760
        %3747 = vmatpush1.msra.mxu0 %v3746
        %3748 = vmatprep.subr.mxu0 0.0
        %3749 = vmatpush2.msra.mxu0 0.0
        %3750 = vmatprep.subr.mxu0 0.0
        %3751 = vmatpush2.msra.mxu0 0.0
        %3752 = vmatprep.subr.mxu0 0.0
        %3753 = vmatpush2.msra.mxu0 0.0
        %3754 = vmatprep.subr.mxu0 0.0
        %3755 = vmatpush2.msra.mxu0 0.0
        %3756 = vmatprep.subr.mxu0 0.0
        %3757 = vmatpush2.msra.mxu0 0.0
        %3758 = vmatprep.subr.mxu0 0.0
        %3759 = vmatpush2.msra.mxu0 0.0
        %3760 = vmatprep.subr.mxu0 0.0
        %3761 = vmatpush2.msra.mxu0 0.0
        %3762 = vmatprep.subr.mxu0 0.0
        %3763 = vmatpush2.msra.mxu0 0.0
        %3764 = vmatprep.subr.mxu0 0.0
        %3765 = vmatpush2.msra.mxu0 0.0
        %3766 = vmatprep.subr.mxu0 0.0
        %3767 = vmatpush2.msra.mxu0 0.0
        %3768 = vmatprep.subr.mxu0 0.0
        %3769 = vmatpush2.msra.mxu0 0.0
        %3770 = vmatprep.subr.mxu0 0.0
        %3771 = vmatpush2.msra.mxu0 0.0
        %3772 = vmatprep.subr.mxu0 0.0
        %3773 = vmatpush2.msra.mxu0 0.0
        %3774 = vmatprep.subr.mxu0 0.0
        %3775 = vmatpush2.msra.mxu0 0.0
        %3776 = vmatprep.subr.mxu0 0.0
        %3777 = vmatpush2.msra.mxu0 0.0
        %3778 = vmatprep.subr.mxu0 0.0
        %3779 = vmatpush2.msra.mxu0 0.0
        %3780 = vmatprep.mubr.f32.mxu0 0.0
        %v3781 = vand.u32 %v3400, 4294901760
        %v3782 = vsub.f32 %v3400, %v3781
        %v3783 = vand.u32 %v3782, 4294901760
        %3784 = vmatmul.mubr.f32.gmra.mxu0 %v3783
        %v3785 = vpop.f32.mrf.mxu0
        %v3786 = vadd.f32 %v3690, %v3785
        %v3787 = vpop.f32.mrf.mxu0
        %3788 = vmatprep.mubr.f32.mxu0 0.0
        %v3789 = vand.u32 %v3403, 4294901760
        %v3790 = vsub.f32 %v3403, %v3789
        %v3791 = vand.u32 %v3790, 4294901760
        %3792 = vmatmul.mubr.f32.gmra.mxu0 %v3791
        %v3793 = vpop.f32.mrf.mxu0
        %v3794 = vadd.f32 %v3697, %v3793
        %v3795 = vpop.f32.mrf.mxu0
        %3796 = vmatprep.mubr.f32.mxu0 0.0
        %v3797 = vand.u32 %v3406, 4294901760
        %v3798 = vsub.f32 %v3406, %v3797
        %v3799 = vand.u32 %v3798, 4294901760
        %3800 = vmatmul.mubr.f32.gmra.mxu0 %v3799
        %v3801 = vpop.f32.mrf.mxu0
        %v3802 = vadd.f32 %v3704, %v3801
        %v3803 = vpop.f32.mrf.mxu0
        %3804 = vmatprep.mubr.f32.mxu0 0.0
        %v3805 = vand.u32 %v3409, 4294901760
        %v3806 = vsub.f32 %v3409, %v3805
        %v3807 = vand.u32 %v3806, 4294901760
        %3808 = vmatmul.mubr.f32.gmra.mxu0 %v3807
        %v3809 = vpop.f32.mrf.mxu0
        %v3810 = vadd.f32 %v3711, %v3809
        %v3811 = vpop.f32.mrf.mxu0
        %3812 = vdwg.mxu0
        %3813 = vmatprep.subr.mxu0 0.0
        %3814 = vmatpush1.msra.mxu0 0.0
        %3815 = vmatprep.subr.mxu0 0.0
        %3816 = vmatpush1.msra.mxu0 0.0
        %3817 = vmatprep.subr.mxu0 0.0
        %3818 = vmatpush1.msra.mxu0 0.0
        %3819 = vmatprep.subr.mxu0 0.0
        %3820 = vmatpush1.msra.mxu0 0.0
        %3821 = vmatprep.subr.mxu0 0.0
        %3822 = vmatpush1.msra.mxu0 0.0
        %3823 = vmatprep.subr.mxu0 0.0
        %3824 = vmatpush1.msra.mxu0 0.0
        %3825 = vmatprep.subr.mxu0 0.0
        %3826 = vmatpush1.msra.mxu0 0.0
        %3827 = vmatprep.subr.mxu0 0.0
        %3828 = vmatpush1.msra.mxu0 0.0
        %3829 = vmatprep.subr.mxu0 0.0
        %3830 = vmatpush1.msra.mxu0 0.0
        %3831 = vmatprep.subr.mxu0 0.0
        %3832 = vmatpush1.msra.mxu0 0.0
        %3833 = vmatprep.subr.mxu0 0.0
        %3834 = vmatpush1.msra.mxu0 0.0
        %3835 = vmatprep.subr.mxu0 0.0
        %3836 = vmatpush1.msra.mxu0 0.0
        %3837 = vmatprep.subr.mxu0 0.0
        %3838 = vmatpush1.msra.mxu0 0.0
        %3839 = vmatprep.subr.mxu0 0.0
        %3840 = vmatpush1.msra.mxu0 0.0
        %3841 = vmatprep.subr.mxu0 0.0
        %v3842 = vand.u32 %v3398, 4294901760
        %v3843 = vsub.f32 %v3398, %v3842
        %v3844 = vand.u32 %v3843, 4294901760
        %3845 = vmatpush1.msra.mxu0 %v3844
        %3846 = vmatprep.subr.mxu0 0.0
        %v3847 = vand.u32 %v3397, 4294901760
        %v3848 = vsub.f32 %v3397, %v3847
        %v3849 = vand.u32 %v3848, 4294901760
        %3850 = vmatpush1.msra.mxu0 %v3849
        %3851 = vmatprep.subr.mxu0 0.0
        %3852 = vmatpush2.msra.mxu0 0.0
        %3853 = vmatprep.subr.mxu0 0.0
        %3854 = vmatpush2.msra.mxu0 0.0
        %3855 = vmatprep.subr.mxu0 0.0
        %3856 = vmatpush2.msra.mxu0 0.0
        %3857 = vmatprep.subr.mxu0 0.0
        %3858 = vmatpush2.msra.mxu0 0.0
        %3859 = vmatprep.subr.mxu0 0.0
        %3860 = vmatpush2.msra.mxu0 0.0
        %3861 = vmatprep.subr.mxu0 0.0
        %3862 = vmatpush2.msra.mxu0 0.0
        %3863 = vmatprep.subr.mxu0 0.0
        %3864 = vmatpush2.msra.mxu0 0.0
        %3865 = vmatprep.subr.mxu0 0.0
        %3866 = vmatpush2.msra.mxu0 0.0
        %3867 = vmatprep.subr.mxu0 0.0
        %3868 = vmatpush2.msra.mxu0 0.0
        %3869 = vmatprep.subr.mxu0 0.0
        %3870 = vmatpush2.msra.mxu0 0.0
        %3871 = vmatprep.subr.mxu0 0.0
        %3872 = vmatpush2.msra.mxu0 0.0
        %3873 = vmatprep.subr.mxu0 0.0
        %3874 = vmatpush2.msra.mxu0 0.0
        %3875 = vmatprep.subr.mxu0 0.0
        %3876 = vmatpush2.msra.mxu0 0.0
        %3877 = vmatprep.subr.mxu0 0.0
        %3878 = vmatpush2.msra.mxu0 0.0
        %3879 = vmatprep.subr.mxu0 0.0
        %3880 = vmatpush2.msra.mxu0 0.0
        %3881 = vmatprep.subr.mxu0 0.0
        %3882 = vmatpush2.msra.mxu0 0.0
        %3883 = vmatprep.mubr.f32.mxu0 0.0
        %v3884 = vand.u32 %v3400, 4294901760
        %3885 = vmatmul.mubr.f32.gmra.mxu0 %v3884
        %v3886 = vpop.f32.mrf.mxu0
        %v3887 = vadd.f32 %v3786, %v3886
        %v3888 = vpop.f32.mrf.mxu0
        %3889 = vmatprep.mubr.f32.mxu0 0.0
        %v3890 = vand.u32 %v3403, 4294901760
        %3891 = vmatmul.mubr.f32.gmra.mxu0 %v3890
        %v3892 = vpop.f32.mrf.mxu0
        %v3893 = vadd.f32 %v3794, %v3892
        %v3894 = vpop.f32.mrf.mxu0
        %3895 = vmatprep.mubr.f32.mxu0 0.0
        %v3896 = vand.u32 %v3406, 4294901760
        %3897 = vmatmul.mubr.f32.gmra.mxu0 %v3896
        %v3898 = vpop.f32.mrf.mxu0
        %v3899 = vadd.f32 %v3802, %v3898
        %v3900 = vpop.f32.mrf.mxu0
        %3901 = vmatprep.mubr.f32.mxu0 0.0
        %v3902 = vand.u32 %v3409, 4294901760
        %3903 = vmatmul.mubr.f32.gmra.mxu0 %v3902
        %v3904 = vpop.f32.mrf.mxu0
        %v3905 = vadd.f32 %v3810, %v3904
        %v3906 = vpop.f32.mrf.mxu0
        %3907 = vdwg.mxu0
        %3908 = vmatprep.subr.mxu0 0.0
        %3909 = vmatpush1.msra.mxu0 0.0
        %3910 = vmatprep.subr.mxu0 0.0
        %3911 = vmatpush1.msra.mxu0 0.0
        %3912 = vmatprep.subr.mxu0 0.0
        %3913 = vmatpush1.msra.mxu0 0.0
        %3914 = vmatprep.subr.mxu0 0.0
        %3915 = vmatpush1.msra.mxu0 0.0
        %3916 = vmatprep.subr.mxu0 0.0
        %3917 = vmatpush1.msra.mxu0 0.0
        %3918 = vmatprep.subr.mxu0 0.0
        %3919 = vmatpush1.msra.mxu0 0.0
        %3920 = vmatprep.subr.mxu0 0.0
        %3921 = vmatpush1.msra.mxu0 0.0
        %3922 = vmatprep.subr.mxu0 0.0
        %3923 = vmatpush1.msra.mxu0 0.0
        %3924 = vmatprep.subr.mxu0 0.0
        %3925 = vmatpush1.msra.mxu0 0.0
        %3926 = vmatprep.subr.mxu0 0.0
        %3927 = vmatpush1.msra.mxu0 0.0
        %3928 = vmatprep.subr.mxu0 0.0
        %3929 = vmatpush1.msra.mxu0 0.0
        %3930 = vmatprep.subr.mxu0 0.0
        %3931 = vmatpush1.msra.mxu0 0.0
        %3932 = vmatprep.subr.mxu0 0.0
        %3933 = vmatpush1.msra.mxu0 0.0
        %3934 = vmatprep.subr.mxu0 0.0
        %3935 = vmatpush1.msra.mxu0 0.0
        %3936 = vmatprep.subr.mxu0 0.0
        %v3937 = vand.u32 %v3398, 4294901760
        %3938 = vmatpush1.msra.mxu0 %v3937
        %3939 = vmatprep.subr.mxu0 0.0
        %v3940 = vand.u32 %v3397, 4294901760
        %3941 = vmatpush1.msra.mxu0 %v3940
        %3942 = vmatprep.subr.mxu0 0.0
        %3943 = vmatpush2.msra.mxu0 0.0
        %3944 = vmatprep.subr.mxu0 0.0
        %3945 = vmatpush2.msra.mxu0 0.0
        %3946 = vmatprep.subr.mxu0 0.0
        %3947 = vmatpush2.msra.mxu0 0.0
        %3948 = vmatprep.subr.mxu0 0.0
        %3949 = vmatpush2.msra.mxu0 0.0
        %3950 = vmatprep.subr.mxu0 0.0
        %3951 = vmatpush2.msra.mxu0 0.0
        %3952 = vmatprep.subr.mxu0 0.0
        %3953 = vmatpush2.msra.mxu0 0.0
        %3954 = vmatprep.subr.mxu0 0.0
        %3955 = vmatpush2.msra.mxu0 0.0
        %3956 = vmatprep.subr.mxu0 0.0
        %3957 = vmatpush2.msra.mxu0 0.0
        %3958 = vmatprep.subr.mxu0 0.0
        %3959 = vmatpush2.msra.mxu0 0.0
        %3960 = vmatprep.subr.mxu0 0.0
        %3961 = vmatpush2.msra.mxu0 0.0
        %3962 = vmatprep.subr.mxu0 0.0
        %3963 = vmatpush2.msra.mxu0 0.0
        %3964 = vmatprep.subr.mxu0 0.0
        %3965 = vmatpush2.msra.mxu0 0.0
        %3966 = vmatprep.subr.mxu0 0.0
        %3967 = vmatpush2.msra.mxu0 0.0
        %3968 = vmatprep.subr.mxu0 0.0
        %3969 = vmatpush2.msra.mxu0 0.0
        %3970 = vmatprep.subr.mxu0 0.0
        %3971 = vmatpush2.msra.mxu0 0.0
        %3972 = vmatprep.subr.mxu0 0.0
        %3973 = vmatpush2.msra.mxu0 0.0
        %3974 = vmatprep.mubr.f32.mxu0 0.0
        %v3975 = vand.u32 %v3400, 4294901760
        %3976 = vmatmul.mubr.f32.gmra.mxu0 %v3975
        %v3977 = vpop.f32.mrf.mxu0
        %v3978 = vadd.f32 %v3887, %v3977
        %v3979 = vpop.f32.mrf.mxu0
        %3980 = vmatprep.mubr.f32.mxu0 0.0
        %v3981 = vand.u32 %v3403, 4294901760
        %3982 = vmatmul.mubr.f32.gmra.mxu0 %v3981
        %v3983 = vpop.f32.mrf.mxu0
        %v3984 = vadd.f32 %v3893, %v3983
        %v3985 = vpop.f32.mrf.mxu0
        %3986 = vmatprep.mubr.f32.mxu0 0.0
        %v3987 = vand.u32 %v3406, 4294901760
        %3988 = vmatmul.mubr.f32.gmra.mxu0 %v3987
        %v3989 = vpop.f32.mrf.mxu0
        %v3990 = vadd.f32 %v3899, %v3989
        %v3991 = vpop.f32.mrf.mxu0
        %3992 = vmatprep.mubr.f32.mxu0 0.0
        %v3993 = vand.u32 %v3409, 4294901760
        %3994 = vmatmul.mubr.f32.gmra.mxu0 %v3993
        %v3995 = vpop.f32.mrf.mxu0
        %v3996 = vadd.f32 %v3905, %v3995
        %v3997 = vpop.f32.mrf.mxu0
        %3998 = vdwg.mxu0
        %v3999 = vld [vmem:[%s241] sm:$0xff]
        %v4000 = vld [vmem:[%s241 + $0x8] sm:$0xff]
        %v4001 = vld [vmem:[%s241 + $0x10] sm:$0xff]
        %v4002 = vld [vmem:[%s241 + $0x18] sm:$0xff]
        %v4003 = vadd.f32 %v3999, %v3978
        %v4004 = vadd.f32 %v4000, %v3984
        %v4005 = vadd.f32 %v4001, %v3990
        %v4006 = vadd.f32 %v4002, %v3996
        %4007 = vst.msk [vmem:[%s241] sm:$0xff] %vm1522, %v4003
        %4008 = vst.msk [vmem:[%s241 + $0x8] sm:$0xff] %vm1522, %v4004
        %4009 = vst.msk [vmem:[%s241 + $0x10] sm:$0xff] %vm1522, %v4005
        %4010 = vst.msk [vmem:[%s241 + $0x18] sm:$0xff] %vm1522, %v4006
        %s4011 = scalar_lea.vmem %s225, 24 [#allocation2]
        %v4012 = vld [vmem:[%s4011] sm:$0xff]
        %s4013 = scalar_lea.vmem %s225, 56 [#allocation2]
        %v4014 = vld [vmem:[%s4013] sm:$0xff]
        %s4015 = scalar_lea.vmem %s225, 88 [#allocation2]
        %v4016 = vld [vmem:[%s4015] sm:$0xff]
        %s4017 = scalar_lea.vmem %s225, 120 [#allocation2]
        %v4018 = vld [vmem:[%s4017] sm:$0xff]
        %4019 = vmatprep.subr.mxu0 0.0
        %4020 = vmatpush1.msra.mxu0 0.0
        %4021 = vmatprep.subr.mxu0 0.0
        %4022 = vmatpush1.msra.mxu0 0.0
        %4023 = vmatprep.subr.mxu0 0.0
        %4024 = vmatpush1.msra.mxu0 0.0
        %4025 = vmatprep.subr.mxu0 0.0
        %4026 = vmatpush1.msra.mxu0 0.0
        %4027 = vmatprep.subr.mxu0 0.0
        %4028 = vmatpush1.msra.mxu0 0.0
        %4029 = vmatprep.subr.mxu0 0.0
        %4030 = vmatpush1.msra.mxu0 0.0
        %4031 = vmatprep.subr.mxu0 0.0
        %4032 = vmatpush1.msra.mxu0 0.0
        %4033 = vmatprep.subr.mxu0 0.0
        %4034 = vmatpush1.msra.mxu0 0.0
        %4035 = vmatprep.subr.mxu0 0.0
        %4036 = vmatpush1.msra.mxu0 0.0
        %4037 = vmatprep.subr.mxu0 0.0
        %4038 = vmatpush1.msra.mxu0 0.0
        %4039 = vmatprep.subr.mxu0 0.0
        %4040 = vmatpush1.msra.mxu0 0.0
        %4041 = vmatprep.subr.mxu0 0.0
        %4042 = vmatpush1.msra.mxu0 0.0
        %4043 = vmatprep.subr.mxu0 0.0
        %v4044 = vand.u32 %v4018, 4294901760
        %4045 = vmatpush1.msra.mxu0 %v4044
        %4046 = vmatprep.subr.mxu0 0.0
        %v4047 = vand.u32 %v4016, 4294901760
        %4048 = vmatpush1.msra.mxu0 %v4047
        %4049 = vmatprep.subr.mxu0 0.0
        %v4050 = vand.u32 %v4014, 4294901760
        %4051 = vmatpush1.msra.mxu0 %v4050
        %4052 = vmatprep.subr.mxu0 0.0
        %v4053 = vand.u32 %v4012, 4294901760
        %4054 = vmatpush1.msra.mxu0 %v4053
        %4055 = vmatprep.subr.mxu0 0.0
        %4056 = vmatpush2.msra.mxu0 0.0
        %4057 = vmatprep.subr.mxu0 0.0
        %4058 = vmatpush2.msra.mxu0 0.0
        %4059 = vmatprep.subr.mxu0 0.0
        %4060 = vmatpush2.msra.mxu0 0.0
        %4061 = vmatprep.subr.mxu0 0.0
        %4062 = vmatpush2.msra.mxu0 0.0
        %4063 = vmatprep.subr.mxu0 0.0
        %4064 = vmatpush2.msra.mxu0 0.0
        %4065 = vmatprep.subr.mxu0 0.0
        %4066 = vmatpush2.msra.mxu0 0.0
        %4067 = vmatprep.subr.mxu0 0.0
        %4068 = vmatpush2.msra.mxu0 0.0
        %4069 = vmatprep.subr.mxu0 0.0
        %4070 = vmatpush2.msra.mxu0 0.0
        %4071 = vmatprep.subr.mxu0 0.0
        %4072 = vmatpush2.msra.mxu0 0.0
        %4073 = vmatprep.subr.mxu0 0.0
        %4074 = vmatpush2.msra.mxu0 0.0
        %4075 = vmatprep.subr.mxu0 0.0
        %4076 = vmatpush2.msra.mxu0 0.0
        %4077 = vmatprep.subr.mxu0 0.0
        %4078 = vmatpush2.msra.mxu0 0.0
        %4079 = vmatprep.subr.mxu0 0.0
        %4080 = vmatpush2.msra.mxu0 0.0
        %4081 = vmatprep.subr.mxu0 0.0
        %4082 = vmatpush2.msra.mxu0 0.0
        %4083 = vmatprep.subr.mxu0 0.0
        %4084 = vmatpush2.msra.mxu0 0.0
        %4085 = vmatprep.subr.mxu0 0.0
        %4086 = vmatpush2.msra.mxu0 0.0
        %4087 = vmatprep.mubr.f32.mxu0 0.0
        %v4088 = vand.u32 %v288, 4294901760
        %v4089 = vsub.f32 %v288, %v4088
        %v4090 = vand.u32 %v4089, 4294901760
        %v4091 = vsub.f32 %v4089, %v4090
        %v4092 = vand.u32 %v4091, 4294901760
        %4093 = vmatmul.mubr.f32.gmra.mxu0 %v4092
        %v4094 = vpop.f32.mrf.mxu0
        %v4095 = vadd.f32 0.0, %v4094
        %v4096 = vpop.f32.mrf.mxu0
        %4097 = vmatprep.mubr.f32.mxu0 0.0
        %v4098 = vand.u32 %v291, 4294901760
        %v4099 = vsub.f32 %v291, %v4098
        %v4100 = vand.u32 %v4099, 4294901760
        %v4101 = vsub.f32 %v4099, %v4100
        %v4102 = vand.u32 %v4101, 4294901760
        %4103 = vmatmul.mubr.f32.gmra.mxu0 %v4102
        %v4104 = vpop.f32.mrf.mxu0
        %v4105 = vadd.f32 0.0, %v4104
        %v4106 = vpop.f32.mrf.mxu0
        %4107 = vmatprep.mubr.f32.mxu0 0.0
        %v4108 = vand.u32 %v294, 4294901760
        %v4109 = vsub.f32 %v294, %v4108
        %v4110 = vand.u32 %v4109, 4294901760
        %v4111 = vsub.f32 %v4109, %v4110
        %v4112 = vand.u32 %v4111, 4294901760
        %4113 = vmatmul.mubr.f32.gmra.mxu0 %v4112
        %v4114 = vpop.f32.mrf.mxu0
        %v4115 = vadd.f32 0.0, %v4114
        %v4116 = vpop.f32.mrf.mxu0
        %4117 = vmatprep.mubr.f32.mxu0 0.0
        %v4118 = vand.u32 %v297, 4294901760
        %v4119 = vsub.f32 %v297, %v4118
        %v4120 = vand.u32 %v4119, 4294901760
        %v4121 = vsub.f32 %v4119, %v4120
        %v4122 = vand.u32 %v4121, 4294901760
        %4123 = vmatmul.mubr.f32.gmra.mxu0 %v4122
        %v4124 = vpop.f32.mrf.mxu0
        %v4125 = vadd.f32 0.0, %v4124
        %v4126 = vpop.f32.mrf.mxu0
        %4127 = vdwg.mxu0
        %4128 = vmatprep.subr.mxu0 0.0
        %4129 = vmatpush1.msra.mxu0 0.0
        %4130 = vmatprep.subr.mxu0 0.0
        %4131 = vmatpush1.msra.mxu0 0.0
        %4132 = vmatprep.subr.mxu0 0.0
        %4133 = vmatpush1.msra.mxu0 0.0
        %4134 = vmatprep.subr.mxu0 0.0
        %4135 = vmatpush1.msra.mxu0 0.0
        %4136 = vmatprep.subr.mxu0 0.0
        %4137 = vmatpush1.msra.mxu0 0.0
        %4138 = vmatprep.subr.mxu0 0.0
        %4139 = vmatpush1.msra.mxu0 0.0
        %4140 = vmatprep.subr.mxu0 0.0
        %4141 = vmatpush1.msra.mxu0 0.0
        %4142 = vmatprep.subr.mxu0 0.0
        %4143 = vmatpush1.msra.mxu0 0.0
        %4144 = vmatprep.subr.mxu0 0.0
        %4145 = vmatpush1.msra.mxu0 0.0
        %4146 = vmatprep.subr.mxu0 0.0
        %4147 = vmatpush1.msra.mxu0 0.0
        %4148 = vmatprep.subr.mxu0 0.0
        %4149 = vmatpush1.msra.mxu0 0.0
        %4150 = vmatprep.subr.mxu0 0.0
        %4151 = vmatpush1.msra.mxu0 0.0
        %4152 = vmatprep.subr.mxu0 0.0
        %v4153 = vand.u32 %v4018, 4294901760
        %v4154 = vsub.f32 %v4018, %v4153
        %v4155 = vand.u32 %v4154, 4294901760
        %v4156 = vsub.f32 %v4154, %v4155
        %v4157 = vand.u32 %v4156, 4294901760
        %4158 = vmatpush1.msra.mxu0 %v4157
        %4159 = vmatprep.subr.mxu0 0.0
        %v4160 = vand.u32 %v4016, 4294901760
        %v4161 = vsub.f32 %v4016, %v4160
        %v4162 = vand.u32 %v4161, 4294901760
        %v4163 = vsub.f32 %v4161, %v4162
        %v4164 = vand.u32 %v4163, 4294901760
        %4165 = vmatpush1.msra.mxu0 %v4164
        %4166 = vmatprep.subr.mxu0 0.0
        %v4167 = vand.u32 %v4014, 4294901760
        %v4168 = vsub.f32 %v4014, %v4167
        %v4169 = vand.u32 %v4168, 4294901760
        %v4170 = vsub.f32 %v4168, %v4169
        %v4171 = vand.u32 %v4170, 4294901760
        %4172 = vmatpush1.msra.mxu0 %v4171
        %4173 = vmatprep.subr.mxu0 0.0
        %v4174 = vand.u32 %v4012, 4294901760
        %v4175 = vsub.f32 %v4012, %v4174
        %v4176 = vand.u32 %v4175, 4294901760
        %v4177 = vsub.f32 %v4175, %v4176
        %v4178 = vand.u32 %v4177, 4294901760
        %4179 = vmatpush1.msra.mxu0 %v4178
        %4180 = vmatprep.subr.mxu0 0.0
        %4181 = vmatpush2.msra.mxu0 0.0
        %4182 = vmatprep.subr.mxu0 0.0
        %4183 = vmatpush2.msra.mxu0 0.0
        %4184 = vmatprep.subr.mxu0 0.0
        %4185 = vmatpush2.msra.mxu0 0.0
        %4186 = vmatprep.subr.mxu0 0.0
        %4187 = vmatpush2.msra.mxu0 0.0
        %4188 = vmatprep.subr.mxu0 0.0
        %4189 = vmatpush2.msra.mxu0 0.0
        %4190 = vmatprep.subr.mxu0 0.0
        %4191 = vmatpush2.msra.mxu0 0.0
        %4192 = vmatprep.subr.mxu0 0.0
        %4193 = vmatpush2.msra.mxu0 0.0
        %4194 = vmatprep.subr.mxu0 0.0
        %4195 = vmatpush2.msra.mxu0 0.0
        %4196 = vmatprep.subr.mxu0 0.0
        %4197 = vmatpush2.msra.mxu0 0.0
        %4198 = vmatprep.subr.mxu0 0.0
        %4199 = vmatpush2.msra.mxu0 0.0
        %4200 = vmatprep.subr.mxu0 0.0
        %4201 = vmatpush2.msra.mxu0 0.0
        %4202 = vmatprep.subr.mxu0 0.0
        %4203 = vmatpush2.msra.mxu0 0.0
        %4204 = vmatprep.subr.mxu0 0.0
        %4205 = vmatpush2.msra.mxu0 0.0
        %4206 = vmatprep.subr.mxu0 0.0
        %4207 = vmatpush2.msra.mxu0 0.0
        %4208 = vmatprep.subr.mxu0 0.0
        %4209 = vmatpush2.msra.mxu0 0.0
        %4210 = vmatprep.subr.mxu0 0.0
        %4211 = vmatpush2.msra.mxu0 0.0
        %4212 = vmatprep.mubr.f32.mxu0 0.0
        %v4213 = vand.u32 %v288, 4294901760
        %4214 = vmatmul.mubr.f32.gmra.mxu0 %v4213
        %v4215 = vpop.f32.mrf.mxu0
        %v4216 = vadd.f32 %v4095, %v4215
        %v4217 = vpop.f32.mrf.mxu0
        %4218 = vmatprep.mubr.f32.mxu0 0.0
        %v4219 = vand.u32 %v291, 4294901760
        %4220 = vmatmul.mubr.f32.gmra.mxu0 %v4219
        %v4221 = vpop.f32.mrf.mxu0
        %v4222 = vadd.f32 %v4105, %v4221
        %v4223 = vpop.f32.mrf.mxu0
        %4224 = vmatprep.mubr.f32.mxu0 0.0
        %v4225 = vand.u32 %v294, 4294901760
        %4226 = vmatmul.mubr.f32.gmra.mxu0 %v4225
        %v4227 = vpop.f32.mrf.mxu0
        %v4228 = vadd.f32 %v4115, %v4227
        %v4229 = vpop.f32.mrf.mxu0
        %4230 = vmatprep.mubr.f32.mxu0 0.0
        %v4231 = vand.u32 %v297, 4294901760
        %4232 = vmatmul.mubr.f32.gmra.mxu0 %v4231
        %v4233 = vpop.f32.mrf.mxu0
        %v4234 = vadd.f32 %v4125, %v4233
        %v4235 = vpop.f32.mrf.mxu0
        %4236 = vdwg.mxu0
        %4237 = vmatprep.subr.mxu0 0.0
        %4238 = vmatpush1.msra.mxu0 0.0
        %4239 = vmatprep.subr.mxu0 0.0
        %4240 = vmatpush1.msra.mxu0 0.0
        %4241 = vmatprep.subr.mxu0 0.0
        %4242 = vmatpush1.msra.mxu0 0.0
        %4243 = vmatprep.subr.mxu0 0.0
        %4244 = vmatpush1.msra.mxu0 0.0
        %4245 = vmatprep.subr.mxu0 0.0
        %4246 = vmatpush1.msra.mxu0 0.0
        %4247 = vmatprep.subr.mxu0 0.0
        %4248 = vmatpush1.msra.mxu0 0.0
        %4249 = vmatprep.subr.mxu0 0.0
        %4250 = vmatpush1.msra.mxu0 0.0
        %4251 = vmatprep.subr.mxu0 0.0
        %4252 = vmatpush1.msra.mxu0 0.0
        %4253 = vmatprep.subr.mxu0 0.0
        %4254 = vmatpush1.msra.mxu0 0.0
        %4255 = vmatprep.subr.mxu0 0.0
        %4256 = vmatpush1.msra.mxu0 0.0
        %4257 = vmatprep.subr.mxu0 0.0
        %4258 = vmatpush1.msra.mxu0 0.0
        %4259 = vmatprep.subr.mxu0 0.0
        %4260 = vmatpush1.msra.mxu0 0.0
        %4261 = vmatprep.subr.mxu0 0.0
        %v4262 = vand.u32 %v4018, 4294901760
        %v4263 = vsub.f32 %v4018, %v4262
        %4264 = vmatpush1.msra.mxu0 %v4263
        %4265 = vmatprep.subr.mxu0 0.0
        %v4266 = vand.u32 %v4016, 4294901760
        %v4267 = vsub.f32 %v4016, %v4266
        %4268 = vmatpush1.msra.mxu0 %v4267
        %4269 = vmatprep.subr.mxu0 0.0
        %v4270 = vand.u32 %v4014, 4294901760
        %v4271 = vsub.f32 %v4014, %v4270
        %4272 = vmatpush1.msra.mxu0 %v4271
        %4273 = vmatprep.subr.mxu0 0.0
        %v4274 = vand.u32 %v4012, 4294901760
        %v4275 = vsub.f32 %v4012, %v4274
        %4276 = vmatpush1.msra.mxu0 %v4275
        %4277 = vmatprep.subr.mxu0 0.0
        %4278 = vmatpush2.msra.mxu0 0.0
        %4279 = vmatprep.subr.mxu0 0.0
        %4280 = vmatpush2.msra.mxu0 0.0
        %4281 = vmatprep.subr.mxu0 0.0
        %4282 = vmatpush2.msra.mxu0 0.0
        %4283 = vmatprep.subr.mxu0 0.0
        %4284 = vmatpush2.msra.mxu0 0.0
        %4285 = vmatprep.subr.mxu0 0.0
        %4286 = vmatpush2.msra.mxu0 0.0
        %4287 = vmatprep.subr.mxu0 0.0
        %4288 = vmatpush2.msra.mxu0 0.0
        %4289 = vmatprep.subr.mxu0 0.0
        %4290 = vmatpush2.msra.mxu0 0.0
        %4291 = vmatprep.subr.mxu0 0.0
        %4292 = vmatpush2.msra.mxu0 0.0
        %4293 = vmatprep.subr.mxu0 0.0
        %4294 = vmatpush2.msra.mxu0 0.0
        %4295 = vmatprep.subr.mxu0 0.0
        %4296 = vmatpush2.msra.mxu0 0.0
        %4297 = vmatprep.subr.mxu0 0.0
        %4298 = vmatpush2.msra.mxu0 0.0
        %4299 = vmatprep.subr.mxu0 0.0
        %4300 = vmatpush2.msra.mxu0 0.0
        %4301 = vmatprep.subr.mxu0 0.0
        %4302 = vmatpush2.msra.mxu0 0.0
        %4303 = vmatprep.subr.mxu0 0.0
        %4304 = vmatpush2.msra.mxu0 0.0
        %4305 = vmatprep.subr.mxu0 0.0
        %4306 = vmatpush2.msra.mxu0 0.0
        %4307 = vmatprep.subr.mxu0 0.0
        %4308 = vmatpush2.msra.mxu0 0.0
        %4309 = vmatprep.mubr.f32.mxu0 0.0
        %v4310 = vand.u32 %v288, 4294901760
        %v4311 = vsub.f32 %v288, %v4310
        %4312 = vmatmul.mubr.f32.gmra.mxu0 %v4311
        %v4313 = vpop.f32.mrf.mxu0
        %v4314 = vadd.f32 %v4216, %v4313
        %v4315 = vpop.f32.mrf.mxu0
        %4316 = vmatprep.mubr.f32.mxu0 0.0
        %v4317 = vand.u32 %v291, 4294901760
        %v4318 = vsub.f32 %v291, %v4317
        %4319 = vmatmul.mubr.f32.gmra.mxu0 %v4318
        %v4320 = vpop.f32.mrf.mxu0
        %v4321 = vadd.f32 %v4222, %v4320
        %v4322 = vpop.f32.mrf.mxu0
        %4323 = vmatprep.mubr.f32.mxu0 0.0
        %v4324 = vand.u32 %v294, 4294901760
        %v4325 = vsub.f32 %v294, %v4324
        %4326 = vmatmul.mubr.f32.gmra.mxu0 %v4325
        %v4327 = vpop.f32.mrf.mxu0
        %v4328 = vadd.f32 %v4228, %v4327
        %v4329 = vpop.f32.mrf.mxu0
        %4330 = vmatprep.mubr.f32.mxu0 0.0
        %v4331 = vand.u32 %v297, 4294901760
        %v4332 = vsub.f32 %v297, %v4331
        %4333 = vmatmul.mubr.f32.gmra.mxu0 %v4332
        %v4334 = vpop.f32.mrf.mxu0
        %v4335 = vadd.f32 %v4234, %v4334
        %v4336 = vpop.f32.mrf.mxu0
        %4337 = vdwg.mxu0
        %4338 = vmatprep.subr.mxu0 0.0
        %4339 = vmatpush1.msra.mxu0 0.0
        %4340 = vmatprep.subr.mxu0 0.0
        %4341 = vmatpush1.msra.mxu0 0.0
        %4342 = vmatprep.subr.mxu0 0.0
        %4343 = vmatpush1.msra.mxu0 0.0
        %4344 = vmatprep.subr.mxu0 0.0
        %4345 = vmatpush1.msra.mxu0 0.0
        %4346 = vmatprep.subr.mxu0 0.0
        %4347 = vmatpush1.msra.mxu0 0.0
        %4348 = vmatprep.subr.mxu0 0.0
        %4349 = vmatpush1.msra.mxu0 0.0
        %4350 = vmatprep.subr.mxu0 0.0
        %4351 = vmatpush1.msra.mxu0 0.0
        %4352 = vmatprep.subr.mxu0 0.0
        %4353 = vmatpush1.msra.mxu0 0.0
        %4354 = vmatprep.subr.mxu0 0.0
        %4355 = vmatpush1.msra.mxu0 0.0
        %4356 = vmatprep.subr.mxu0 0.0
        %4357 = vmatpush1.msra.mxu0 0.0
        %4358 = vmatprep.subr.mxu0 0.0
        %4359 = vmatpush1.msra.mxu0 0.0
        %4360 = vmatprep.subr.mxu0 0.0
        %4361 = vmatpush1.msra.mxu0 0.0
        %4362 = vmatprep.subr.mxu0 0.0
        %v4363 = vand.u32 %v4018, 4294901760
        %4364 = vmatpush1.msra.mxu0 %v4363
        %4365 = vmatprep.subr.mxu0 0.0
        %v4366 = vand.u32 %v4016, 4294901760
        %4367 = vmatpush1.msra.mxu0 %v4366
        %4368 = vmatprep.subr.mxu0 0.0
        %v4369 = vand.u32 %v4014, 4294901760
        %4370 = vmatpush1.msra.mxu0 %v4369
        %4371 = vmatprep.subr.mxu0 0.0
        %v4372 = vand.u32 %v4012, 4294901760
        %4373 = vmatpush1.msra.mxu0 %v4372
        %4374 = vmatprep.subr.mxu0 0.0
        %4375 = vmatpush2.msra.mxu0 0.0
        %4376 = vmatprep.subr.mxu0 0.0
        %4377 = vmatpush2.msra.mxu0 0.0
        %4378 = vmatprep.subr.mxu0 0.0
        %4379 = vmatpush2.msra.mxu0 0.0
        %4380 = vmatprep.subr.mxu0 0.0
        %4381 = vmatpush2.msra.mxu0 0.0
        %4382 = vmatprep.subr.mxu0 0.0
        %4383 = vmatpush2.msra.mxu0 0.0
        %4384 = vmatprep.subr.mxu0 0.0
        %4385 = vmatpush2.msra.mxu0 0.0
        %4386 = vmatprep.subr.mxu0 0.0
        %4387 = vmatpush2.msra.mxu0 0.0
        %4388 = vmatprep.subr.mxu0 0.0
        %4389 = vmatpush2.msra.mxu0 0.0
        %4390 = vmatprep.subr.mxu0 0.0
        %4391 = vmatpush2.msra.mxu0 0.0
        %4392 = vmatprep.subr.mxu0 0.0
        %4393 = vmatpush2.msra.mxu0 0.0
        %4394 = vmatprep.subr.mxu0 0.0
        %4395 = vmatpush2.msra.mxu0 0.0
        %4396 = vmatprep.subr.mxu0 0.0
        %4397 = vmatpush2.msra.mxu0 0.0
        %4398 = vmatprep.subr.mxu0 0.0
        %4399 = vmatpush2.msra.mxu0 0.0
        %4400 = vmatprep.subr.mxu0 0.0
        %4401 = vmatpush2.msra.mxu0 0.0
        %4402 = vmatprep.subr.mxu0 0.0
        %4403 = vmatpush2.msra.mxu0 0.0
        %4404 = vmatprep.subr.mxu0 0.0
        %4405 = vmatpush2.msra.mxu0 0.0
        %4406 = vmatprep.mubr.f32.mxu0 0.0
        %v4407 = vand.u32 %v288, 4294901760
        %v4408 = vsub.f32 %v288, %v4407
        %v4409 = vand.u32 %v4408, 4294901760
        %4410 = vmatmul.mubr.f32.gmra.mxu0 %v4409
        %v4411 = vpop.f32.mrf.mxu0
        %v4412 = vadd.f32 %v4314, %v4411
        %v4413 = vpop.f32.mrf.mxu0
        %4414 = vmatprep.mubr.f32.mxu0 0.0
        %v4415 = vand.u32 %v291, 4294901760
        %v4416 = vsub.f32 %v291, %v4415
        %v4417 = vand.u32 %v4416, 4294901760
        %4418 = vmatmul.mubr.f32.gmra.mxu0 %v4417
        %v4419 = vpop.f32.mrf.mxu0
        %v4420 = vadd.f32 %v4321, %v4419
        %v4421 = vpop.f32.mrf.mxu0
        %4422 = vmatprep.mubr.f32.mxu0 0.0
        %v4423 = vand.u32 %v294, 4294901760
        %v4424 = vsub.f32 %v294, %v4423
        %v4425 = vand.u32 %v4424, 4294901760
        %4426 = vmatmul.mubr.f32.gmra.mxu0 %v4425
        %v4427 = vpop.f32.mrf.mxu0
        %v4428 = vadd.f32 %v4328, %v4427
        %v4429 = vpop.f32.mrf.mxu0
        %4430 = vmatprep.mubr.f32.mxu0 0.0
        %v4431 = vand.u32 %v297, 4294901760
        %v4432 = vsub.f32 %v297, %v4431
        %v4433 = vand.u32 %v4432, 4294901760
        %4434 = vmatmul.mubr.f32.gmra.mxu0 %v4433
        %v4435 = vpop.f32.mrf.mxu0
        %v4436 = vadd.f32 %v4335, %v4435
        %v4437 = vpop.f32.mrf.mxu0
        %4438 = vdwg.mxu0
        %4439 = vmatprep.subr.mxu0 0.0
        %4440 = vmatpush1.msra.mxu0 0.0
        %4441 = vmatprep.subr.mxu0 0.0
        %4442 = vmatpush1.msra.mxu0 0.0
        %4443 = vmatprep.subr.mxu0 0.0
        %4444 = vmatpush1.msra.mxu0 0.0
        %4445 = vmatprep.subr.mxu0 0.0
        %4446 = vmatpush1.msra.mxu0 0.0
        %4447 = vmatprep.subr.mxu0 0.0
        %4448 = vmatpush1.msra.mxu0 0.0
        %4449 = vmatprep.subr.mxu0 0.0
        %4450 = vmatpush1.msra.mxu0 0.0
        %4451 = vmatprep.subr.mxu0 0.0
        %4452 = vmatpush1.msra.mxu0 0.0
        %4453 = vmatprep.subr.mxu0 0.0
        %4454 = vmatpush1.msra.mxu0 0.0
        %4455 = vmatprep.subr.mxu0 0.0
        %4456 = vmatpush1.msra.mxu0 0.0
        %4457 = vmatprep.subr.mxu0 0.0
        %4458 = vmatpush1.msra.mxu0 0.0
        %4459 = vmatprep.subr.mxu0 0.0
        %4460 = vmatpush1.msra.mxu0 0.0
        %4461 = vmatprep.subr.mxu0 0.0
        %4462 = vmatpush1.msra.mxu0 0.0
        %4463 = vmatprep.subr.mxu0 0.0
        %v4464 = vand.u32 %v4018, 4294901760
        %v4465 = vsub.f32 %v4018, %v4464
        %v4466 = vand.u32 %v4465, 4294901760
        %4467 = vmatpush1.msra.mxu0 %v4466
        %4468 = vmatprep.subr.mxu0 0.0
        %v4469 = vand.u32 %v4016, 4294901760
        %v4470 = vsub.f32 %v4016, %v4469
        %v4471 = vand.u32 %v4470, 4294901760
        %4472 = vmatpush1.msra.mxu0 %v4471
        %4473 = vmatprep.subr.mxu0 0.0
        %v4474 = vand.u32 %v4014, 4294901760
        %v4475 = vsub.f32 %v4014, %v4474
        %v4476 = vand.u32 %v4475, 4294901760
        %4477 = vmatpush1.msra.mxu0 %v4476
        %4478 = vmatprep.subr.mxu0 0.0
        %v4479 = vand.u32 %v4012, 4294901760
        %v4480 = vsub.f32 %v4012, %v4479
        %v4481 = vand.u32 %v4480, 4294901760
        %4482 = vmatpush1.msra.mxu0 %v4481
        %4483 = vmatprep.subr.mxu0 0.0
        %4484 = vmatpush2.msra.mxu0 0.0
        %4485 = vmatprep.subr.mxu0 0.0
        %4486 = vmatpush2.msra.mxu0 0.0
        %4487 = vmatprep.subr.mxu0 0.0
        %4488 = vmatpush2.msra.mxu0 0.0
        %4489 = vmatprep.subr.mxu0 0.0
        %4490 = vmatpush2.msra.mxu0 0.0
        %4491 = vmatprep.subr.mxu0 0.0
        %4492 = vmatpush2.msra.mxu0 0.0
        %4493 = vmatprep.subr.mxu0 0.0
        %4494 = vmatpush2.msra.mxu0 0.0
        %4495 = vmatprep.subr.mxu0 0.0
        %4496 = vmatpush2.msra.mxu0 0.0
        %4497 = vmatprep.subr.mxu0 0.0
        %4498 = vmatpush2.msra.mxu0 0.0
        %4499 = vmatprep.subr.mxu0 0.0
        %4500 = vmatpush2.msra.mxu0 0.0
        %4501 = vmatprep.subr.mxu0 0.0
        %4502 = vmatpush2.msra.mxu0 0.0
        %4503 = vmatprep.subr.mxu0 0.0
        %4504 = vmatpush2.msra.mxu0 0.0
        %4505 = vmatprep.subr.mxu0 0.0
        %4506 = vmatpush2.msra.mxu0 0.0
        %4507 = vmatprep.subr.mxu0 0.0
        %4508 = vmatpush2.msra.mxu0 0.0
        %4509 = vmatprep.subr.mxu0 0.0
        %4510 = vmatpush2.msra.mxu0 0.0
        %4511 = vmatprep.subr.mxu0 0.0
        %4512 = vmatpush2.msra.mxu0 0.0
        %4513 = vmatprep.subr.mxu0 0.0
        %4514 = vmatpush2.msra.mxu0 0.0
        %4515 = vmatprep.mubr.f32.mxu0 0.0
        %v4516 = vand.u32 %v288, 4294901760
        %4517 = vmatmul.mubr.f32.gmra.mxu0 %v4516
        %v4518 = vpop.f32.mrf.mxu0
        %v4519 = vadd.f32 %v4412, %v4518
        %v4520 = vpop.f32.mrf.mxu0
        %4521 = vmatprep.mubr.f32.mxu0 0.0
        %v4522 = vand.u32 %v291, 4294901760
        %4523 = vmatmul.mubr.f32.gmra.mxu0 %v4522
        %v4524 = vpop.f32.mrf.mxu0
        %v4525 = vadd.f32 %v4420, %v4524
        %v4526 = vpop.f32.mrf.mxu0
        %4527 = vmatprep.mubr.f32.mxu0 0.0
        %v4528 = vand.u32 %v294, 4294901760
        %4529 = vmatmul.mubr.f32.gmra.mxu0 %v4528
        %v4530 = vpop.f32.mrf.mxu0
        %v4531 = vadd.f32 %v4428, %v4530
        %v4532 = vpop.f32.mrf.mxu0
        %4533 = vmatprep.mubr.f32.mxu0 0.0
        %v4534 = vand.u32 %v297, 4294901760
        %4535 = vmatmul.mubr.f32.gmra.mxu0 %v4534
        %v4536 = vpop.f32.mrf.mxu0
        %v4537 = vadd.f32 %v4436, %v4536
        %v4538 = vpop.f32.mrf.mxu0
        %4539 = vdwg.mxu0
        %4540 = vmatprep.subr.mxu0 0.0
        %4541 = vmatpush1.msra.mxu0 0.0
        %4542 = vmatprep.subr.mxu0 0.0
        %4543 = vmatpush1.msra.mxu0 0.0
        %4544 = vmatprep.subr.mxu0 0.0
        %4545 = vmatpush1.msra.mxu0 0.0
        %4546 = vmatprep.subr.mxu0 0.0
        %4547 = vmatpush1.msra.mxu0 0.0
        %4548 = vmatprep.subr.mxu0 0.0
        %4549 = vmatpush1.msra.mxu0 0.0
        %4550 = vmatprep.subr.mxu0 0.0
        %4551 = vmatpush1.msra.mxu0 0.0
        %4552 = vmatprep.subr.mxu0 0.0
        %4553 = vmatpush1.msra.mxu0 0.0
        %4554 = vmatprep.subr.mxu0 0.0
        %4555 = vmatpush1.msra.mxu0 0.0
        %4556 = vmatprep.subr.mxu0 0.0
        %4557 = vmatpush1.msra.mxu0 0.0
        %4558 = vmatprep.subr.mxu0 0.0
        %4559 = vmatpush1.msra.mxu0 0.0
        %4560 = vmatprep.subr.mxu0 0.0
        %4561 = vmatpush1.msra.mxu0 0.0
        %4562 = vmatprep.subr.mxu0 0.0
        %4563 = vmatpush1.msra.mxu0 0.0
        %4564 = vmatprep.subr.mxu0 0.0
        %v4565 = vand.u32 %v4018, 4294901760
        %4566 = vmatpush1.msra.mxu0 %v4565
        %4567 = vmatprep.subr.mxu0 0.0
        %v4568 = vand.u32 %v4016, 4294901760
        %4569 = vmatpush1.msra.mxu0 %v4568
        %4570 = vmatprep.subr.mxu0 0.0
        %v4571 = vand.u32 %v4014, 4294901760
        %4572 = vmatpush1.msra.mxu0 %v4571
        %4573 = vmatprep.subr.mxu0 0.0
        %v4574 = vand.u32 %v4012, 4294901760
        %4575 = vmatpush1.msra.mxu0 %v4574
        %4576 = vmatprep.subr.mxu0 0.0
        %4577 = vmatpush2.msra.mxu0 0.0
        %4578 = vmatprep.subr.mxu0 0.0
        %4579 = vmatpush2.msra.mxu0 0.0
        %4580 = vmatprep.subr.mxu0 0.0
        %4581 = vmatpush2.msra.mxu0 0.0
        %4582 = vmatprep.subr.mxu0 0.0
        %4583 = vmatpush2.msra.mxu0 0.0
        %4584 = vmatprep.subr.mxu0 0.0
        %4585 = vmatpush2.msra.mxu0 0.0
        %4586 = vmatprep.subr.mxu0 0.0
        %4587 = vmatpush2.msra.mxu0 0.0
        %4588 = vmatprep.subr.mxu0 0.0
        %4589 = vmatpush2.msra.mxu0 0.0
        %4590 = vmatprep.subr.mxu0 0.0
        %4591 = vmatpush2.msra.mxu0 0.0
        %4592 = vmatprep.subr.mxu0 0.0
        %4593 = vmatpush2.msra.mxu0 0.0
        %4594 = vmatprep.subr.mxu0 0.0
        %4595 = vmatpush2.msra.mxu0 0.0
        %4596 = vmatprep.subr.mxu0 0.0
        %4597 = vmatpush2.msra.mxu0 0.0
        %4598 = vmatprep.subr.mxu0 0.0
        %4599 = vmatpush2.msra.mxu0 0.0
        %4600 = vmatprep.subr.mxu0 0.0
        %4601 = vmatpush2.msra.mxu0 0.0
        %4602 = vmatprep.subr.mxu0 0.0
        %4603 = vmatpush2.msra.mxu0 0.0
        %4604 = vmatprep.subr.mxu0 0.0
        %4605 = vmatpush2.msra.mxu0 0.0
        %4606 = vmatprep.subr.mxu0 0.0
        %4607 = vmatpush2.msra.mxu0 0.0
        %4608 = vmatprep.mubr.f32.mxu0 0.0
        %v4609 = vand.u32 %v288, 4294901760
        %4610 = vmatmul.mubr.f32.gmra.mxu0 %v4609
        %v4611 = vpop.f32.mrf.mxu0
        %v4612 = vadd.f32 %v4519, %v4611
        %v4613 = vpop.f32.mrf.mxu0
        %4614 = vmatprep.mubr.f32.mxu0 0.0
        %v4615 = vand.u32 %v291, 4294901760
        %4616 = vmatmul.mubr.f32.gmra.mxu0 %v4615
        %v4617 = vpop.f32.mrf.mxu0
        %v4618 = vadd.f32 %v4525, %v4617
        %v4619 = vpop.f32.mrf.mxu0
        %4620 = vmatprep.mubr.f32.mxu0 0.0
        %v4621 = vand.u32 %v294, 4294901760
        %4622 = vmatmul.mubr.f32.gmra.mxu0 %v4621
        %v4623 = vpop.f32.mrf.mxu0
        %v4624 = vadd.f32 %v4531, %v4623
        %v4625 = vpop.f32.mrf.mxu0
        %4626 = vmatprep.mubr.f32.mxu0 0.0
        %v4627 = vand.u32 %v297, 4294901760
        %4628 = vmatmul.mubr.f32.gmra.mxu0 %v4627
        %v4629 = vpop.f32.mrf.mxu0
        %v4630 = vadd.f32 %v4537, %v4629
        %v4631 = vpop.f32.mrf.mxu0
        %4632 = vdwg.mxu0
        %v4633 = vadd.s32 %v913, 3
        %v4634 = vadd.s32 %v914, 3
        %vm4635 = vcmp.eq.s32.totalorder %v250, %v4633
        %vm4636 = vcmp.eq.s32.totalorder %v250, %v4634
        %v4637 = vsel %vm4635, 1, 0
        %v4638 = vsel %vm4636, 1, 0
        %v4639 = vcvt.s32.f32 %v4637
        %v4640 = vcvt.s32.f32 %v4638
        %v4642 = vsel %vm921, %v4612, 0
        %v4645 = vsel %vm921, %v4618, 0
        %v4648 = vsel %vm921, %v4624, 0
        %v4651 = vsel %vm921, %v4630, 0
        %4653 = vmatprep.subr.mxu0 0.0
        %4654 = vmatpush1.msra.mxu0 0.0
        %4655 = vmatprep.subr.mxu0 0.0
        %4656 = vmatpush1.msra.mxu0 0.0
        %4657 = vmatprep.subr.mxu0 0.0
        %4658 = vmatpush1.msra.mxu0 0.0
        %4659 = vmatprep.subr.mxu0 0.0
        %4660 = vmatpush1.msra.mxu0 0.0
        %4661 = vmatprep.subr.mxu0 0.0
        %4662 = vmatpush1.msra.mxu0 0.0
        %4663 = vmatprep.subr.mxu0 0.0
        %4664 = vmatpush1.msra.mxu0 0.0
        %4665 = vmatprep.subr.mxu0 0.0
        %4666 = vmatpush1.msra.mxu0 0.0
        %4667 = vmatprep.subr.mxu0 0.0
        %4668 = vmatpush1.msra.mxu0 0.0
        %4669 = vmatprep.subr.mxu0 0.0
        %4670 = vmatpush1.msra.mxu0 0.0
        %4671 = vmatprep.subr.mxu0 0.0
        %4672 = vmatpush1.msra.mxu0 0.0
        %4673 = vmatprep.subr.mxu0 0.0
        %4674 = vmatpush1.msra.mxu0 0.0
        %4675 = vmatprep.subr.mxu0 0.0
        %4676 = vmatpush1.msra.mxu0 0.0
        %4677 = vmatprep.subr.mxu0 0.0
        %4678 = vmatpush1.msra.mxu0 0.0
        %4679 = vmatprep.subr.mxu0 0.0
        %4680 = vmatpush1.msra.mxu0 0.0
        %4681 = vmatprep.subr.mxu0 0.0
        %v4682 = vand.u32 %v4640, 4294901760
        %4683 = vmatpush1.msra.mxu0 %v4682
        %4684 = vmatprep.subr.mxu0 0.0
        %v4685 = vand.u32 %v4639, 4294901760
        %4686 = vmatpush1.msra.mxu0 %v4685
        %4687 = vmatprep.subr.mxu0 0.0
        %4688 = vmatpush2.msra.mxu0 0.0
        %4689 = vmatprep.subr.mxu0 0.0
        %4690 = vmatpush2.msra.mxu0 0.0
        %4691 = vmatprep.subr.mxu0 0.0
        %4692 = vmatpush2.msra.mxu0 0.0
        %4693 = vmatprep.subr.mxu0 0.0
        %4694 = vmatpush2.msra.mxu0 0.0
        %4695 = vmatprep.subr.mxu0 0.0
        %4696 = vmatpush2.msra.mxu0 0.0
        %4697 = vmatprep.subr.mxu0 0.0
        %4698 = vmatpush2.msra.mxu0 0.0
        %4699 = vmatprep.subr.mxu0 0.0
        %4700 = vmatpush2.msra.mxu0 0.0
        %4701 = vmatprep.subr.mxu0 0.0
        %4702 = vmatpush2.msra.mxu0 0.0
        %4703 = vmatprep.subr.mxu0 0.0
        %4704 = vmatpush2.msra.mxu0 0.0
        %4705 = vmatprep.subr.mxu0 0.0
        %4706 = vmatpush2.msra.mxu0 0.0
        %4707 = vmatprep.subr.mxu0 0.0
        %4708 = vmatpush2.msra.mxu0 0.0
        %4709 = vmatprep.subr.mxu0 0.0
        %4710 = vmatpush2.msra.mxu0 0.0
        %4711 = vmatprep.subr.mxu0 0.0
        %4712 = vmatpush2.msra.mxu0 0.0
        %4713 = vmatprep.subr.mxu0 0.0
        %4714 = vmatpush2.msra.mxu0 0.0
        %4715 = vmatprep.subr.mxu0 0.0
        %4716 = vmatpush2.msra.mxu0 0.0
        %4717 = vmatprep.subr.mxu0 0.0
        %4718 = vmatpush2.msra.mxu0 0.0
        %4719 = vmatprep.mubr.f32.mxu0 0.0
        %v4720 = vand.u32 %v4642, 4294901760
        %v4721 = vsub.f32 %v4642, %v4720
        %v4722 = vand.u32 %v4721, 4294901760
        %v4723 = vsub.f32 %v4721, %v4722
        %v4724 = vand.u32 %v4723, 4294901760
        %4725 = vmatmul.mubr.f32.gmra.mxu0 %v4724
        %v4726 = vpop.f32.mrf.mxu0
        %v4727 = vadd.f32 0.0, %v4726
        %v4728 = vpop.f32.mrf.mxu0
        %4729 = vmatprep.mubr.f32.mxu0 0.0
        %v4730 = vand.u32 %v4645, 4294901760
        %v4731 = vsub.f32 %v4645, %v4730
        %v4732 = vand.u32 %v4731, 4294901760
        %v4733 = vsub.f32 %v4731, %v4732
        %v4734 = vand.u32 %v4733, 4294901760
        %4735 = vmatmul.mubr.f32.gmra.mxu0 %v4734
        %v4736 = vpop.f32.mrf.mxu0
        %v4737 = vadd.f32 0.0, %v4736
        %v4738 = vpop.f32.mrf.mxu0
        %4739 = vmatprep.mubr.f32.mxu0 0.0
        %v4740 = vand.u32 %v4648, 4294901760
        %v4741 = vsub.f32 %v4648, %v4740
        %v4742 = vand.u32 %v4741, 4294901760
        %v4743 = vsub.f32 %v4741, %v4742
        %v4744 = vand.u32 %v4743, 4294901760
        %4745 = vmatmul.mubr.f32.gmra.mxu0 %v4744
        %v4746 = vpop.f32.mrf.mxu0
        %v4747 = vadd.f32 0.0, %v4746
        %v4748 = vpop.f32.mrf.mxu0
        %4749 = vmatprep.mubr.f32.mxu0 0.0
        %v4750 = vand.u32 %v4651, 4294901760
        %v4751 = vsub.f32 %v4651, %v4750
        %v4752 = vand.u32 %v4751, 4294901760
        %v4753 = vsub.f32 %v4751, %v4752
        %v4754 = vand.u32 %v4753, 4294901760
        %4755 = vmatmul.mubr.f32.gmra.mxu0 %v4754
        %v4756 = vpop.f32.mrf.mxu0
        %v4757 = vadd.f32 0.0, %v4756
        %v4758 = vpop.f32.mrf.mxu0
        %4759 = vdwg.mxu0
        %4760 = vmatprep.subr.mxu0 0.0
        %4761 = vmatpush1.msra.mxu0 0.0
        %4762 = vmatprep.subr.mxu0 0.0
        %4763 = vmatpush1.msra.mxu0 0.0
        %4764 = vmatprep.subr.mxu0 0.0
        %4765 = vmatpush1.msra.mxu0 0.0
        %4766 = vmatprep.subr.mxu0 0.0
        %4767 = vmatpush1.msra.mxu0 0.0
        %4768 = vmatprep.subr.mxu0 0.0
        %4769 = vmatpush1.msra.mxu0 0.0
        %4770 = vmatprep.subr.mxu0 0.0
        %4771 = vmatpush1.msra.mxu0 0.0
        %4772 = vmatprep.subr.mxu0 0.0
        %4773 = vmatpush1.msra.mxu0 0.0
        %4774 = vmatprep.subr.mxu0 0.0
        %4775 = vmatpush1.msra.mxu0 0.0
        %4776 = vmatprep.subr.mxu0 0.0
        %4777 = vmatpush1.msra.mxu0 0.0
        %4778 = vmatprep.subr.mxu0 0.0
        %4779 = vmatpush1.msra.mxu0 0.0
        %4780 = vmatprep.subr.mxu0 0.0
        %4781 = vmatpush1.msra.mxu0 0.0
        %4782 = vmatprep.subr.mxu0 0.0
        %4783 = vmatpush1.msra.mxu0 0.0
        %4784 = vmatprep.subr.mxu0 0.0
        %4785 = vmatpush1.msra.mxu0 0.0
        %4786 = vmatprep.subr.mxu0 0.0
        %4787 = vmatpush1.msra.mxu0 0.0
        %4788 = vmatprep.subr.mxu0 0.0
        %v4789 = vand.u32 %v4640, 4294901760
        %v4790 = vsub.f32 %v4640, %v4789
        %v4791 = vand.u32 %v4790, 4294901760
        %v4792 = vsub.f32 %v4790, %v4791
        %v4793 = vand.u32 %v4792, 4294901760
        %4794 = vmatpush1.msra.mxu0 %v4793
        %4795 = vmatprep.subr.mxu0 0.0
        %v4796 = vand.u32 %v4639, 4294901760
        %v4797 = vsub.f32 %v4639, %v4796
        %v4798 = vand.u32 %v4797, 4294901760
        %v4799 = vsub.f32 %v4797, %v4798
        %v4800 = vand.u32 %v4799, 4294901760
        %4801 = vmatpush1.msra.mxu0 %v4800
        %4802 = vmatprep.subr.mxu0 0.0
        %4803 = vmatpush2.msra.mxu0 0.0
        %4804 = vmatprep.subr.mxu0 0.0
        %4805 = vmatpush2.msra.mxu0 0.0
        %4806 = vmatprep.subr.mxu0 0.0
        %4807 = vmatpush2.msra.mxu0 0.0
        %4808 = vmatprep.subr.mxu0 0.0
        %4809 = vmatpush2.msra.mxu0 0.0
        %4810 = vmatprep.subr.mxu0 0.0
        %4811 = vmatpush2.msra.mxu0 0.0
        %4812 = vmatprep.subr.mxu0 0.0
        %4813 = vmatpush2.msra.mxu0 0.0
        %4814 = vmatprep.subr.mxu0 0.0
        %4815 = vmatpush2.msra.mxu0 0.0
        %4816 = vmatprep.subr.mxu0 0.0
        %4817 = vmatpush2.msra.mxu0 0.0
        %4818 = vmatprep.subr.mxu0 0.0
        %4819 = vmatpush2.msra.mxu0 0.0
        %4820 = vmatprep.subr.mxu0 0.0
        %4821 = vmatpush2.msra.mxu0 0.0
        %4822 = vmatprep.subr.mxu0 0.0
        %4823 = vmatpush2.msra.mxu0 0.0
        %4824 = vmatprep.subr.mxu0 0.0
        %4825 = vmatpush2.msra.mxu0 0.0
        %4826 = vmatprep.subr.mxu0 0.0
        %4827 = vmatpush2.msra.mxu0 0.0
        %4828 = vmatprep.subr.mxu0 0.0
        %4829 = vmatpush2.msra.mxu0 0.0
        %4830 = vmatprep.subr.mxu0 0.0
        %4831 = vmatpush2.msra.mxu0 0.0
        %4832 = vmatprep.subr.mxu0 0.0
        %4833 = vmatpush2.msra.mxu0 0.0
        %4834 = vmatprep.mubr.f32.mxu0 0.0
        %v4835 = vand.u32 %v4642, 4294901760
        %4836 = vmatmul.mubr.f32.gmra.mxu0 %v4835
        %v4837 = vpop.f32.mrf.mxu0
        %v4838 = vadd.f32 %v4727, %v4837
        %v4839 = vpop.f32.mrf.mxu0
        %4840 = vmatprep.mubr.f32.mxu0 0.0
        %v4841 = vand.u32 %v4645, 4294901760
        %4842 = vmatmul.mubr.f32.gmra.mxu0 %v4841
        %v4843 = vpop.f32.mrf.mxu0
        %v4844 = vadd.f32 %v4737, %v4843
        %v4845 = vpop.f32.mrf.mxu0
        %4846 = vmatprep.mubr.f32.mxu0 0.0
        %v4847 = vand.u32 %v4648, 4294901760
        %4848 = vmatmul.mubr.f32.gmra.mxu0 %v4847
        %v4849 = vpop.f32.mrf.mxu0
        %v4850 = vadd.f32 %v4747, %v4849
        %v4851 = vpop.f32.mrf.mxu0
        %4852 = vmatprep.mubr.f32.mxu0 0.0
        %v4853 = vand.u32 %v4651, 4294901760
        %4854 = vmatmul.mubr.f32.gmra.mxu0 %v4853
        %v4855 = vpop.f32.mrf.mxu0
        %v4856 = vadd.f32 %v4757, %v4855
        %v4857 = vpop.f32.mrf.mxu0
        %4858 = vdwg.mxu0
        %4859 = vmatprep.subr.mxu0 0.0
        %4860 = vmatpush1.msra.mxu0 0.0
        %4861 = vmatprep.subr.mxu0 0.0
        %4862 = vmatpush1.msra.mxu0 0.0
        %4863 = vmatprep.subr.mxu0 0.0
        %4864 = vmatpush1.msra.mxu0 0.0
        %4865 = vmatprep.subr.mxu0 0.0
        %4866 = vmatpush1.msra.mxu0 0.0
        %4867 = vmatprep.subr.mxu0 0.0
        %4868 = vmatpush1.msra.mxu0 0.0
        %4869 = vmatprep.subr.mxu0 0.0
        %4870 = vmatpush1.msra.mxu0 0.0
        %4871 = vmatprep.subr.mxu0 0.0
        %4872 = vmatpush1.msra.mxu0 0.0
        %4873 = vmatprep.subr.mxu0 0.0
        %4874 = vmatpush1.msra.mxu0 0.0
        %4875 = vmatprep.subr.mxu0 0.0
        %4876 = vmatpush1.msra.mxu0 0.0
        %4877 = vmatprep.subr.mxu0 0.0
        %4878 = vmatpush1.msra.mxu0 0.0
        %4879 = vmatprep.subr.mxu0 0.0
        %4880 = vmatpush1.msra.mxu0 0.0
        %4881 = vmatprep.subr.mxu0 0.0
        %4882 = vmatpush1.msra.mxu0 0.0
        %4883 = vmatprep.subr.mxu0 0.0
        %4884 = vmatpush1.msra.mxu0 0.0
        %4885 = vmatprep.subr.mxu0 0.0
        %4886 = vmatpush1.msra.mxu0 0.0
        %4887 = vmatprep.subr.mxu0 0.0
        %v4888 = vand.u32 %v4640, 4294901760
        %v4889 = vsub.f32 %v4640, %v4888
        %4890 = vmatpush1.msra.mxu0 %v4889
        %4891 = vmatprep.subr.mxu0 0.0
        %v4892 = vand.u32 %v4639, 4294901760
        %v4893 = vsub.f32 %v4639, %v4892
        %4894 = vmatpush1.msra.mxu0 %v4893
        %4895 = vmatprep.subr.mxu0 0.0
        %4896 = vmatpush2.msra.mxu0 0.0
        %4897 = vmatprep.subr.mxu0 0.0
        %4898 = vmatpush2.msra.mxu0 0.0
        %4899 = vmatprep.subr.mxu0 0.0
        %4900 = vmatpush2.msra.mxu0 0.0
        %4901 = vmatprep.subr.mxu0 0.0
        %4902 = vmatpush2.msra.mxu0 0.0
        %4903 = vmatprep.subr.mxu0 0.0
        %4904 = vmatpush2.msra.mxu0 0.0
        %4905 = vmatprep.subr.mxu0 0.0
        %4906 = vmatpush2.msra.mxu0 0.0
        %4907 = vmatprep.subr.mxu0 0.0
        %4908 = vmatpush2.msra.mxu0 0.0
        %4909 = vmatprep.subr.mxu0 0.0
        %4910 = vmatpush2.msra.mxu0 0.0
        %4911 = vmatprep.subr.mxu0 0.0
        %4912 = vmatpush2.msra.mxu0 0.0
        %4913 = vmatprep.subr.mxu0 0.0
        %4914 = vmatpush2.msra.mxu0 0.0
        %4915 = vmatprep.subr.mxu0 0.0
        %4916 = vmatpush2.msra.mxu0 0.0
        %4917 = vmatprep.subr.mxu0 0.0
        %4918 = vmatpush2.msra.mxu0 0.0
        %4919 = vmatprep.subr.mxu0 0.0
        %4920 = vmatpush2.msra.mxu0 0.0
        %4921 = vmatprep.subr.mxu0 0.0
        %4922 = vmatpush2.msra.mxu0 0.0
        %4923 = vmatprep.subr.mxu0 0.0
        %4924 = vmatpush2.msra.mxu0 0.0
        %4925 = vmatprep.subr.mxu0 0.0
        %4926 = vmatpush2.msra.mxu0 0.0
        %4927 = vmatprep.mubr.f32.mxu0 0.0
        %v4928 = vand.u32 %v4642, 4294901760
        %v4929 = vsub.f32 %v4642, %v4928
        %4930 = vmatmul.mubr.f32.gmra.mxu0 %v4929
        %v4931 = vpop.f32.mrf.mxu0
        %v4932 = vadd.f32 %v4838, %v4931
        %v4933 = vpop.f32.mrf.mxu0
        %4934 = vmatprep.mubr.f32.mxu0 0.0
        %v4935 = vand.u32 %v4645, 4294901760
        %v4936 = vsub.f32 %v4645, %v4935
        %4937 = vmatmul.mubr.f32.gmra.mxu0 %v4936
        %v4938 = vpop.f32.mrf.mxu0
        %v4939 = vadd.f32 %v4844, %v4938
        %v4940 = vpop.f32.mrf.mxu0
        %4941 = vmatprep.mubr.f32.mxu0 0.0
        %v4942 = vand.u32 %v4648, 4294901760
        %v4943 = vsub.f32 %v4648, %v4942
        %4944 = vmatmul.mubr.f32.gmra.mxu0 %v4943
        %v4945 = vpop.f32.mrf.mxu0
        %v4946 = vadd.f32 %v4850, %v4945
        %v4947 = vpop.f32.mrf.mxu0
        %4948 = vmatprep.mubr.f32.mxu0 0.0
        %v4949 = vand.u32 %v4651, 4294901760
        %v4950 = vsub.f32 %v4651, %v4949
        %4951 = vmatmul.mubr.f32.gmra.mxu0 %v4950
        %v4952 = vpop.f32.mrf.mxu0
        %v4953 = vadd.f32 %v4856, %v4952
        %v4954 = vpop.f32.mrf.mxu0
        %4955 = vdwg.mxu0
        %4956 = vmatprep.subr.mxu0 0.0
        %4957 = vmatpush1.msra.mxu0 0.0
        %4958 = vmatprep.subr.mxu0 0.0
        %4959 = vmatpush1.msra.mxu0 0.0
        %4960 = vmatprep.subr.mxu0 0.0
        %4961 = vmatpush1.msra.mxu0 0.0
        %4962 = vmatprep.subr.mxu0 0.0
        %4963 = vmatpush1.msra.mxu0 0.0
        %4964 = vmatprep.subr.mxu0 0.0
        %4965 = vmatpush1.msra.mxu0 0.0
        %4966 = vmatprep.subr.mxu0 0.0
        %4967 = vmatpush1.msra.mxu0 0.0
        %4968 = vmatprep.subr.mxu0 0.0
        %4969 = vmatpush1.msra.mxu0 0.0
        %4970 = vmatprep.subr.mxu0 0.0
        %4971 = vmatpush1.msra.mxu0 0.0
        %4972 = vmatprep.subr.mxu0 0.0
        %4973 = vmatpush1.msra.mxu0 0.0
        %4974 = vmatprep.subr.mxu0 0.0
        %4975 = vmatpush1.msra.mxu0 0.0
        %4976 = vmatprep.subr.mxu0 0.0
        %4977 = vmatpush1.msra.mxu0 0.0
        %4978 = vmatprep.subr.mxu0 0.0
        %4979 = vmatpush1.msra.mxu0 0.0
        %4980 = vmatprep.subr.mxu0 0.0
        %4981 = vmatpush1.msra.mxu0 0.0
        %4982 = vmatprep.subr.mxu0 0.0
        %4983 = vmatpush1.msra.mxu0 0.0
        %4984 = vmatprep.subr.mxu0 0.0
        %v4985 = vand.u32 %v4640, 4294901760
        %4986 = vmatpush1.msra.mxu0 %v4985
        %4987 = vmatprep.subr.mxu0 0.0
        %v4988 = vand.u32 %v4639, 4294901760
        %4989 = vmatpush1.msra.mxu0 %v4988
        %4990 = vmatprep.subr.mxu0 0.0
        %4991 = vmatpush2.msra.mxu0 0.0
        %4992 = vmatprep.subr.mxu0 0.0
        %4993 = vmatpush2.msra.mxu0 0.0
        %4994 = vmatprep.subr.mxu0 0.0
        %4995 = vmatpush2.msra.mxu0 0.0
        %4996 = vmatprep.subr.mxu0 0.0
        %4997 = vmatpush2.msra.mxu0 0.0
        %4998 = vmatprep.subr.mxu0 0.0
        %4999 = vmatpush2.msra.mxu0 0.0
        %5000 = vmatprep.subr.mxu0 0.0
        %5001 = vmatpush2.msra.mxu0 0.0
        %5002 = vmatprep.subr.mxu0 0.0
        %5003 = vmatpush2.msra.mxu0 0.0
        %5004 = vmatprep.subr.mxu0 0.0
        %5005 = vmatpush2.msra.mxu0 0.0
        %5006 = vmatprep.subr.mxu0 0.0
        %5007 = vmatpush2.msra.mxu0 0.0
        %5008 = vmatprep.subr.mxu0 0.0
        %5009 = vmatpush2.msra.mxu0 0.0
        %5010 = vmatprep.subr.mxu0 0.0
        %5011 = vmatpush2.msra.mxu0 0.0
        %5012 = vmatprep.subr.mxu0 0.0
        %5013 = vmatpush2.msra.mxu0 0.0
        %5014 = vmatprep.subr.mxu0 0.0
        %5015 = vmatpush2.msra.mxu0 0.0
        %5016 = vmatprep.subr.mxu0 0.0
        %5017 = vmatpush2.msra.mxu0 0.0
        %5018 = vmatprep.subr.mxu0 0.0
        %5019 = vmatpush2.msra.mxu0 0.0
        %5020 = vmatprep.subr.mxu0 0.0
        %5021 = vmatpush2.msra.mxu0 0.0
        %5022 = vmatprep.mubr.f32.mxu0 0.0
        %v5023 = vand.u32 %v4642, 4294901760
        %v5024 = vsub.f32 %v4642, %v5023
        %v5025 = vand.u32 %v5024, 4294901760
        %5026 = vmatmul.mubr.f32.gmra.mxu0 %v5025
        %v5027 = vpop.f32.mrf.mxu0
        %v5028 = vadd.f32 %v4932, %v5027
        %v5029 = vpop.f32.mrf.mxu0
        %5030 = vmatprep.mubr.f32.mxu0 0.0
        %v5031 = vand.u32 %v4645, 4294901760
        %v5032 = vsub.f32 %v4645, %v5031
        %v5033 = vand.u32 %v5032, 4294901760
        %5034 = vmatmul.mubr.f32.gmra.mxu0 %v5033
        %v5035 = vpop.f32.mrf.mxu0
        %v5036 = vadd.f32 %v4939, %v5035
        %v5037 = vpop.f32.mrf.mxu0
        %5038 = vmatprep.mubr.f32.mxu0 0.0
        %v5039 = vand.u32 %v4648, 4294901760
        %v5040 = vsub.f32 %v4648, %v5039
        %v5041 = vand.u32 %v5040, 4294901760
        %5042 = vmatmul.mubr.f32.gmra.mxu0 %v5041
        %v5043 = vpop.f32.mrf.mxu0
        %v5044 = vadd.f32 %v4946, %v5043
        %v5045 = vpop.f32.mrf.mxu0
        %5046 = vmatprep.mubr.f32.mxu0 0.0
        %v5047 = vand.u32 %v4651, 4294901760
        %v5048 = vsub.f32 %v4651, %v5047
        %v5049 = vand.u32 %v5048, 4294901760
        %5050 = vmatmul.mubr.f32.gmra.mxu0 %v5049
        %v5051 = vpop.f32.mrf.mxu0
        %v5052 = vadd.f32 %v4953, %v5051
        %v5053 = vpop.f32.mrf.mxu0
        %5054 = vdwg.mxu0
        %5055 = vmatprep.subr.mxu0 0.0
        %5056 = vmatpush1.msra.mxu0 0.0
        %5057 = vmatprep.subr.mxu0 0.0
        %5058 = vmatpush1.msra.mxu0 0.0
        %5059 = vmatprep.subr.mxu0 0.0
        %5060 = vmatpush1.msra.mxu0 0.0
        %5061 = vmatprep.subr.mxu0 0.0
        %5062 = vmatpush1.msra.mxu0 0.0
        %5063 = vmatprep.subr.mxu0 0.0
        %5064 = vmatpush1.msra.mxu0 0.0
        %5065 = vmatprep.subr.mxu0 0.0
        %5066 = vmatpush1.msra.mxu0 0.0
        %5067 = vmatprep.subr.mxu0 0.0
        %5068 = vmatpush1.msra.mxu0 0.0
        %5069 = vmatprep.subr.mxu0 0.0
        %5070 = vmatpush1.msra.mxu0 0.0
        %5071 = vmatprep.subr.mxu0 0.0
        %5072 = vmatpush1.msra.mxu0 0.0
        %5073 = vmatprep.subr.mxu0 0.0
        %5074 = vmatpush1.msra.mxu0 0.0
        %5075 = vmatprep.subr.mxu0 0.0
        %5076 = vmatpush1.msra.mxu0 0.0
        %5077 = vmatprep.subr.mxu0 0.0
        %5078 = vmatpush1.msra.mxu0 0.0
        %5079 = vmatprep.subr.mxu0 0.0
        %5080 = vmatpush1.msra.mxu0 0.0
        %5081 = vmatprep.subr.mxu0 0.0
        %5082 = vmatpush1.msra.mxu0 0.0
        %5083 = vmatprep.subr.mxu0 0.0
        %v5084 = vand.u32 %v4640, 4294901760
        %v5085 = vsub.f32 %v4640, %v5084
        %v5086 = vand.u32 %v5085, 4294901760
        %5087 = vmatpush1.msra.mxu0 %v5086
        %5088 = vmatprep.subr.mxu0 0.0
        %v5089 = vand.u32 %v4639, 4294901760
        %v5090 = vsub.f32 %v4639, %v5089
        %v5091 = vand.u32 %v5090, 4294901760
        %5092 = vmatpush1.msra.mxu0 %v5091
        %5093 = vmatprep.subr.mxu0 0.0
        %5094 = vmatpush2.msra.mxu0 0.0
        %5095 = vmatprep.subr.mxu0 0.0
        %5096 = vmatpush2.msra.mxu0 0.0
        %5097 = vmatprep.subr.mxu0 0.0
        %5098 = vmatpush2.msra.mxu0 0.0
        %5099 = vmatprep.subr.mxu0 0.0
        %5100 = vmatpush2.msra.mxu0 0.0
        %5101 = vmatprep.subr.mxu0 0.0
        %5102 = vmatpush2.msra.mxu0 0.0
        %5103 = vmatprep.subr.mxu0 0.0
        %5104 = vmatpush2.msra.mxu0 0.0
        %5105 = vmatprep.subr.mxu0 0.0
        %5106 = vmatpush2.msra.mxu0 0.0
        %5107 = vmatprep.subr.mxu0 0.0
        %5108 = vmatpush2.msra.mxu0 0.0
        %5109 = vmatprep.subr.mxu0 0.0
        %5110 = vmatpush2.msra.mxu0 0.0
        %5111 = vmatprep.subr.mxu0 0.0
        %5112 = vmatpush2.msra.mxu0 0.0
        %5113 = vmatprep.subr.mxu0 0.0
        %5114 = vmatpush2.msra.mxu0 0.0
        %5115 = vmatprep.subr.mxu0 0.0
        %5116 = vmatpush2.msra.mxu0 0.0
        %5117 = vmatprep.subr.mxu0 0.0
        %5118 = vmatpush2.msra.mxu0 0.0
        %5119 = vmatprep.subr.mxu0 0.0
        %5120 = vmatpush2.msra.mxu0 0.0
        %5121 = vmatprep.subr.mxu0 0.0
        %5122 = vmatpush2.msra.mxu0 0.0
        %5123 = vmatprep.subr.mxu0 0.0
        %5124 = vmatpush2.msra.mxu0 0.0
        %5125 = vmatprep.mubr.f32.mxu0 0.0
        %v5126 = vand.u32 %v4642, 4294901760
        %5127 = vmatmul.mubr.f32.gmra.mxu0 %v5126
        %v5128 = vpop.f32.mrf.mxu0
        %v5129 = vadd.f32 %v5028, %v5128
        %v5130 = vpop.f32.mrf.mxu0
        %5131 = vmatprep.mubr.f32.mxu0 0.0
        %v5132 = vand.u32 %v4645, 4294901760
        %5133 = vmatmul.mubr.f32.gmra.mxu0 %v5132
        %v5134 = vpop.f32.mrf.mxu0
        %v5135 = vadd.f32 %v5036, %v5134
        %v5136 = vpop.f32.mrf.mxu0
        %5137 = vmatprep.mubr.f32.mxu0 0.0
        %v5138 = vand.u32 %v4648, 4294901760
        %5139 = vmatmul.mubr.f32.gmra.mxu0 %v5138
        %v5140 = vpop.f32.mrf.mxu0
        %v5141 = vadd.f32 %v5044, %v5140
        %v5142 = vpop.f32.mrf.mxu0
        %5143 = vmatprep.mubr.f32.mxu0 0.0
        %v5144 = vand.u32 %v4651, 4294901760
        %5145 = vmatmul.mubr.f32.gmra.mxu0 %v5144
        %v5146 = vpop.f32.mrf.mxu0
        %v5147 = vadd.f32 %v5052, %v5146
        %v5148 = vpop.f32.mrf.mxu0
        %5149 = vdwg.mxu0
        %5150 = vmatprep.subr.mxu0 0.0
        %5151 = vmatpush1.msra.mxu0 0.0
        %5152 = vmatprep.subr.mxu0 0.0
        %5153 = vmatpush1.msra.mxu0 0.0
        %5154 = vmatprep.subr.mxu0 0.0
        %5155 = vmatpush1.msra.mxu0 0.0
        %5156 = vmatprep.subr.mxu0 0.0
        %5157 = vmatpush1.msra.mxu0 0.0
        %5158 = vmatprep.subr.mxu0 0.0
        %5159 = vmatpush1.msra.mxu0 0.0
        %5160 = vmatprep.subr.mxu0 0.0
        %5161 = vmatpush1.msra.mxu0 0.0
        %5162 = vmatprep.subr.mxu0 0.0
        %5163 = vmatpush1.msra.mxu0 0.0
        %5164 = vmatprep.subr.mxu0 0.0
        %5165 = vmatpush1.msra.mxu0 0.0
        %5166 = vmatprep.subr.mxu0 0.0
        %5167 = vmatpush1.msra.mxu0 0.0
        %5168 = vmatprep.subr.mxu0 0.0
        %5169 = vmatpush1.msra.mxu0 0.0
        %5170 = vmatprep.subr.mxu0 0.0
        %5171 = vmatpush1.msra.mxu0 0.0
        %5172 = vmatprep.subr.mxu0 0.0
        %5173 = vmatpush1.msra.mxu0 0.0
        %5174 = vmatprep.subr.mxu0 0.0
        %5175 = vmatpush1.msra.mxu0 0.0
        %5176 = vmatprep.subr.mxu0 0.0
        %5177 = vmatpush1.msra.mxu0 0.0
        %5178 = vmatprep.subr.mxu0 0.0
        %v5179 = vand.u32 %v4640, 4294901760
        %5180 = vmatpush1.msra.mxu0 %v5179
        %5181 = vmatprep.subr.mxu0 0.0
        %v5182 = vand.u32 %v4639, 4294901760
        %5183 = vmatpush1.msra.mxu0 %v5182
        %5184 = vmatprep.subr.mxu0 0.0
        %5185 = vmatpush2.msra.mxu0 0.0
        %5186 = vmatprep.subr.mxu0 0.0
        %5187 = vmatpush2.msra.mxu0 0.0
        %5188 = vmatprep.subr.mxu0 0.0
        %5189 = vmatpush2.msra.mxu0 0.0
        %5190 = vmatprep.subr.mxu0 0.0
        %5191 = vmatpush2.msra.mxu0 0.0
        %5192 = vmatprep.subr.mxu0 0.0
        %5193 = vmatpush2.msra.mxu0 0.0
        %5194 = vmatprep.subr.mxu0 0.0
        %5195 = vmatpush2.msra.mxu0 0.0
        %5196 = vmatprep.subr.mxu0 0.0
        %5197 = vmatpush2.msra.mxu0 0.0
        %5198 = vmatprep.subr.mxu0 0.0
        %5199 = vmatpush2.msra.mxu0 0.0
        %5200 = vmatprep.subr.mxu0 0.0
        %5201 = vmatpush2.msra.mxu0 0.0
        %5202 = vmatprep.subr.mxu0 0.0
        %5203 = vmatpush2.msra.mxu0 0.0
        %5204 = vmatprep.subr.mxu0 0.0
        %5205 = vmatpush2.msra.mxu0 0.0
        %5206 = vmatprep.subr.mxu0 0.0
        %5207 = vmatpush2.msra.mxu0 0.0
        %5208 = vmatprep.subr.mxu0 0.0
        %5209 = vmatpush2.msra.mxu0 0.0
        %5210 = vmatprep.subr.mxu0 0.0
        %5211 = vmatpush2.msra.mxu0 0.0
        %5212 = vmatprep.subr.mxu0 0.0
        %5213 = vmatpush2.msra.mxu0 0.0
        %5214 = vmatprep.subr.mxu0 0.0
        %5215 = vmatpush2.msra.mxu0 0.0
        %5216 = vmatprep.mubr.f32.mxu0 0.0
        %v5217 = vand.u32 %v4642, 4294901760
        %5218 = vmatmul.mubr.f32.gmra.mxu0 %v5217
        %v5219 = vpop.f32.mrf.mxu0
        %v5220 = vadd.f32 %v5129, %v5219
        %v5221 = vpop.f32.mrf.mxu0
        %5222 = vmatprep.mubr.f32.mxu0 0.0
        %v5223 = vand.u32 %v4645, 4294901760
        %5224 = vmatmul.mubr.f32.gmra.mxu0 %v5223
        %v5225 = vpop.f32.mrf.mxu0
        %v5226 = vadd.f32 %v5135, %v5225
        %v5227 = vpop.f32.mrf.mxu0
        %5228 = vmatprep.mubr.f32.mxu0 0.0
        %v5229 = vand.u32 %v4648, 4294901760
        %5230 = vmatmul.mubr.f32.gmra.mxu0 %v5229
        %v5231 = vpop.f32.mrf.mxu0
        %v5232 = vadd.f32 %v5141, %v5231
        %v5233 = vpop.f32.mrf.mxu0
        %5234 = vmatprep.mubr.f32.mxu0 0.0
        %v5235 = vand.u32 %v4651, 4294901760
        %5236 = vmatmul.mubr.f32.gmra.mxu0 %v5235
        %v5237 = vpop.f32.mrf.mxu0
        %v5238 = vadd.f32 %v5147, %v5237
        %v5239 = vpop.f32.mrf.mxu0
        %5240 = vdwg.mxu0
        %v5241 = vld [vmem:[%s241] sm:$0xff]
        %v5242 = vld [vmem:[%s241 + $0x8] sm:$0xff]
        %v5243 = vld [vmem:[%s241 + $0x10] sm:$0xff]
        %v5244 = vld [vmem:[%s241 + $0x18] sm:$0xff]
        %v5245 = vadd.f32 %v5241, %v5220
        %v5246 = vadd.f32 %v5242, %v5226
        %v5247 = vadd.f32 %v5243, %v5232
        %v5248 = vadd.f32 %v5244, %v5238
        %5249 = vst.msk [vmem:[%s241] sm:$0xff] %vm1522, %v5245
        %5250 = vst.msk [vmem:[%s241 + $0x8] sm:$0xff] %vm1522, %v5246
        %5251 = vst.msk [vmem:[%s241 + $0x10] sm:$0xff] %vm1522, %v5247
        %5252 = vst.msk [vmem:[%s241 + $0x18] sm:$0xff] %vm1522, %v5248
        %s5253 = sand.u32 %s76, 1
        %s5254 = scalar_lea.sflag [#allocation4], %s5253
        %s5255 = sand.u32 %s76, 1
        %s5256 = smul.addr %s5255, 32
        %s5257 = scalar_lea.vmem [#allocation3], %s5256
        // Predicated region
        $region63: #{tpu_custom_call.1} parent=57 // pred_check
          %p5258 = pneg %p86
        $region64: #{tpu_custom_call.1} parent=57 // pred_check_branch
          %5260 = sbr.rel (%p5258) target = $region66
        $region65: #{tpu_custom_call.1} parent=57 // pred_region
          %s5261 = smul.u32 4, %s22
          %s5263 = ssub.s32 512, 512
          %5264 = vsyncadd %s5254, %s5263
          %s5265 = smul.addr %s21, 8
          %s5266 = sadd.s32 %s5261, %s5265
          %s5267 = smul.addr %s20, 16
          %s5268 = sadd.s32 %s5266, %s5267
          %s5269 = smul.addr %s5268, 128
          %s5270 = scalar_lea.hbm %s1, %s5269
          %s5271 = sshll.u32 %s5257, 4
          %s5272 = int_to_ptr.vmem [resolvable:$true] %s5271
          %5277 = dma.vmem_to_hbm [thread:$0]  %s5272, 512, %s5270, %s5254, 128, 128, 8
        $region66: #{tpu_custom_call.1} parent=57 // pred_fallthru
          _
      $region58: #{tpu_custom_call.1} parent=5 // pred_fallthru
        _
      %p5278 = scmp.le.s32.totalorder 2, %s10
      // Predicated region
      $region67: #{tpu_custom_call.1} parent=5 // pred_check
        %p5279 = pneg %p5278
      $region68: #{tpu_custom_call.1} parent=5 // pred_check_branch
        %5281 = sbr.rel (%p5279) target = $region70
      $region69: #{tpu_custom_call.1} parent=5 // pred_region
        %s5282 = ssub.s32 %s10, 2
        // Predicated region
        $region71: #{tpu_custom_call.1} parent=69 // pred_check
          %p5283 = pneg %p92
        $region72: #{tpu_custom_call.1} parent=69 // pred_check_branch
          %5285 = sbr.rel (%p5283) target = $region74
        $region73: #{tpu_custom_call.1} parent=69 // pred_region
          %s5286 = sand.u32 %s77, 1
          %s5287 = scalar_lea.sflag [#allocation4], %s5286
          %s5288 = sand.u32 %s77, 1
          %s5289 = smul.addr %s5288, 32
          %s5290 = scalar_lea.vmem [#allocation3], %s5289
          %5291 = dma.done %s5287, 512
        $region74: #{tpu_custom_call.1} parent=69 // pred_fallthru
          _
      $region70: #{tpu_custom_call.1} parent=5 // pred_fallthru
        _
    $region6: #{tpu_custom_call.1} parent=1 // loop_footer
      %s14 = sadd.s32 1, %s10
    $region7: #{tpu_custom_call.1} parent=1 // loop_footer_branch
      %9 = sbr.rel target = $region3
    $region8: #{tpu_custom_call.1} parent=1 // loop_exit
      _
    %5292 = vsyncpa [#allocation4], 1
    %s5293 = scalar_lea.sflag [#allocation4], 1
    %5294 = vsyncpa %s5293, 1

</llo_original>
